<compile_context>
chip_gen: v7x
topology: tpu7x:2x2x1
jax: 0.10.0
libtpu: 0.0.40
codegen_flags: <defaults>
</compile_context>

<pallas_src>
import math
import functools

import jax
import jax.numpy as jnp
from jax.experimental import pallas as pl
from jax.experimental.pallas import tpu as pltpu


# ----------------------------- in-kernel helpers -----------------------------

def _layernorm(x, w, b, eps=1e-5):
    mu = jnp.mean(x, axis=-1, keepdims=True)
    var = jnp.mean(jnp.square(x - mu), axis=-1, keepdims=True)
    return (x - mu) * jax.lax.rsqrt(var + eps) * w + b


def _gelu_tanh(x):
    # PyTorch nn.GELU(approximate='tanh')
    c = math.sqrt(2.0 / math.pi)
    return 0.5 * x * (1.0 + jnp.tanh(c * (x + 0.044715 * x * x * x)))


# ------------------------------ Pallas kernels -------------------------------

def qkv_kernel(x_ref, ln1w_ref, ln1b_ref,
               wq_ref, bq_ref, wk_ref, bk_ref, wv_ref, bv_ref,
               q_ref, k_ref, v_ref):
    """ln_1(x) followed by the three attention input projections.

    Grid: (B, T//tq). Weights are VMEM-resident (constant index_map)."""
    x = x_ref[0].astype(jnp.float32)                       # (tq, C)
    h = _layernorm(x, ln1w_ref[...], ln1b_ref[...])
    hb = h.astype(jnp.bfloat16)                            # MXU operands in bf16
    q = jnp.dot(hb, wq_ref[...], preferred_element_type=jnp.float32) + bq_ref[...]
    k = jnp.dot(hb, wk_ref[...], preferred_element_type=jnp.float32) + bk_ref[...]
    v = jnp.dot(hb, wv_ref[...], preferred_element_type=jnp.float32) + bv_ref[...]
    q_ref[...] = q[None].astype(q_ref.dtype)
    k_ref[...] = k[None].astype(k_ref.dtype)
    v_ref[...] = v[None].astype(v_ref.dtype)


def attn_mlp_kernel(x_ref, q_ref, k_ref, v_ref,
                    wproj_ref, bproj_ref,
                    ln2w_ref, ln2b_ref,
                    wfc_ref, bfc_ref,
                    wmp_ref, bmp_ref,
                    out_ref,
                    xmid_sc, h2_sc, acc_sc,
                    *, n_head, seq_len, q_tile):
    """Causal attention (heads batched) + c_proj + residual + ln_2 + MLP.

    Grid: (B, T//tq, 4C//tf). The attention / residual / ln_2 part runs once
    per (b, t) at f == 0; the MLP hidden dimension is F-tiled along the
    innermost ("arbitrary") axis and accumulated into acc_sc (f32)."""
    # Grid reads hoisted out of pl.when bodies (required for clean lowering).
    f = pl.program_id(2)
    n_f = pl.num_programs(2)
    q0 = pl.program_id(1) * q_tile                         # global query offset

    @pl.when(f == 0)
    def _attention_and_ln2():
        x = x_ref[0].astype(jnp.float32)                   # (tq, C) residual
        tq, C = x.shape
        hd = C // n_head
        scale = 1.0 / math.sqrt(hd)

        q = q_ref[0]                                       # (tq, C) bf16
        k = k_ref[0]                                       # (T,  C) bf16 (full seq)
        v = v_ref[0]                                       # (T,  C) bf16 (full seq)

        # One head split per query tile: (rows, C) -> (H, rows, hd).
        qh = jnp.transpose(q.reshape(tq, n_head, hd), (1, 0, 2))
        kh = jnp.transpose(k.reshape(seq_len, n_head, hd), (1, 0, 2))
        vh = jnp.transpose(v.reshape(seq_len, n_head, hd), (1, 0, 2))

        s = jnp.einsum('hqd,hkd->hqk', qh, kh,
                       preferred_element_type=jnp.float32) * scale   # (H, tq, T)

        rows = q0 + jax.lax.broadcasted_iota(jnp.int32, (tq, seq_len), 0)
        cols = jax.lax.broadcasted_iota(jnp.int32, (tq, seq_len), 1)
        causal = (cols <= rows)[None, :, :]
        s = jnp.where(causal, s, jnp.float32(-1e30))       # finite mask (NaN-safe)

        # Softmax in f32.
        m = jnp.max(s, axis=-1, keepdims=True)
        p = jnp.exp(s - m)
        p = p / jnp.sum(p, axis=-1, keepdims=True)

        yh = jnp.einsum('hqk,hkd->hqd', p.astype(jnp.bfloat16), vh,
                        preferred_element_type=jnp.float32)          # (H, tq, hd)
        y = jnp.transpose(yh, (1, 0, 2)).reshape(tq, C)

        y = jnp.dot(y.astype(jnp.bfloat16), wproj_ref[...],
                    preferred_element_type=jnp.float32) + bproj_ref[...]

        xm = x + y                                         # first residual
        xmid_sc[...] = xm
        h2_sc[...] = _layernorm(xm, ln2w_ref[...], ln2b_ref[...]).astype(jnp.bfloat16)
        acc_sc[...] = jnp.zeros_like(acc_sc)

    # ---- MLP F-tile: gelu(h2 @ wfc[:, f-tile] + bfc[f-tile]) @ wmp[f-tile] ----
    hb = jnp.dot(h2_sc[...], wfc_ref[...],
                 preferred_element_type=jnp.float32) + bfc_ref[...]   # (tq, tf) f32
    hb = _gelu_tanh(hb)
    acc_sc[...] += jnp.dot(hb.astype(jnp.bfloat16), wmp_ref[...],
                           preferred_element_type=jnp.float32)

    @pl.when(f == n_f - 1)
    def _finalize():
        out = xmid_sc[...] + acc_sc[...] + bmp_ref[...]    # second residual
        out_ref[...] = out[None].astype(out_ref.dtype)


# ------------------------------- host wrapper ---------------------------------

def _pick_tile(total, max_tile, quantum):
    """Largest divisor of `total` that is <= max_tile and a multiple of quantum."""
    if total <= max_tile:
        return total
    t = (max_tile // quantum) * quantum
    while t >= quantum:
        if total % t == 0:
            return t
        t -= quantum
    return total


def block_forward(x, p, n_head, *, q_tile=None, f_tile=None):
    B, T, C = x.shape
    assert C % n_head == 0
    F = 4 * C
    tq = q_tile if q_tile is not None else _pick_tile(T, 256, 8)
    tf = f_tile if f_tile is not None else _pick_tile(F, 1024, 128)
    assert T % tq == 0 and (tq % 8 == 0 or tq == T)
    assert F % tf == 0 and (tf % 128 == 0 or tf == F)
    n_t, n_f = T // tq, F // tf

    x = x.astype(jnp.float32)
    row = lambda a: a.reshape(1, -1)          # 1-D params -> (1, N) TPU-friendly

    # -------------------- kernel 1: ln_1 + q/k/v projections --------------------
    const2 = lambda b, t: (0, 0)
    q, k, v = pl.pallas_call(
        qkv_kernel,
        out_shape=(jax.ShapeDtypeStruct((B, T, C), jnp.bfloat16),
                   jax.ShapeDtypeStruct((B, T, C), jnp.bfloat16),
                   jax.ShapeDtypeStruct((B, T, C), jnp.bfloat16)),
        grid_spec=pltpu.PrefetchScalarGridSpec(
            num_scalar_prefetch=0,
            grid=(B, n_t),
            in_specs=[
                pl.BlockSpec((1, tq, C), lambda b, t: (b, t, 0)),   # x
                pl.BlockSpec((1, C), const2),                       # ln1_w
                pl.BlockSpec((1, C), const2),                       # ln1_b
                pl.BlockSpec((C, C), const2),                       # wq
                pl.BlockSpec((1, C), const2),                       # bq
                pl.BlockSpec((C, C), const2),                       # wk
                pl.BlockSpec((1, C), const2),                       # bk
                pl.BlockSpec((C, C), const2),                       # wv
                pl.BlockSpec((1, C), const2),                       # bv
            ],
            out_specs=[pl.BlockSpec((1, tq, C), lambda b, t: (b, t, 0))] * 3,
        ),
        compiler_params=pltpu.CompilerParams(
            dimension_semantics=("parallel", "parallel")),
        cost_estimate=pl.CostEstimate(
            flops=2 * B * T * C * 3 * C,
            transcendentals=0,
            bytes_accessed=4 * B * T * C + 2 * 3 * C * C + 2 * 3 * B * T * C),
    )(x, row(p['ln1_w']), row(p['ln1_b']),
      p['wq'], row(p['bq']), p['wk'], row(p['bk']), p['wv'], row(p['bv']))

    # -------- kernel 2: attention + c_proj + residual + ln_2 + MLP + residual --------
    const3 = lambda b, t, f: (0, 0)
    kernel2 = functools.partial(attn_mlp_kernel, n_head=n_head, seq_len=T, q_tile=tq)
    out = pl.pallas_call(
        kernel2,
        out_shape=jax.ShapeDtypeStruct((B, T, C), jnp.float32),
        grid_spec=pltpu.PrefetchScalarGridSpec(
            num_scalar_prefetch=0,
            grid=(B, n_t, n_f),
            in_specs=[
                pl.BlockSpec((1, tq, C), lambda b, t, f: (b, t, 0)),  # x (residual)
                pl.BlockSpec((1, tq, C), lambda b, t, f: (b, t, 0)),  # q tile
                pl.BlockSpec((1, T, C), lambda b, t, f: (b, 0, 0)),   # k (full seq)
                pl.BlockSpec((1, T, C), lambda b, t, f: (b, 0, 0)),   # v (full seq)
                pl.BlockSpec((C, C), const3),                         # wproj
                pl.BlockSpec((1, C), const3),                         # bproj
                pl.BlockSpec((1, C), const3),                         # ln2_w
                pl.BlockSpec((1, C), const3),                         # ln2_b
                pl.BlockSpec((C, tf), lambda b, t, f: (0, f)),        # wfc tile
                pl.BlockSpec((1, tf), lambda b, t, f: (0, f)),        # bfc tile
                pl.BlockSpec((tf, C), lambda b, t, f: (f, 0)),        # wmp tile
                pl.BlockSpec((1, C), const3),                         # bmp
            ],
            out_specs=pl.BlockSpec((1, tq, C), lambda b, t, f: (b, t, 0)),
            scratch_shapes=[
                pltpu.VMEM((tq, C), jnp.float32),   # x + attn(...)  (first residual)
                pltpu.VMEM((tq, C), jnp.bfloat16),  # ln_2 activations (MXU operand)
                pltpu.VMEM((tq, C), jnp.float32),   # MLP accumulator
            ],
        ),
        compiler_params=pltpu.CompilerParams(
            dimension_semantics=("parallel", "parallel", "arbitrary")),
        cost_estimate=pl.CostEstimate(
            flops=2 * B * T * C * (2 * T + 9 * C),
            transcendentals=B * n_head * T * T + B * T * 4 * C,
            bytes_accessed=(4 * B * T * C + 3 * 2 * B * T * C
                            + 2 * (C * C + 8 * C * C) + 4 * B * T * C)),
    )(x, q, k, v,
      p['wproj'], row(p['bproj']), row(p['ln2_w']), row(p['ln2_b']),
      p['wfc'], row(p['bfc']), p['wmp'], row(p['bmp']))
    return out


# ------------------------- deterministic initialization -----------------------

def init_block_params(key, n_embd, n_head):
    C = n_embd
    std_w, std_b = 0.1, 0.05
    ks = jax.random.split(key, 16)
    w = lambda k, s: (std_w * jax.random.normal(k, s, jnp.float32)).astype(jnp.bfloat16)
    b = lambda k, s: std_b * jax.random.normal(k, s, jnp.float32)
    return dict(
        ln1_w=1.0 + 0.1 * jax.random.normal(ks[12], (C,), jnp.float32),
        ln1_b=0.05 * jax.random.normal(ks[13], (C,), jnp.float32),
        wq=w(ks[0], (C, C)), bq=b(ks[1], (C,)),
        wk=w(ks[2], (C, C)), bk=b(ks[3], (C,)),
        wv=w(ks[4], (C, C)), bv=b(ks[5], (C,)),
        wproj=w(ks[6], (C, C)), bproj=b(ks[7], (C,)),
        ln2_w=1.0 + 0.1 * jax.random.normal(ks[14], (C,), jnp.float32),
        ln2_b=0.05 * jax.random.normal(ks[15], (C,), jnp.float32),
        wfc=w(ks[8], (C, 4 * C)), bfc=b(ks[9], (4 * C,)),
        wmp=w(ks[10], (4 * C, C)), bmp=b(ks[11], (C,)),
    )


# ------------------------------ pure-JAX reference -----------------------------

def block_reference(x, p, n_head):
    """Plain-JAX Block forward; matmul operands rounded to bf16 (matching the
    kernel's MXU precision) with f32 accumulation and f32 elementwise math."""
    f32, bf16 = jnp.float32, jnp.bfloat16
    B, T, C = x.shape
    hd = C // n_head
    scale = 1.0 / math.sqrt(hd)

    def ln(h, w, b):
        mu = jnp.mean(h, axis=-1, keepdims=True)
        var = jnp.mean(jnp.square(h - mu), axis=-1, keepdims=True)
        return (h - mu) * jax.lax.rsqrt(var + 1e-5) * w + b

    def mm(a, w):
        return jnp.dot(a.astype(bf16), w.astype(bf16), preferred_element_type=f32)

    x = x.astype(f32)
    h = ln(x, p['ln1_w'], p['ln1_b'])
    q = (mm(h, p['wq']) + p['bq']).astype(bf16)
    k = (mm(h, p['wk']) + p['bk']).astype(bf16)
    v = (mm(h, p['wv']) + p['bv']).astype(bf16)
    q = q.reshape(B, T, n_head, hd).transpose(0, 2, 1, 3)
    k = k.reshape(B, T, n_head, hd).transpose(0, 2, 1, 3)
    v = v.reshape(B, T, n_head, hd).transpose(0, 2, 1, 3)
    s = jnp.einsum('bhqd,bhkd->bhqk', q, k, preferred_element_type=f32) * scale
    mask = jnp.tril(jnp.ones((T, T), bool))
    s = jnp.where(mask, s, jnp.float32(-1e30))
    att = jnp.exp(s - jnp.max(s, axis=-1, keepdims=True))
    att = att / jnp.sum(att, axis=-1, keepdims=True)
    y = jnp.einsum('bhqk,bhkd->bhqd', att.astype(bf16), v, preferred_element_type=f32)
    y = y.transpose(0, 2, 1, 3).reshape(B, T, C)
    x = x + mm(y, p['wproj']) + p['bproj']
    h2 = ln(x, p['ln2_w'], p['ln2_b'])
    h2 = _gelu_tanh(mm(h2, p['wfc']) + p['bfc'])
    return x + mm(h2, p['wmp']) + p['bmp']


# ------------------------------------ main -------------------------------------

if __name__ == "__main__":
    B, T, C, H = 2, 64, 64, 4           # small Block config (hd = 16, 4C = 256)
    key = jax.random.PRNGKey(0)
    kx, kp = jax.random.split(key)
    x = jax.random.normal(kx, (B, T, C), jnp.float32)
    params = init_block_params(kp, C, H)

    # q_tile=16 / f_tile=128 exercise the T grid (4 tiles) and the F grid (2 tiles).
    fwd = jax.jit(functools.partial(block_forward, n_head=H, q_tile=16, f_tile=128))
    out = jax.block_until_ready(fwd(x, params))
    assert out.shape == (B, T, C), out.shape

    ref = jax.block_until_ready(block_reference(x, params, H))
    max_err = float(jnp.max(jnp.abs(out - ref)))
    assert jnp.allclose(out, ref, atol=5e-3, rtol=5e-3), max_err

    print("KERNEL_OK")
</pallas_src>

<mosaic_0001>
module attributes {stable_mosaic.version = 11 : i64} {
  func.func @qkv_kernel(%arg0: i32, %arg1: i32, %arg2: memref<1x16x64xf32, #tpu.memory_space<vmem>>, %arg3: memref<1x64xf32, #tpu.memory_space<vmem>>, %arg4: memref<1x64xf32, #tpu.memory_space<vmem>>, %arg5: memref<64x64xbf16, #tpu.memory_space<vmem>>, %arg6: memref<1x64xf32, #tpu.memory_space<vmem>>, %arg7: memref<64x64xbf16, #tpu.memory_space<vmem>>, %arg8: memref<1x64xf32, #tpu.memory_space<vmem>>, %arg9: memref<64x64xbf16, #tpu.memory_space<vmem>>, %arg10: memref<1x64xf32, #tpu.memory_space<vmem>>, %arg11: memref<1x16x64xbf16, #tpu.memory_space<vmem>>, %arg12: memref<1x16x64xbf16, #tpu.memory_space<vmem>>, %arg13: memref<1x16x64xbf16, #tpu.memory_space<vmem>>) attributes {dimension_semantics = [#tpu.dimension_semantics<parallel>, #tpu.dimension_semantics<parallel>], iteration_bounds = array<i64: 2, 4>, scalar_prefetch = 0 : i64, scratch_operands = 0 : i64, tpu.core_type = #tpu.core_type<tc>, window_params = [{transform_indices = @transform_0, window_bounds = array<i64: 1, 16, 64>}, {pipeline_mode = #tpu.pipeline_mode<synchronous>, transform_indices = @transform_1, window_bounds = array<i64: 1, 64>}, {pipeline_mode = #tpu.pipeline_mode<synchronous>, transform_indices = @transform_2, window_bounds = array<i64: 1, 64>}, {pipeline_mode = #tpu.pipeline_mode<synchronous>, transform_indices = @transform_3, window_bounds = array<i64: 64, 64>}, {pipeline_mode = #tpu.pipeline_mode<synchronous>, transform_indices = @transform_4, window_bounds = array<i64: 1, 64>}, {pipeline_mode = #tpu.pipeline_mode<synchronous>, transform_indices = @transform_5, window_bounds = array<i64: 64, 64>}, {pipeline_mode = #tpu.pipeline_mode<synchronous>, transform_indices = @transform_6, window_bounds = array<i64: 1, 64>}, {pipeline_mode = #tpu.pipeline_mode<synchronous>, transform_indices = @transform_7, window_bounds = array<i64: 64, 64>}, {pipeline_mode = #tpu.pipeline_mode<synchronous>, transform_indices = @transform_8, window_bounds = array<i64: 1, 64>}, {transform_indices = @transform_9, window_bounds = array<i64: 1, 16, 64>}, {transform_indices = @transform_10, window_bounds = array<i64: 1, 16, 64>}, {transform_indices = @transform_11, window_bounds = array<i64: 1, 16, 64>}]} {
    %c0 = arith.constant 0 : index
    %c0_0 = arith.constant 0 : index
    %c0_1 = arith.constant 0 : index
    %0 = vector.load %arg2[%c0, %c0_0, %c0_1] : memref<1x16x64xf32, #tpu.memory_space<vmem>>, vector<1x16x64xf32>
    %1 = vector.shape_cast %0 : vector<1x16x64xf32> to vector<16x64xf32>
    %c0_2 = arith.constant 0 : index
    %c0_3 = arith.constant 0 : index
    %2 = vector.load %arg3[%c0_2, %c0_3] : memref<1x64xf32, #tpu.memory_space<vmem>>, vector<1x64xf32>
    %c0_4 = arith.constant 0 : index
    %c0_5 = arith.constant 0 : index
    %3 = vector.load %arg4[%c0_4, %c0_5] : memref<1x64xf32, #tpu.memory_space<vmem>>, vector<1x64xf32>
    %cst = arith.constant dense<0.000000e+00> : vector<16xf32>
    %4 = vector.multi_reduction <add>, %1, %cst [1] : vector<16x64xf32> to vector<16xf32>
    %5 = vector.shape_cast %4 : vector<16xf32> to vector<16x1xf32>
    %cst_6 = arith.constant 6.400000e+01 : f32
    %6 = vector.broadcast %cst_6 : f32 to vector<16x1xf32>
    %7 = arith.divf %5, %6 : vector<16x1xf32>
    %8 = vector.broadcast %7 : vector<16x1xf32> to vector<16x64xf32>
    %9 = arith.subf %1, %8 : vector<16x64xf32>
    %10 = arith.mulf %9, %9 : vector<16x64xf32>
    %cst_7 = arith.constant dense<0.000000e+00> : vector<16xf32>
    %11 = vector.multi_reduction <add>, %10, %cst_7 [1] : vector<16x64xf32> to vector<16xf32>
    %12 = vector.shape_cast %11 : vector<16xf32> to vector<16x1xf32>
    %cst_8 = arith.constant 6.400000e+01 : f32
    %13 = vector.broadcast %cst_8 : f32 to vector<16x1xf32>
    %14 = arith.divf %12, %13 : vector<16x1xf32>
    %15 = vector.broadcast %7 : vector<16x1xf32> to vector<16x64xf32>
    %16 = arith.subf %1, %15 : vector<16x64xf32>
    %cst_9 = arith.constant 9.99999974E-6 : f32
    %17 = vector.broadcast %cst_9 : f32 to vector<16x1xf32>
    %18 = arith.addf %14, %17 : vector<16x1xf32>
    %19 = math.rsqrt %18 : vector<16x1xf32>
    %20 = vector.broadcast %19 : vector<16x1xf32> to vector<16x64xf32>
    %21 = arith.mulf %16, %20 : vector<16x64xf32>
    %22 = vector.broadcast %2 : vector<1x64xf32> to vector<16x64xf32>
    %23 = arith.mulf %21, %22 : vector<16x64xf32>
    %24 = vector.broadcast %3 : vector<1x64xf32> to vector<16x64xf32>
    %25 = arith.addf %23, %24 : vector<16x64xf32>
    %26 = arith.truncf %25 : vector<16x64xf32> to vector<16x64xbf16>
    %c0_10 = arith.constant 0 : index
    %c0_11 = arith.constant 0 : index
    %27 = vector.load %arg5[%c0_10, %c0_11] : memref<64x64xbf16, #tpu.memory_space<vmem>>, vector<64x64xbf16>
    %cst_12 = arith.constant dense<0.000000e+00> : vector<16x64xf32>
    %28 = tpu.matmul %26, %27, %cst_12 {dimension_numbers = #tpu.dot_dimension_numbers<[1], [0], [0], [1], [0, 0, 1, 1], [], []>} : vector<16x64xbf16>, vector<64x64xbf16>, vector<16x64xf32> -> vector<16x64xf32>
    %c0_13 = arith.constant 0 : index
    %c0_14 = arith.constant 0 : index
    %29 = vector.load %arg6[%c0_13, %c0_14] : memref<1x64xf32, #tpu.memory_space<vmem>>, vector<1x64xf32>
    %30 = vector.broadcast %29 : vector<1x64xf32> to vector<16x64xf32>
    %31 = arith.addf %28, %30 : vector<16x64xf32>
    %c0_15 = arith.constant 0 : index
    %c0_16 = arith.constant 0 : index
    %32 = vector.load %arg7[%c0_15, %c0_16] : memref<64x64xbf16, #tpu.memory_space<vmem>>, vector<64x64xbf16>
    %cst_17 = arith.constant dense<0.000000e+00> : vector<16x64xf32>
    %33 = tpu.matmul %26, %32, %cst_17 {dimension_numbers = #tpu.dot_dimension_numbers<[1], [0], [0], [1], [0, 0, 1, 1], [], []>} : vector<16x64xbf16>, vector<64x64xbf16>, vector<16x64xf32> -> vector<16x64xf32>
    %c0_18 = arith.constant 0 : index
    %c0_19 = arith.constant 0 : index
    %34 = vector.load %arg8[%c0_18, %c0_19] : memref<1x64xf32, #tpu.memory_space<vmem>>, vector<1x64xf32>
    %35 = vector.broadcast %34 : vector<1x64xf32> to vector<16x64xf32>
    %36 = arith.addf %33, %35 : vector<16x64xf32>
    %c0_20 = arith.constant 0 : index
    %c0_21 = arith.constant 0 : index
    %37 = vector.load %arg9[%c0_20, %c0_21] : memref<64x64xbf16, #tpu.memory_space<vmem>>, vector<64x64xbf16>
    %cst_22 = arith.constant dense<0.000000e+00> : vector<16x64xf32>
    %38 = tpu.matmul %26, %37, %cst_22 {dimension_numbers = #tpu.dot_dimension_numbers<[1], [0], [0], [1], [0, 0, 1, 1], [], []>} : vector<16x64xbf16>, vector<64x64xbf16>, vector<16x64xf32> -> vector<16x64xf32>
    %c0_23 = arith.constant 0 : index
    %c0_24 = arith.constant 0 : index
    %39 = vector.load %arg10[%c0_23, %c0_24] : memref<1x64xf32, #tpu.memory_space<vmem>>, vector<1x64xf32>
    %40 = vector.broadcast %39 : vector<1x64xf32> to vector<16x64xf32>
    %41 = arith.addf %38, %40 : vector<16x64xf32>
    %42 = vector.shape_cast %31 : vector<16x64xf32> to vector<1x16x64xf32>
    %43 = arith.truncf %42 : vector<1x16x64xf32> to vector<1x16x64xbf16>
    %c0_25 = arith.constant 0 : index
    %c0_26 = arith.constant 0 : index
    %c0_27 = arith.constant 0 : index
    %44 = vector.load %arg11[%c0_25, %c0_26, %c0_27] : memref<1x16x64xbf16, #tpu.memory_space<vmem>>, vector<1x16x64xbf16>
    tpu.vector_store %arg11[%c0_25, %c0_26, %c0_27], %43 {strides = array<i32>} : memref<1x16x64xbf16, #tpu.memory_space<vmem>>, vector<1x16x64xbf16>,
    %45 = vector.shape_cast %36 : vector<16x64xf32> to vector<1x16x64xf32>
    %46 = arith.truncf %45 : vector<1x16x64xf32> to vector<1x16x64xbf16>
    %c0_28 = arith.constant 0 : index
    %c0_29 = arith.constant 0 : index
    %c0_30 = arith.constant 0 : index
    %47 = vector.load %arg12[%c0_28, %c0_29, %c0_30] : memref<1x16x64xbf16, #tpu.memory_space<vmem>>, vector<1x16x64xbf16>
    tpu.vector_store %arg12[%c0_28, %c0_29, %c0_30], %46 {strides = array<i32>} : memref<1x16x64xbf16, #tpu.memory_space<vmem>>, vector<1x16x64xbf16>,
    %48 = vector.shape_cast %41 : vector<16x64xf32> to vector<1x16x64xf32>
    %49 = arith.truncf %48 : vector<1x16x64xf32> to vector<1x16x64xbf16>
    %c0_31 = arith.constant 0 : index
    %c0_32 = arith.constant 0 : index
    %c0_33 = arith.constant 0 : index
    %50 = vector.load %arg13[%c0_31, %c0_32, %c0_33] : memref<1x16x64xbf16, #tpu.memory_space<vmem>>, vector<1x16x64xbf16>
    tpu.vector_store %arg13[%c0_31, %c0_32, %c0_33], %49 {strides = array<i32>} : memref<1x16x64xbf16, #tpu.memory_space<vmem>>, vector<1x16x64xbf16>,
    return
  }
  func.func @transform_0(%arg0: i32, %arg1: i32) -> (i32, i32, i32) {
    %c0_i32 = arith.constant 0 : i32
    %c0_i32_0 = arith.constant 0 : i32
    return %arg0, %arg1, %c0_i32 : i32, i32, i32
  }
  func.func @transform_1(%arg0: i32, %arg1: i32) -> (i32, i32) {
    %c0_i32 = arith.constant 0 : i32
    %c0_i32_0 = arith.constant 0 : i32
    %c0_i32_1 = arith.constant 0 : i32
    return %c0_i32, %c0_i32_0 : i32, i32
  }
  func.func @transform_2(%arg0: i32, %arg1: i32) -> (i32, i32) {
    %c0_i32 = arith.constant 0 : i32
    %c0_i32_0 = arith.constant 0 : i32
    %c0_i32_1 = arith.constant 0 : i32
    return %c0_i32, %c0_i32_0 : i32, i32
  }
  func.func @transform_3(%arg0: i32, %arg1: i32) -> (i32, i32) {
    %c0_i32 = arith.constant 0 : i32
    %c0_i32_0 = arith.constant 0 : i32
    %c0_i32_1 = arith.constant 0 : i32
    return %c0_i32, %c0_i32_0 : i32, i32
  }
  func.func @transform_4(%arg0: i32, %arg1: i32) -> (i32, i32) {
    %c0_i32 = arith.constant 0 : i32
    %c0_i32_0 = arith.constant 0 : i32
    %c0_i32_1 = arith.constant 0 : i32
    return %c0_i32, %c0_i32_0 : i32, i32
  }
  func.func @transform_5(%arg0: i32, %arg1: i32) -> (i32, i32) {
    %c0_i32 = arith.constant 0 : i32
    %c0_i32_0 = arith.constant 0 : i32
    %c0_i32_1 = arith.constant 0 : i32
    return %c0_i32, %c0_i32_0 : i32, i32
  }
  func.func @transform_6(%arg0: i32, %arg1: i32) -> (i32, i32) {
    %c0_i32 = arith.constant 0 : i32
    %c0_i32_0 = arith.constant 0 : i32
    %c0_i32_1 = arith.constant 0 : i32
    return %c0_i32, %c0_i32_0 : i32, i32
  }
  func.func @transform_7(%arg0: i32, %arg1: i32) -> (i32, i32) {
    %c0_i32 = arith.constant 0 : i32
    %c0_i32_0 = arith.constant 0 : i32
    %c0_i32_1 = arith.constant 0 : i32
    return %c0_i32, %c0_i32_0 : i32, i32
  }
  func.func @transform_8(%arg0: i32, %arg1: i32) -> (i32, i32) {
    %c0_i32 = arith.constant 0 : i32
    %c0_i32_0 = arith.constant 0 : i32
    %c0_i32_1 = arith.constant 0 : i32
    return %c0_i32, %c0_i32_0 : i32, i32
  }
  func.func @transform_9(%arg0: i32, %arg1: i32) -> (i32, i32, i32) {
    %c0_i32 = arith.constant 0 : i32
    %c0_i32_0 = arith.constant 0 : i32
    return %arg0, %arg1, %c0_i32 : i32, i32, i32
  }
  func.func @transform_10(%arg0: i32, %arg1: i32) -> (i32, i32, i32) {
    %c0_i32 = arith.constant 0 : i32
    %c0_i32_0 = arith.constant 0 : i32
    return %arg0, %arg1, %c0_i32 : i32, i32, i32
  }
  func.func @transform_11(%arg0: i32, %arg1: i32) -> (i32, i32, i32) {
    %c0_i32 = arith.constant 0 : i32
    %c0_i32_0 = arith.constant 0 : i32
    return %arg0, %arg1, %c0_i32 : i32, i32, i32
  }
}

module attributes {stable_mosaic.version = 11 : i64} {
  func.func @attn_mlp_kernel(%arg0: i32, %arg1: i32, %arg2: i32, %arg3: memref<1x16x64xf32, #tpu.memory_space<vmem>>, %arg4: memref<1x16x64xbf16, #tpu.memory_space<vmem>>, %arg5: memref<1x64x64xbf16, #tpu.memory_space<vmem>>, %arg6: memref<1x64x64xbf16, #tpu.memory_space<vmem>>, %arg7: memref<64x64xbf16, #tpu.memory_space<vmem>>, %arg8: memref<1x64xf32, #tpu.memory_space<vmem>>, %arg9: memref<1x64xf32, #tpu.memory_space<vmem>>, %arg10: memref<1x64xf32, #tpu.memory_space<vmem>>, %arg11: memref<64x128xbf16, #tpu.memory_space<vmem>>, %arg12: memref<1x128xf32, #tpu.memory_space<vmem>>, %arg13: memref<128x64xbf16, #tpu.memory_space<vmem>>, %arg14: memref<1x64xf32, #tpu.memory_space<vmem>>, %arg15: memref<1x16x64xf32, #tpu.memory_space<vmem>>, %arg16: memref<16x64xf32, #tpu.memory_space<vmem>>, %arg17: memref<16x64xbf16, #tpu.memory_space<vmem>>, %arg18: memref<16x64xf32, #tpu.memory_space<vmem>>) attributes {dimension_semantics = [#tpu.dimension_semantics<parallel>, #tpu.dimension_semantics<parallel>, #tpu.dimension_semantics<arbitrary>], iteration_bounds = array<i64: 2, 4, 2>, scalar_prefetch = 0 : i64, scratch_operands = 3 : i64, tpu.core_type = #tpu.core_type<tc>, window_params = [{transform_indices = @transform_0, window_bounds = array<i64: 1, 16, 64>}, {transform_indices = @transform_1, window_bounds = array<i64: 1, 16, 64>}, {transform_indices = @transform_2, window_bounds = array<i64: 1, 64, 64>}, {transform_indices = @transform_3, window_bounds = array<i64: 1, 64, 64>}, {pipeline_mode = #tpu.pipeline_mode<synchronous>, transform_indices = @transform_4, window_bounds = array<i64: 64, 64>}, {pipeline_mode = #tpu.pipeline_mode<synchronous>, transform_indices = @transform_5, window_bounds = array<i64: 1, 64>}, {pipeline_mode = #tpu.pipeline_mode<synchronous>, transform_indices = @transform_6, window_bounds = array<i64: 1, 64>}, {pipeline_mode = #tpu.pipeline_mode<synchronous>, transform_indices = @transform_7, window_bounds = array<i64: 1, 64>}, {transform_indices = @transform_8, window_bounds = array<i64: 64, 128>}, {transform_indices = @transform_9, window_bounds = array<i64: 1, 128>}, {transform_indices = @transform_10, window_bounds = array<i64: 128, 64>}, {pipeline_mode = #tpu.pipeline_mode<synchronous>, transform_indices = @transform_11, window_bounds = array<i64: 1, 64>}, {transform_indices = @transform_12, window_bounds = array<i64: 1, 16, 64>}]} {
    %c16_i32 = arith.constant 16 : i32
    %0 = arith.muli %arg1, %c16_i32 : i32
    %c0_i32 = arith.constant 0 : i32
    %1 = arith.cmpi eq, %arg2, %c0_i32 : i32
    %2 = arith.extui %1 : i1 to i32
    %c0_i32_0 = arith.constant 0 : i32
    %3 = arith.cmpi ne, %2, %c0_i32_0 : i32
    scf.if %3 {
      %c0_18 = arith.constant 0 : index
      %c0_19 = arith.constant 0 : index
      %c0_20 = arith.constant 0 : index
      %32 = vector.load %arg3[%c0_18, %c0_19, %c0_20] : memref<1x16x64xf32, #tpu.memory_space<vmem>>, vector<1x16x64xf32>
      %33 = vector.shape_cast %32 : vector<1x16x64xf32> to vector<16x64xf32>
      %c0_21 = arith.constant 0 : index
      %c0_22 = arith.constant 0 : index
      %c0_23 = arith.constant 0 : index
      %34 = vector.load %arg4[%c0_21, %c0_22, %c0_23] : memref<1x16x64xbf16, #tpu.memory_space<vmem>>, vector<1x16x64xbf16>
      %35 = vector.shape_cast %34 : vector<1x16x64xbf16> to vector<16x64xbf16>
      %c0_24 = arith.constant 0 : index
      %c0_25 = arith.constant 0 : index
      %c0_26 = arith.constant 0 : index
      %36 = vector.load %arg5[%c0_24, %c0_25, %c0_26] : memref<1x64x64xbf16, #tpu.memory_space<vmem>>, vector<1x64x64xbf16>
      %37 = vector.shape_cast %36 : vector<1x64x64xbf16> to vector<64x64xbf16>
      %c0_27 = arith.constant 0 : index
      %c0_28 = arith.constant 0 : index
      %c0_29 = arith.constant 0 : index
      %38 = vector.load %arg6[%c0_27, %c0_28, %c0_29] : memref<1x64x64xbf16, #tpu.memory_space<vmem>>, vector<1x64x64xbf16>
      %39 = vector.shape_cast %38 : vector<1x64x64xbf16> to vector<64x64xbf16>
      %40 = vector.shape_cast %35 : vector<16x64xbf16> to vector<16x4x16xbf16>
      %41 = tpu.transpose %40, [1, 0, 2] : vector<16x4x16xbf16> -> vector<4x16x16xbf16>
      %42 = vector.shape_cast %37 : vector<64x64xbf16> to vector<64x4x16xbf16>
      %43 = tpu.transpose %42, [1, 0, 2] : vector<64x4x16xbf16> -> vector<4x64x16xbf16>
      %44 = vector.shape_cast %39 : vector<64x64xbf16> to vector<64x4x16xbf16>
      %45 = tpu.transpose %44, [1, 0, 2] : vector<64x4x16xbf16> -> vector<4x64x16xbf16>
      "tpu.trace_start"() <{level = 10 : i32, message = "hqd,hkd->hqk"}> : () -> ()
      %cst_30 = arith.constant dense<0.000000e+00> : vector<4x16x64xf32>
      %46 = tpu.matmul %41, %43, %cst_30 {dimension_numbers = #tpu.dot_dimension_numbers<[2], [2], [1], [1], [0, 0, 0, 1, 1, 1], [0], [0]>} : vector<4x16x16xbf16>, vector<4x64x16xbf16>, vector<4x16x64xf32> -> vector<4x16x64xf32>
      "tpu.trace_stop"() : () -> ()
      %cst_31 = arith.constant 2.500000e-01 : f32
      %47 = vector.broadcast %cst_31 : f32 to vector<4x16x64xf32>
      %48 = arith.mulf %46, %47 : vector<4x16x64xf32>
      %49 = tpu.iota {dimensions = array<i32: 0>} : vector<16x64xi32>
      %50 = vector.broadcast %0 : i32 to vector<16x64xi32>
      %51 = arith.addi %50, %49 : vector<16x64xi32>
      %52 = tpu.iota {dimensions = array<i32: 1>} : vector<16x64xi32>
      %53 = arith.cmpi sle, %52, %51 : vector<16x64xi32>
      %54 = vector.shape_cast %53 : vector<16x64xi1> to vector<1x16x64xi1>
      %cst_32 = arith.constant -1.000000e+30 : f32
      %55 = vector.shape_cast %54 : vector<1x16x64xi1> to vector<1x16x64xi1>
      %56 = vector.broadcast %55 : vector<1x16x64xi1> to vector<4x16x64xi1>
      %57 = vector.broadcast %cst_32 : f32 to vector<4x16x64xf32>
      %58 = arith.select %56, %48, %57 : vector<4x16x64xi1>, vector<4x16x64xf32>
      %cst_33 = arith.constant dense<0xFF800000> : vector<4x16xf32>
      %59 = vector.multi_reduction <maximumf>, %58, %cst_33 [2] : vector<4x16x64xf32> to vector<4x16xf32>
      %60 = vector.shape_cast %59 : vector<4x16xf32> to vector<4x16x1xf32>
      %61 = vector.broadcast %60 : vector<4x16x1xf32> to vector<4x16x64xf32>
      %62 = arith.subf %58, %61 : vector<4x16x64xf32>
      %63 = math.exp %62 : vector<4x16x64xf32>
      %cst_34 = arith.constant dense<0.000000e+00> : vector<4x16xf32>
      %64 = vector.multi_reduction <add>, %63, %cst_34 [2] : vector<4x16x64xf32> to vector<4x16xf32>
      %65 = vector.shape_cast %64 : vector<4x16xf32> to vector<4x16x1xf32>
      %66 = vector.broadcast %65 : vector<4x16x1xf32> to vector<4x16x64xf32>
      %67 = arith.divf %63, %66 : vector<4x16x64xf32>
      %68 = arith.truncf %67 : vector<4x16x64xf32> to vector<4x16x64xbf16>
      "tpu.trace_start"() <{level = 10 : i32, message = "hqk,hkd->hqd"}> : () -> ()
      %cst_35 = arith.constant dense<0.000000e+00> : vector<4x16x16xf32>
      %69 = tpu.matmul %68, %45, %cst_35 {dimension_numbers = #tpu.dot_dimension_numbers<[2], [1], [1], [2], [0, 0, 0, 1, 1, 2], [0], [0]>} : vector<4x16x64xbf16>, vector<4x64x16xbf16>, vector<4x16x16xf32> -> vector<4x16x16xf32>
      "tpu.trace_stop"() : () -> ()
      %70 = tpu.transpose %69, [1, 0, 2] : vector<4x16x16xf32> -> vector<16x4x16xf32>
      %71 = vector.shape_cast %70 : vector<16x4x16xf32> to vector<16x64xf32>
      %72 = arith.truncf %71 : vector<16x64xf32> to vector<16x64xbf16>
      %c0_36 = arith.constant 0 : index
      %c0_37 = arith.constant 0 : index
      %73 = vector.load %arg7[%c0_36, %c0_37] : memref<64x64xbf16, #tpu.memory_space<vmem>>, vector<64x64xbf16>
      %cst_38 = arith.constant dense<0.000000e+00> : vector<16x64xf32>
      %74 = tpu.matmul %72, %73, %cst_38 {dimension_numbers = #tpu.dot_dimension_numbers<[1], [0], [0], [1], [0, 0, 1, 1], [], []>} : vector<16x64xbf16>, vector<64x64xbf16>, vector<16x64xf32> -> vector<16x64xf32>
      %c0_39 = arith.constant 0 : index
      %c0_40 = arith.constant 0 : index
      %75 = vector.load %arg8[%c0_39, %c0_40] : memref<1x64xf32, #tpu.memory_space<vmem>>, vector<1x64xf32>
      %76 = vector.broadcast %75 : vector<1x64xf32> to vector<16x64xf32>
      %77 = arith.addf %74, %76 : vector<16x64xf32>
      %78 = arith.addf %33, %77 : vector<16x64xf32>
      %c0_41 = arith.constant 0 : index
      %c0_42 = arith.constant 0 : index
      %79 = vector.load %arg16[%c0_41, %c0_42] : memref<16x64xf32, #tpu.memory_space<vmem>>, vector<16x64xf32>
      tpu.vector_store %arg16[%c0_41, %c0_42], %78 {strides = array<i32>} : memref<16x64xf32, #tpu.memory_space<vmem>>, vector<16x64xf32>,
      %c0_43 = arith.constant 0 : index
      %c0_44 = arith.constant 0 : index
      %80 = vector.load %arg9[%c0_43, %c0_44] : memref<1x64xf32, #tpu.memory_space<vmem>>, vector<1x64xf32>
      %c0_45 = arith.constant 0 : index
      %c0_46 = arith.constant 0 : index
      %81 = vector.load %arg10[%c0_45, %c0_46] : memref<1x64xf32, #tpu.memory_space<vmem>>, vector<1x64xf32>
      %cst_47 = arith.constant dense<0.000000e+00> : vector<16xf32>
      %82 = vector.multi_reduction <add>, %78, %cst_47 [1] : vector<16x64xf32> to vector<16xf32>
      %83 = vector.shape_cast %82 : vector<16xf32> to vector<16x1xf32>
      %cst_48 = arith.constant 6.400000e+01 : f32
      %84 = vector.broadcast %cst_48 : f32 to vector<16x1xf32>
      %85 = arith.divf %83, %84 : vector<16x1xf32>
      %86 = vector.broadcast %85 : vector<16x1xf32> to vector<16x64xf32>
      %87 = arith.subf %78, %86 : vector<16x64xf32>
      %88 = arith.mulf %87, %87 : vector<16x64xf32>
      %cst_49 = arith.constant dense<0.000000e+00> : vector<16xf32>
      %89 = vector.multi_reduction <add>, %88, %cst_49 [1] : vector<16x64xf32> to vector<16xf32>
      %90 = vector.shape_cast %89 : vector<16xf32> to vector<16x1xf32>
      %cst_50 = arith.constant 6.400000e+01 : f32
      %91 = vector.broadcast %cst_50 : f32 to vector<16x1xf32>
      %92 = arith.divf %90, %91 : vector<16x1xf32>
      %93 = vector.broadcast %85 : vector<16x1xf32> to vector<16x64xf32>
      %94 = arith.subf %78, %93 : vector<16x64xf32>
      %cst_51 = arith.constant 9.99999974E-6 : f32
      %95 = vector.broadcast %cst_51 : f32 to vector<16x1xf32>
      %96 = arith.addf %92, %95 : vector<16x1xf32>
      %97 = math.rsqrt %96 : vector<16x1xf32>
      %98 = vector.broadcast %97 : vector<16x1xf32> to vector<16x64xf32>
      %99 = arith.mulf %94, %98 : vector<16x64xf32>
      %100 = vector.broadcast %80 : vector<1x64xf32> to vector<16x64xf32>
      %101 = arith.mulf %99, %100 : vector<16x64xf32>
      %102 = vector.broadcast %81 : vector<1x64xf32> to vector<16x64xf32>
      %103 = arith.addf %101, %102 : vector<16x64xf32>
      %104 = arith.truncf %103 : vector<16x64xf32> to vector<16x64xbf16>
      %c0_52 = arith.constant 0 : index
      %c0_53 = arith.constant 0 : index
      %105 = vector.load %arg17[%c0_52, %c0_53] : memref<16x64xbf16, #tpu.memory_space<vmem>>, vector<16x64xbf16>
      tpu.vector_store %arg17[%c0_52, %c0_53], %104 {strides = array<i32>} : memref<16x64xbf16, #tpu.memory_space<vmem>>, vector<16x64xbf16>,
      %cst_54 = arith.constant 0.000000e+00 : f32
      %106 = vector.broadcast %cst_54 : f32 to vector<16x64xf32>
      %c0_55 = arith.constant 0 : index
      %c0_56 = arith.constant 0 : index
      %107 = vector.load %arg18[%c0_55, %c0_56] : memref<16x64xf32, #tpu.memory_space<vmem>>, vector<16x64xf32>
      tpu.vector_store %arg18[%c0_55, %c0_56], %106 {strides = array<i32>} : memref<16x64xf32, #tpu.memory_space<vmem>>, vector<16x64xf32>,
    } else {
    }
    %c0 = arith.constant 0 : index
    %c0_1 = arith.constant 0 : index
    %4 = vector.load %arg17[%c0, %c0_1] : memref<16x64xbf16, #tpu.memory_space<vmem>>, vector<16x64xbf16>
    %c0_2 = arith.constant 0 : index
    %c0_3 = arith.constant 0 : index
    %5 = vector.load %arg11[%c0_2, %c0_3] : memref<64x128xbf16, #tpu.memory_space<vmem>>, vector<64x128xbf16>
    %cst = arith.constant dense<0.000000e+00> : vector<16x128xf32>
    %6 = tpu.matmul %4, %5, %cst {dimension_numbers = #tpu.dot_dimension_numbers<[1], [0], [0], [1], [0, 0, 1, 1], [], []>} : vector<16x64xbf16>, vector<64x128xbf16>, vector<16x128xf32> -> vector<16x128xf32>
    %c0_4 = arith.constant 0 : index
    %c0_5 = arith.constant 0 : index
    %7 = vector.load %arg12[%c0_4, %c0_5] : memref<1x128xf32, #tpu.memory_space<vmem>>, vector<1x128xf32>
    %8 = vector.broadcast %7 : vector<1x128xf32> to vector<16x128xf32>
    %9 = arith.addf %6, %8 : vector<16x128xf32>
    %cst_6 = arith.constant 5.000000e-01 : f32
    %10 = vector.broadcast %cst_6 : f32 to vector<16x128xf32>
    %11 = arith.mulf %10, %9 : vector<16x128xf32>
    %cst_7 = arith.constant 4.471500e-02 : f32
    %12 = vector.broadcast %cst_7 : f32 to vector<16x128xf32>
    %13 = arith.mulf %12, %9 : vector<16x128xf32>
    %14 = arith.mulf %13, %9 : vector<16x128xf32>
    %15 = arith.mulf %14, %9 : vector<16x128xf32>
    %16 = arith.addf %9, %15 : vector<16x128xf32>
    %cst_8 = arith.constant 0.797884583 : f32
    %17 = vector.broadcast %cst_8 : f32 to vector<16x128xf32>
    %18 = arith.mulf %17, %16 : vector<16x128xf32>
    %19 = math.tanh %18 : vector<16x128xf32>
    %cst_9 = arith.constant 1.000000e+00 : f32
    %20 = vector.broadcast %cst_9 : f32 to vector<16x128xf32>
    %21 = arith.addf %20, %19 : vector<16x128xf32>
    %22 = arith.mulf %11, %21 : vector<16x128xf32>
    %c0_10 = arith.constant 0 : index
    %c0_11 = arith.constant 0 : index
    %23 = vector.load %arg18[%c0_10, %c0_11] : memref<16x64xf32, #tpu.memory_space<vmem>>, vector<16x64xf32>
    %24 = arith.truncf %22 : vector<16x128xf32> to vector<16x128xbf16>
    %c0_12 = arith.constant 0 : index
    %c0_13 = arith.constant 0 : index
    %25 = vector.load %arg13[%c0_12, %c0_13] : memref<128x64xbf16, #tpu.memory_space<vmem>>, vector<128x64xbf16>
    %cst_14 = arith.constant dense<0.000000e+00> : vector<16x64xf32>
    %26 = tpu.matmul %24, %25, %cst_14 {dimension_numbers = #tpu.dot_dimension_numbers<[1], [0], [0], [1], [0, 0, 1, 1], [], []>} : vector<16x128xbf16>, vector<128x64xbf16>, vector<16x64xf32> -> vector<16x64xf32>
    %27 = arith.addf %23, %26 : vector<16x64xf32>
    %c0_15 = arith.constant 0 : index
    %c0_16 = arith.constant 0 : index
    %28 = vector.load %arg18[%c0_15, %c0_16] : memref<16x64xf32, #tpu.memory_space<vmem>>, vector<16x64xf32>
    tpu.vector_store %arg18[%c0_15, %c0_16], %27 {strides = array<i32>} : memref<16x64xf32, #tpu.memory_space<vmem>>, vector<16x64xf32>,
    %c1_i32 = arith.constant 1 : i32
    %29 = arith.cmpi eq, %arg2, %c1_i32 : i32
    %30 = arith.extui %29 : i1 to i32
    %c0_i32_17 = arith.constant 0 : i32
    %31 = arith.cmpi ne, %30, %c0_i32_17 : i32
    scf.if %31 {
      %c0_18 = arith.constant 0 : index
      %c0_19 = arith.constant 0 : index
      %32 = vector.load %arg16[%c0_18, %c0_19] : memref<16x64xf32, #tpu.memory_space<vmem>>, vector<16x64xf32>
      %c0_20 = arith.constant 0 : index
      %c0_21 = arith.constant 0 : index
      %33 = vector.load %arg18[%c0_20, %c0_21] : memref<16x64xf32, #tpu.memory_space<vmem>>, vector<16x64xf32>
      %34 = arith.addf %32, %33 : vector<16x64xf32>
      %c0_22 = arith.constant 0 : index
      %c0_23 = arith.constant 0 : index
      %35 = vector.load %arg14[%c0_22, %c0_23] : memref<1x64xf32, #tpu.memory_space<vmem>>, vector<1x64xf32>
      %36 = vector.broadcast %35 : vector<1x64xf32> to vector<16x64xf32>
      %37 = arith.addf %34, %36 : vector<16x64xf32>
      %38 = vector.shape_cast %37 : vector<16x64xf32> to vector<1x16x64xf32>
      %c0_24 = arith.constant 0 : index
      %c0_25 = arith.constant 0 : index
      %c0_26 = arith.constant 0 : index
      %39 = vector.load %arg15[%c0_24, %c0_25, %c0_26] : memref<1x16x64xf32, #tpu.memory_space<vmem>>, vector<1x16x64xf32>
      tpu.vector_store %arg15[%c0_24, %c0_25, %c0_26], %38 {strides = array<i32>} : memref<1x16x64xf32, #tpu.memory_space<vmem>>, vector<1x16x64xf32>,
    } else {
    }
    return
  }
  func.func @transform_0(%arg0: i32, %arg1: i32, %arg2: i32) -> (i32, i32, i32) {
    %c0_i32 = arith.constant 0 : i32
    %c0_i32_0 = arith.constant 0 : i32
    return %arg0, %arg1, %c0_i32 : i32, i32, i32
  }
  func.func @transform_1(%arg0: i32, %arg1: i32, %arg2: i32) -> (i32, i32, i32) {
    %c0_i32 = arith.constant 0 : i32
    %c0_i32_0 = arith.constant 0 : i32
    return %arg0, %arg1, %c0_i32 : i32, i32, i32
  }
  func.func @transform_2(%arg0: i32, %arg1: i32, %arg2: i32) -> (i32, i32, i32) {
    %c0_i32 = arith.constant 0 : i32
    %c0_i32_0 = arith.constant 0 : i32
    %c0_i32_1 = arith.constant 0 : i32
    return %arg0, %c0_i32, %c0_i32_0 : i32, i32, i32
  }
  func.func @transform_3(%arg0: i32, %arg1: i32, %arg2: i32) -> (i32, i32, i32) {
    %c0_i32 = arith.constant 0 : i32
    %c0_i32_0 = arith.constant 0 : i32
    %c0_i32_1 = arith.constant 0 : i32
    return %arg0, %c0_i32, %c0_i32_0 : i32, i32, i32
  }
  func.func @transform_4(%arg0: i32, %arg1: i32, %arg2: i32) -> (i32, i32) {
    %c0_i32 = arith.constant 0 : i32
    %c0_i32_0 = arith.constant 0 : i32
    %c0_i32_1 = arith.constant 0 : i32
    return %c0_i32, %c0_i32_0 : i32, i32
  }
  func.func @transform_5(%arg0: i32, %arg1: i32, %arg2: i32) -> (i32, i32) {
    %c0_i32 = arith.constant 0 : i32
    %c0_i32_0 = arith.constant 0 : i32
    %c0_i32_1 = arith.constant 0 : i32
    return %c0_i32, %c0_i32_0 : i32, i32
  }
  func.func @transform_6(%arg0: i32, %arg1: i32, %arg2: i32) -> (i32, i32) {
    %c0_i32 = arith.constant 0 : i32
    %c0_i32_0 = arith.constant 0 : i32
    %c0_i32_1 = arith.constant 0 : i32
    return %c0_i32, %c0_i32_0 : i32, i32
  }
  func.func @transform_7(%arg0: i32, %arg1: i32, %arg2: i32) -> (i32, i32) {
    %c0_i32 = arith.constant 0 : i32
    %c0_i32_0 = arith.constant 0 : i32
    %c0_i32_1 = arith.constant 0 : i32
    return %c0_i32, %c0_i32_0 : i32, i32
  }
  func.func @transform_8(%arg0: i32, %arg1: i32, %arg2: i32) -> (i32, i32) {
    %c0_i32 = arith.constant 0 : i32
    %c0_i32_0 = arith.constant 0 : i32
    return %c0_i32, %arg2 : i32, i32
  }
  func.func @transform_9(%arg0: i32, %arg1: i32, %arg2: i32) -> (i32, i32) {
    %c0_i32 = arith.constant 0 : i32
    %c0_i32_0 = arith.constant 0 : i32
    return %c0_i32, %arg2 : i32, i32
  }
  func.func @transform_10(%arg0: i32, %arg1: i32, %arg2: i32) -> (i32, i32) {
    %c0_i32 = arith.constant 0 : i32
    %c0_i32_0 = arith.constant 0 : i32
    return %arg2, %c0_i32 : i32, i32
  }
  func.func @transform_11(%arg0: i32, %arg1: i32, %arg2: i32) -> (i32, i32) {
    %c0_i32 = arith.constant 0 : i32
    %c0_i32_0 = arith.constant 0 : i32
    %c0_i32_1 = arith.constant 0 : i32
    return %c0_i32, %c0_i32_0 : i32, i32
  }
  func.func @transform_12(%arg0: i32, %arg1: i32, %arg2: i32) -> (i32, i32, i32) {
    %c0_i32 = arith.constant 0 : i32
    %c0_i32_0 = arith.constant 0 : i32
    return %arg0, %arg1, %c0_i32 : i32, i32, i32
  }
}

</mosaic_0001>

<llo_original>
// kernel: block_forward.2
$region0: #{block_forward.2}
  #allocation0 [shape = 'u32[]', space=smem, size = 0x4, offset = 0x4, fixed_abs, tag = 'smem constant byte address 0x4 - core index']
  #allocation1 [shape = 'u32[144,128]{1,0:T(1,128)}', space=vmem, size = 0x12000, scoped, tag = 'internal scratch']
  %s0 = inlined_call_operand.vmem [shape: f32[2,64,64], index: 0, kind: input, shape index: {}]
  %s1 = inlined_call_operand.vmem [shape: f32[1,64], index: 1, kind: input, shape index: {}]
  %s2 = inlined_call_operand.vmem [shape: f32[1,64], index: 2, kind: input, shape index: {}]
  %s3 = inlined_call_operand.vmem [shape: bf16[64,64], index: 3, kind: input, shape index: {}]
  %s4 = inlined_call_operand.vmem [shape: f32[1,64], index: 4, kind: input, shape index: {}]
  %s5 = inlined_call_operand.vmem [shape: bf16[64,64], index: 5, kind: input, shape index: {}]
  %s6 = inlined_call_operand.vmem [shape: f32[1,64], index: 6, kind: input, shape index: {}]
  %s7 = inlined_call_operand.hbm [shape: bf16[64,64], index: 7, kind: input, shape index: {}]
  %s8 = inlined_call_operand.vmem [shape: f32[1,64], index: 8, kind: input, shape index: {}]
  %s9 = inlined_call_operand.vmem [shape: bf16[2,64,64], index: 9, kind: output, shape index: {0}]
  %s10 = inlined_call_operand.vmem [shape: bf16[2,64,64], index: 10, kind: output, shape index: {1}]
  %s11 = inlined_call_operand.vmem [shape: bf16[2,64,64], index: 11, kind: output, shape index: {2}]
  %12 = xla_tuple %s9, %s10, %s11
  %s13 = sld [smem:[#allocation0]]
  $region89: #{block_forward.2} parent=0
    _
  %s15 = ssub.s32 1, %s13
  %s16 = scalar_select 0, %s15, %s13
  $region1: #{block_forward.2} parent=0
    #allocation2 [shape = 'u8[16384]{0}', space=vmem, size = 0x4000, scoped, tag = 'input window, operand 7, single buffered']
    #allocation3 [shape = 's32[2]{0}', space=sflag, size = 0x8, scoped, tag = 'scoped memory for block_forward.2']
    %17 = vsyncpa [#allocation3], 0
    loop: start=0, step=1, limit=10
    $region2: #{block_forward.2} parent=1 // loop_pre_header
      _
    $region3: #{block_forward.2} parent=1 // loop_header
      %s19 = sphi 0, %s23
      %p20 = scmp.ge.s32.totalorder %s19, 10
      %s26 = sphi 0, %s38
      %s27 = sphi 0, %s34
      %s28 = sphi 0, %s26
      %s29 = sphi 0, %s27
      %s30 = sphi 0, %s28
      %s31 = sphi 0, %s29
      %s43 = sphi 0, %s45
      %s46 = sphi 0, %s43
      %s47 = sphi 0, %s46
      %s63 = sphi 0, %s47
      %s67 = sphi 0, %s67
      %s69 = sphi 0, %s67
      %s70 = sphi 0, %s69
      %s84 = sphi 0, %s70
      %s88 = sphi 0, %s88
      %s90 = sphi 0, %s88
      %s91 = sphi 0, %s90
      %s105 = sphi 0, %s91
      %s109 = sphi 0, %s109
      %s111 = sphi 0, %s109
      %s112 = sphi 0, %s111
      %s126 = sphi 0, %s112
      %s130 = sphi 0, %s130
      %s132 = sphi 0, %s130
      %s133 = sphi 0, %s132
      %s147 = sphi 0, %s133
      %s151 = sphi 0, %s151
      %s153 = sphi 0, %s151
      %s154 = sphi 0, %s153
      %s168 = sphi 0, %s154
      %s172 = sphi 0, %s172
      %s174 = sphi 0, %s172
      %s175 = sphi 0, %s174
      %s189 = sphi 0, %s175
      %s193 = sphi 0, %s193
      %s195 = sphi 0, %s193
      %s196 = sphi 0, %s195
      %s210 = sphi 0, %s196
      %s214 = sphi 0, %s214
      %s216 = sphi 0, %s214
      %s217 = sphi 0, %s216
      %s231 = sphi 0, %s217
      %s239 = sphi 0, %s241
      %s242 = sphi 0, %s239
      %s243 = sphi 0, %s242
      %s259 = sphi 0, %s243
      %s267 = sphi 0, %s269
      %s270 = sphi 0, %s267
      %s271 = sphi 0, %s270
      %s287 = sphi 0, %s271
      %s295 = sphi 0, %s297
      %s298 = sphi 0, %s295
      %s299 = sphi 0, %s298
      %s315 = sphi 0, %s299
    $region4: #{block_forward.2} parent=1 // loop_header_branch
      %22 = sbr.rel (%p20) target = $region8
    $region5: #{block_forward.2} parent=1 // loop_body
      %s24 = ssub.s32 %s19, 1
      %s25 = ssub.s32 %s19, 2
      %s32 = sadd.s32 1, %s27
      %p33 = scmp.ge.s32.totalorder %s32, 4
      %s34 = scalar_select %p33, 0, %s32
      %s35 = sadd.s32 1, %s26
      %s36 = scalar_select %p33, %s35, %s26
      %p37 = scmp.ge.s32.totalorder %s36, 2
      %s38 = scalar_select %p37, 0, %s36
      %s39 = ssub.s32 %s26, %s38
      %s40 = ssub.s32 %s27, %s34
      %s41 = sor.u32 %s39, %s40
      %p42 = scmp.eq.s32.totalorder %s41, 0
      %s44 = sadd.s32 %s43, 1
      %s45 = scalar_select %p42, %s43, %s44
      %p48 = pneg %p42
      %p49 = scmp.eq.s32.totalorder %s19, 7
      %p50 = por %p48, %p49
      %p51 = scmp.ne.s32.totalorder %s43, %s46
      %p52 = scmp.eq.s32.totalorder %s19, 0
      %p53 = por %p51, %p52
      %p54 = scmp.ne.s32.totalorder %s43, %s46
      %p55 = scmp.eq.s32.totalorder %s24, 7
      %p56 = por %p54, %p55
      %p57 = scmp.ne.s32.totalorder %s46, %s47
      %p58 = scmp.eq.s32.totalorder %s24, 0
      %p59 = por %p57, %p58
      %p60 = scmp.ne.s32.totalorder %s46, %s47
      %p61 = scmp.eq.s32.totalorder %s25, 7
      %p62 = por %p60, %p61
      %p64 = scmp.ne.s32.totalorder %s47, %s63
      %p65 = scmp.eq.s32.totalorder %s25, 0
      %p66 = por %p64, %p65
      %s68 = sadd.s32 %s67, 1
      %p71 = scmp.eq.s32.totalorder %s19, 7
      %p72 = scmp.ne.s32.totalorder %s67, %s69
      %p73 = scmp.eq.s32.totalorder %s19, 0
      %p74 = por %p72, %p73
      %p75 = scmp.ne.s32.totalorder %s67, %s69
      %p76 = scmp.eq.s32.totalorder %s24, 7
      %p77 = por %p75, %p76
      %p78 = scmp.ne.s32.totalorder %s69, %s70
      %p79 = scmp.eq.s32.totalorder %s24, 0
      %p80 = por %p78, %p79
      %p81 = scmp.ne.s32.totalorder %s69, %s70
      %p82 = scmp.eq.s32.totalorder %s25, 7
      %p83 = por %p81, %p82
      %p85 = scmp.ne.s32.totalorder %s70, %s84
      %p86 = scmp.eq.s32.totalorder %s25, 0
      %p87 = por %p85, %p86
      %s89 = sadd.s32 %s88, 1
      %p92 = scmp.eq.s32.totalorder %s19, 7
      %p93 = scmp.ne.s32.totalorder %s88, %s90
      %p94 = scmp.eq.s32.totalorder %s19, 0
      %p95 = por %p93, %p94
      %p96 = scmp.ne.s32.totalorder %s88, %s90
      %p97 = scmp.eq.s32.totalorder %s24, 7
      %p98 = por %p96, %p97
      %p99 = scmp.ne.s32.totalorder %s90, %s91
      %p100 = scmp.eq.s32.totalorder %s24, 0
      %p101 = por %p99, %p100
      %p102 = scmp.ne.s32.totalorder %s90, %s91
      %p103 = scmp.eq.s32.totalorder %s25, 7
      %p104 = por %p102, %p103
      %p106 = scmp.ne.s32.totalorder %s91, %s105
      %p107 = scmp.eq.s32.totalorder %s25, 0
      %p108 = por %p106, %p107
      %s110 = sadd.s32 %s109, 1
      %p113 = scmp.eq.s32.totalorder %s19, 7
      %p114 = scmp.ne.s32.totalorder %s109, %s111
      %p115 = scmp.eq.s32.totalorder %s19, 0
      %p116 = por %p114, %p115
      %p117 = scmp.ne.s32.totalorder %s109, %s111
      %p118 = scmp.eq.s32.totalorder %s24, 7
      %p119 = por %p117, %p118
      %p120 = scmp.ne.s32.totalorder %s111, %s112
      %p121 = scmp.eq.s32.totalorder %s24, 0
      %p122 = por %p120, %p121
      %p123 = scmp.ne.s32.totalorder %s111, %s112
      %p124 = scmp.eq.s32.totalorder %s25, 7
      %p125 = por %p123, %p124
      %p127 = scmp.ne.s32.totalorder %s112, %s126
      %p128 = scmp.eq.s32.totalorder %s25, 0
      %p129 = por %p127, %p128
      %s131 = sadd.s32 %s130, 1
      %p134 = scmp.eq.s32.totalorder %s19, 7
      %p135 = scmp.ne.s32.totalorder %s130, %s132
      %p136 = scmp.eq.s32.totalorder %s19, 0
      %p137 = por %p135, %p136
      %p138 = scmp.ne.s32.totalorder %s130, %s132
      %p139 = scmp.eq.s32.totalorder %s24, 7
      %p140 = por %p138, %p139
      %p141 = scmp.ne.s32.totalorder %s132, %s133
      %p142 = scmp.eq.s32.totalorder %s24, 0
      %p143 = por %p141, %p142
      %p144 = scmp.ne.s32.totalorder %s132, %s133
      %p145 = scmp.eq.s32.totalorder %s25, 7
      %p146 = por %p144, %p145
      %p148 = scmp.ne.s32.totalorder %s133, %s147
      %p149 = scmp.eq.s32.totalorder %s25, 0
      %p150 = por %p148, %p149
      %s152 = sadd.s32 %s151, 1
      %p155 = scmp.eq.s32.totalorder %s19, 7
      %p156 = scmp.ne.s32.totalorder %s151, %s153
      %p157 = scmp.eq.s32.totalorder %s19, 0
      %p158 = por %p156, %p157
      %p159 = scmp.ne.s32.totalorder %s151, %s153
      %p160 = scmp.eq.s32.totalorder %s24, 7
      %p161 = por %p159, %p160
      %p162 = scmp.ne.s32.totalorder %s153, %s154
      %p163 = scmp.eq.s32.totalorder %s24, 0
      %p164 = por %p162, %p163
      %p165 = scmp.ne.s32.totalorder %s153, %s154
      %p166 = scmp.eq.s32.totalorder %s25, 7
      %p167 = por %p165, %p166
      %p169 = scmp.ne.s32.totalorder %s154, %s168
      %p170 = scmp.eq.s32.totalorder %s25, 0
      %p171 = por %p169, %p170
      %s173 = sadd.s32 %s172, 1
      %p176 = scmp.eq.s32.totalorder %s19, 7
      %p177 = scmp.ne.s32.totalorder %s172, %s174
      %p178 = scmp.eq.s32.totalorder %s19, 0
      %p179 = por %p177, %p178
      %p180 = scmp.ne.s32.totalorder %s172, %s174
      %p181 = scmp.eq.s32.totalorder %s24, 7
      %p182 = por %p180, %p181
      %p183 = scmp.ne.s32.totalorder %s174, %s175
      %p184 = scmp.eq.s32.totalorder %s24, 0
      %p185 = por %p183, %p184
      %p186 = scmp.ne.s32.totalorder %s174, %s175
      %p187 = scmp.eq.s32.totalorder %s25, 7
      %p188 = por %p186, %p187
      %p190 = scmp.ne.s32.totalorder %s175, %s189
      %p191 = scmp.eq.s32.totalorder %s25, 0
      %p192 = por %p190, %p191
      %s194 = sadd.s32 %s193, 1
      %p197 = scmp.eq.s32.totalorder %s19, 7
      %p198 = scmp.ne.s32.totalorder %s193, %s195
      %p199 = scmp.eq.s32.totalorder %s19, 0
      %p200 = por %p198, %p199
      %p201 = scmp.ne.s32.totalorder %s193, %s195
      %p202 = scmp.eq.s32.totalorder %s24, 7
      %p203 = por %p201, %p202
      %p204 = scmp.ne.s32.totalorder %s195, %s196
      %p205 = scmp.eq.s32.totalorder %s24, 0
      %p206 = por %p204, %p205
      %p207 = scmp.ne.s32.totalorder %s195, %s196
      %p208 = scmp.eq.s32.totalorder %s25, 7
      %p209 = por %p207, %p208
      %p211 = scmp.ne.s32.totalorder %s196, %s210
      %p212 = scmp.eq.s32.totalorder %s25, 0
      %p213 = por %p211, %p212
      %s215 = sadd.s32 %s214, 1
      %p218 = scmp.eq.s32.totalorder %s19, 7
      %p219 = scmp.ne.s32.totalorder %s214, %s216
      %p220 = scmp.eq.s32.totalorder %s19, 0
      %p221 = por %p219, %p220
      %p222 = scmp.ne.s32.totalorder %s214, %s216
      %p223 = scmp.eq.s32.totalorder %s24, 7
      %p224 = por %p222, %p223
      %p225 = scmp.ne.s32.totalorder %s216, %s217
      %p226 = scmp.eq.s32.totalorder %s24, 0
      %p227 = por %p225, %p226
      %p228 = scmp.ne.s32.totalorder %s216, %s217
      %p229 = scmp.eq.s32.totalorder %s25, 7
      %p230 = por %p228, %p229
      %p232 = scmp.ne.s32.totalorder %s217, %s231
      %p233 = scmp.eq.s32.totalorder %s25, 0
      %p234 = por %p232, %p233
      %s235 = ssub.s32 %s26, %s38
      %s236 = ssub.s32 %s27, %s34
      %s237 = sor.u32 %s235, %s236
      %p238 = scmp.eq.s32.totalorder %s237, 0
      %s240 = sadd.s32 %s239, 1
      %s241 = scalar_select %p238, %s239, %s240
      %p244 = pneg %p238
      %p245 = scmp.eq.s32.totalorder %s19, 7
      %p246 = por %p244, %p245
      %p247 = scmp.ne.s32.totalorder %s239, %s242
      %p248 = scmp.eq.s32.totalorder %s19, 0
      %p249 = por %p247, %p248
      %p250 = scmp.ne.s32.totalorder %s239, %s242
      %p251 = scmp.eq.s32.totalorder %s24, 7
      %p252 = por %p250, %p251
      %p253 = scmp.ne.s32.totalorder %s242, %s243
      %p254 = scmp.eq.s32.totalorder %s24, 0
      %p255 = por %p253, %p254
      %p256 = scmp.ne.s32.totalorder %s242, %s243
      %p257 = scmp.eq.s32.totalorder %s25, 7
      %p258 = por %p256, %p257
      %p260 = scmp.ne.s32.totalorder %s243, %s259
      %p261 = scmp.eq.s32.totalorder %s25, 0
      %p262 = por %p260, %p261
      %s263 = ssub.s32 %s26, %s38
      %s264 = ssub.s32 %s27, %s34
      %s265 = sor.u32 %s263, %s264
      %p266 = scmp.eq.s32.totalorder %s265, 0
      %s268 = sadd.s32 %s267, 1
      %s269 = scalar_select %p266, %s267, %s268
      %p272 = pneg %p266
      %p273 = scmp.eq.s32.totalorder %s19, 7
      %p274 = por %p272, %p273
      %p275 = scmp.ne.s32.totalorder %s267, %s270
      %p276 = scmp.eq.s32.totalorder %s19, 0
      %p277 = por %p275, %p276
      %p278 = scmp.ne.s32.totalorder %s267, %s270
      %p279 = scmp.eq.s32.totalorder %s24, 7
      %p280 = por %p278, %p279
      %p281 = scmp.ne.s32.totalorder %s270, %s271
      %p282 = scmp.eq.s32.totalorder %s24, 0
      %p283 = por %p281, %p282
      %p284 = scmp.ne.s32.totalorder %s270, %s271
      %p285 = scmp.eq.s32.totalorder %s25, 7
      %p286 = por %p284, %p285
      %p288 = scmp.ne.s32.totalorder %s271, %s287
      %p289 = scmp.eq.s32.totalorder %s25, 0
      %p290 = por %p288, %p289
      %s291 = ssub.s32 %s26, %s38
      %s292 = ssub.s32 %s27, %s34
      %s293 = sor.u32 %s291, %s292
      %p294 = scmp.eq.s32.totalorder %s293, 0
      %s296 = sadd.s32 %s295, 1
      %s297 = scalar_select %p294, %s295, %s296
      %p300 = pneg %p294
      %p301 = scmp.eq.s32.totalorder %s19, 7
      %p302 = por %p300, %p301
      %p303 = scmp.ne.s32.totalorder %s295, %s298
      %p304 = scmp.eq.s32.totalorder %s19, 0
      %p305 = por %p303, %p304
      %p306 = scmp.ne.s32.totalorder %s295, %s298
      %p307 = scmp.eq.s32.totalorder %s24, 7
      %p308 = por %p306, %p307
      %p309 = scmp.ne.s32.totalorder %s298, %s299
      %p310 = scmp.eq.s32.totalorder %s24, 0
      %p311 = por %p309, %p310
      %p312 = scmp.ne.s32.totalorder %s298, %s299
      %p313 = scmp.eq.s32.totalorder %s25, 7
      %p314 = por %p312, %p313
      %p316 = scmp.ne.s32.totalorder %s299, %s315
      %p317 = scmp.eq.s32.totalorder %s25, 0
      %p318 = por %p316, %p317
      %p319 = scmp.le.s32.totalorder 1, %s19
      %p320 = scmp.lt.s32.totalorder %s19, 9
      %p321 = pnand %p319, %p320
      %p322 = pneg %p321
      // Predicated region
      $region9: #{block_forward.2} parent=5 // pred_check
        _
      $region10: #{block_forward.2} parent=5 // pred_check_branch
        %324 = sbr.rel (%p321) target = $region12
      $region11: #{block_forward.2} parent=5 // pred_region
        %s325 = ssub.s32 %s19, 1
        // Predicated region
        $region13: #{block_forward.2} parent=11 // pred_check
          %p326 = pneg %p80
        $region14: #{block_forward.2} parent=11 // pred_check_branch
          %328 = sbr.rel (%p326) target = $region16
        $region15: #{block_forward.2} parent=11 // pred_region
          _
        $region16: #{block_forward.2} parent=11 // pred_fallthru
          _
        // Predicated region
        $region17: #{block_forward.2} parent=11 // pred_check
          %p329 = pneg %p101
        $region18: #{block_forward.2} parent=11 // pred_check_branch
          %331 = sbr.rel (%p329) target = $region20
        $region19: #{block_forward.2} parent=11 // pred_region
          _
        $region20: #{block_forward.2} parent=11 // pred_fallthru
          _
        // Predicated region
        $region21: #{block_forward.2} parent=11 // pred_check
          %p332 = pneg %p122
        $region22: #{block_forward.2} parent=11 // pred_check_branch
          %334 = sbr.rel (%p332) target = $region24
        $region23: #{block_forward.2} parent=11 // pred_region
          _
        $region24: #{block_forward.2} parent=11 // pred_fallthru
          _
        // Predicated region
        $region25: #{block_forward.2} parent=11 // pred_check
          %p335 = pneg %p143
        $region26: #{block_forward.2} parent=11 // pred_check_branch
          %337 = sbr.rel (%p335) target = $region28
        $region27: #{block_forward.2} parent=11 // pred_region
          _
        $region28: #{block_forward.2} parent=11 // pred_fallthru
          _
        // Predicated region
        $region29: #{block_forward.2} parent=11 // pred_check
          %p338 = pneg %p164
        $region30: #{block_forward.2} parent=11 // pred_check_branch
          %340 = sbr.rel (%p338) target = $region32
        $region31: #{block_forward.2} parent=11 // pred_region
          _
        $region32: #{block_forward.2} parent=11 // pred_fallthru
          _
        // Predicated region
        $region33: #{block_forward.2} parent=11 // pred_check
          %p341 = pneg %p185
        $region34: #{block_forward.2} parent=11 // pred_check_branch
          %343 = sbr.rel (%p341) target = $region36
        $region35: #{block_forward.2} parent=11 // pred_region
          _
        $region36: #{block_forward.2} parent=11 // pred_fallthru
          _
        // Predicated region
        $region37: #{block_forward.2} parent=11 // pred_check
          %p344 = pneg %p206
        $region38: #{block_forward.2} parent=11 // pred_check_branch
          %346 = sbr.rel (%p344) target = $region40
        $region39: #{block_forward.2} parent=11 // pred_region
          %s348 = ssub.s32 512, 512
          %349 = vsyncadd [#allocation3], %s348
          %s350 = sshll.u32 [#allocation2], 4
          %s351 = int_to_ptr.vmem [resolvable:$true] %s350
          %356 = dma.hbm_to_vmem [thread:$0]  %s7, 512, %s351, [#allocation3], 64, 64, 4
        $region40: #{block_forward.2} parent=11 // pred_fallthru
          _
        // Predicated region
        $region41: #{block_forward.2} parent=11 // pred_check
          %p357 = pneg %p227
        $region42: #{block_forward.2} parent=11 // pred_check_branch
          %359 = sbr.rel (%p357) target = $region44
        $region43: #{block_forward.2} parent=11 // pred_region
          _
        $region44: #{block_forward.2} parent=11 // pred_fallthru
          _
      $region12: #{block_forward.2} parent=5 // pred_fallthru
        _
      %p360 = scmp.lt.s32.totalorder %s19, 8
      // Predicated region
      $region45: #{block_forward.2} parent=5 // pred_check
        %p361 = pneg %p360
      $region46: #{block_forward.2} parent=5 // pred_check_branch
        %363 = sbr.rel (%p361) target = $region48
      $region47: #{block_forward.2} parent=5 // pred_region
        // Predicated region
        $region49: #{block_forward.2} parent=47 // pred_check
          %p364 = pneg %p53
        $region50: #{block_forward.2} parent=47 // pred_check_branch
          %366 = sbr.rel (%p364) target = $region52
        $region51: #{block_forward.2} parent=47 // pred_region
          %s367 = smul.u32 2, %s27
          %p368 = scmp.lt.s32.totalorder %s26, 1
          %s369 = scalar_select %p368, %s26, 1
          %p370 = scmp.lt.s32.totalorder %s367, 7
          %s371 = scalar_select %p370, %s367, 7
          %s372 = smul.addr %s369, 8
          %s373 = sadd.s32 %s371, %s372
          %s374 = smul.addr %s373, 8
          %s375 = scalar_lea.vmem %s0, %s374
          %s376 = smul.u32 2, %s27
        $region52: #{block_forward.2} parent=47 // pred_fallthru
          _
      $region48: #{block_forward.2} parent=5 // pred_fallthru
        _
      %p377 = scmp.le.s32.totalorder 1, %s19
      %p378 = scmp.lt.s32.totalorder %s19, 9
      %p379 = pnand %p377, %p378
      %p380 = pneg %p379
      // Predicated region
      $region53: #{block_forward.2} parent=5 // pred_check
        _
      $region54: #{block_forward.2} parent=5 // pred_check_branch
        %382 = sbr.rel (%p379) target = $region56
      $region55: #{block_forward.2} parent=5 // pred_region
        %s383 = ssub.s32 %s19, 1
        // Predicated region
        $region57: #{block_forward.2} parent=55 // pred_check
          %p384 = pneg %p206
        $region58: #{block_forward.2} parent=55 // pred_check_branch
          %386 = sbr.rel (%p384) target = $region60
        $region59: #{block_forward.2} parent=55 // pred_region
          %387 = dma.done [#allocation3], 512
        $region60: #{block_forward.2} parent=55 // pred_fallthru
          _
        %s388 = smul.u32 2, %s29
        %p389 = scmp.lt.s32.totalorder %s28, 1
        %s390 = scalar_select %p389, %s28, 1
        %p391 = scmp.lt.s32.totalorder %s388, 7
        %s392 = scalar_select %p391, %s388, 7
        %s393 = smul.addr %s390, 8
        %s394 = sadd.s32 %s392, %s393
        %s395 = smul.addr %s394, 8
        %s396 = scalar_lea.vmem %s0, %s395
        %p397 = pneg %p59
        %p398 = pneg %p56
        %p399 = pneg %p80
        %p400 = pneg %p77
        %p401 = pneg %p101
        %p402 = pneg %p98
        %p403 = pneg %p122
        %p404 = pneg %p119
        %p405 = pneg %p143
        %p406 = pneg %p140
        %p407 = pneg %p164
        %p408 = pneg %p161
        %p409 = pneg %p185
        %p410 = pneg %p182
        %p411 = pneg %p206
        %p412 = pneg %p203
        %p413 = pneg %p227
        %p414 = pneg %p224
        %p415 = pneg %p255
        %p416 = pneg %p252
        %s417 = smul.u32 2, %s29
        %p418 = scmp.lt.s32.totalorder %s28, 1
        %s419 = scalar_select %p418, %s28, 1
        %p420 = scmp.lt.s32.totalorder %s417, 7
        %s421 = scalar_select %p420, %s417, 7
        %s422 = smul.addr %s419, 8
        %s423 = sadd.s32 %s421, %s422
        %s424 = smul.addr %s423, 4
        %s425 = scalar_lea.vmem %s9, %s424
        %p426 = pneg %p283
        %p427 = pneg %p280
        %s428 = smul.u32 2, %s29
        %p429 = scmp.lt.s32.totalorder %s28, 1
        %s430 = scalar_select %p429, %s28, 1
        %p431 = scmp.lt.s32.totalorder %s428, 7
        %s432 = scalar_select %p431, %s428, 7
        %s433 = smul.addr %s430, 8
        %s434 = sadd.s32 %s432, %s433
        %s435 = smul.addr %s434, 4
        %s436 = scalar_lea.vmem %s10, %s435
        %p437 = pneg %p311
        %p438 = pneg %p308
        %s439 = smul.u32 2, %s29
        %p440 = scmp.lt.s32.totalorder %s28, 1
        %s441 = scalar_select %p440, %s28, 1
        %p442 = scmp.lt.s32.totalorder %s439, 7
        %s443 = scalar_select %p442, %s439, 7
        %s444 = smul.addr %s441, 8
        %s445 = sadd.s32 %s443, %s444
        %s446 = smul.addr %s445, 4
        %s447 = scalar_lea.vmem %s11, %s446
        %s448 = smul.u32 2, %s29
        %p449 = scmp.lt.s32.totalorder %s28, 1
        %s450 = scalar_select %p449, %s28, 1
        %p451 = scmp.lt.s32.totalorder %s448, 7
        %s452 = scalar_select %p451, %s448, 7
        %s453 = smul.addr %s450, 8
        %s454 = sadd.s32 %s452, %s453
        %s455 = smul.addr %s454, 8
        %s456 = scalar_lea.vmem %s0, %s455
        %s457 = smul.u32 2, %s29
        %s458 = smul.u32 2, %s29
        %p459 = scmp.lt.s32.totalorder %s28, 1
        %s460 = scalar_select %p459, %s28, 1
        %p461 = scmp.lt.s32.totalorder %s458, 7
        %s462 = scalar_select %p461, %s458, 7
        %s463 = smul.addr %s460, 8
        %s464 = sadd.s32 %s462, %s463
        %s465 = smul.addr %s464, 4
        %s466 = scalar_lea.vmem %s9, %s465
        %s467 = smul.u32 2, %s29
        %s468 = smul.u32 2, %s29
        %p469 = scmp.lt.s32.totalorder %s28, 1
        %s470 = scalar_select %p469, %s28, 1
        %p471 = scmp.lt.s32.totalorder %s468, 7
        %s472 = scalar_select %p471, %s468, 7
        %s473 = smul.addr %s470, 8
        %s474 = sadd.s32 %s472, %s473
        %s475 = smul.addr %s474, 4
        %s476 = scalar_lea.vmem %s10, %s475
        %s477 = smul.u32 2, %s29
        %s478 = smul.u32 2, %s29
        %p479 = scmp.lt.s32.totalorder %s28, 1
        %s480 = scalar_select %p479, %s28, 1
        %p481 = scmp.lt.s32.totalorder %s478, 7
        %s482 = scalar_select %p481, %s478, 7
        %s483 = smul.addr %s480, 8
        %s484 = sadd.s32 %s482, %s483
        %s485 = smul.addr %s484, 4
        %s486 = scalar_lea.vmem %s11, %s485
        %s487 = smul.u32 2, %s29
        %v489 = vld [vmem:[%s456] sm:$0xff]
        %v490 = vld [vmem:[%s456 + $0x8] sm:$0xff]
        %v491 = vld [vmem:[%s1] sm:$0x1]
        %v492 = vld [vmem:[%s2] sm:$0x1]
        %vm493 = vcmask 523264
        %v494 = vsel %vm493, %v489, 0.0
        %495 = vadd.xlane.f32.xlu0 %v494
        %v496 = vpop.xlane.xlu0 %495
        %v497 = vsel %vm493, %v490, 0.0
        %498 = vadd.xlane.f32.xlu0 %v497
        %v499 = vpop.xlane.xlu0 %498
        %v500 = vrcp.pop 64.0
        %v501 = vmul.f32 %v496, %v500
        %v502 = vmul.f32 %v499, %v500
        %v503 = vsub.f32 %v489, %v501
        %v504 = vsub.f32 %v490, %v502
        %v505 = vmul.f32 %v503, %v503
        %v506 = vmul.f32 %v504, %v504
        %v507 = vsel %vm493, %v505, 0.0
        %508 = vadd.xlane.f32.xlu0 %v507
        %v509 = vpop.xlane.xlu0 %508
        %v510 = vsel %vm493, %v506, 0.0
        %511 = vadd.xlane.f32.xlu0 %v510
        %v512 = vpop.xlane.xlu0 %511
        %v513 = vmul.f32 %v509, %v500
        %v514 = vmul.f32 %v512, %v500
        %v515 = vadd.f32 %v513, 1e-05
        %v516 = vadd.f32 %v514, 1e-05
        %v517 = vrsqrt.pop %v515
        %v518 = vrsqrt.pop %v516
        %v519 = vmul.f32 %v503, %v517
        %v520 = vmul.f32 %v504, %v518
        %v522 = vlaneseq
        %v523 = vshrl.u32 %v522, 7
        %v524 = vsub.s32 0, %v523
        %v525 = vrot.slane %v491, %v524
        %v527 = vmul.f32 %v519, %v525
        %v528 = vmul.f32 %v520, %v525
        %v530 = vlaneseq
        %v531 = vshrl.u32 %v530, 7
        %v532 = vsub.s32 0, %v531
        %v533 = vrot.slane %v492, %v532
        %v535 = vadd.f32 %v527, %v533
        %v536 = vadd.f32 %v528, %v533
        %v537 = vpack.c.bf16 %v536, %v535
        %v538 = vld [vmem:[%s3] sm:$0xf]
        %v539 = vld [vmem:[%s3 + $0x4] sm:$0xf]
        %v540 = vld [vmem:[%s3 + $0x8] sm:$0xf]
        %v541 = vld [vmem:[%s3 + $0xc] sm:$0xf]
        %v542 = vld [vmem:[%s3 + $0x10] sm:$0xf]
        %v543 = vld [vmem:[%s3 + $0x14] sm:$0xf]
        %v544 = vld [vmem:[%s3 + $0x18] sm:$0xf]
        %v545 = vld [vmem:[%s3 + $0x1c] sm:$0xf]
        %v546 = vld [vmem:[%s4] sm:$0x1]
        %v548 = vlaneseq
        %v549 = vshrl.u32 %v548, 7
        %v550 = vsub.s32 0, %v549
        %v551 = vrot.slane %v546, %v550
        %v561 = vunpack.c.l.b16 %v538
        %v562 = vunpack.c.l.b16 %v539
        %v563 = vunpack.c.l.b16 %v540
        %v564 = vunpack.c.l.b16 %v541
        %v565 = vunpack.c.l.b16 %v542
        %v566 = vunpack.c.l.b16 %v543
        %v567 = vunpack.c.l.b16 %v544
        %v568 = vunpack.c.l.b16 %v545
        %v569 = vpack.c.b16 %v562, %v561
        %v570 = vpack.c.b16 %v564, %v563
        %v571 = vpack.c.b16 %v566, %v565
        %v572 = vpack.c.b16 %v568, %v567
        %v578 = vsel %vm493, %v537, 0
        %580 = vmatprep.subr.bf16.mxu0 0
        %581 = vmatpush1.bf16.msra.mxu0 %v569
        %582 = vmatprep.subr.bf16.mxu0 0
        %583 = vmatpush1.bf16.msra.mxu0 %v570
        %584 = vmatprep.subr.bf16.mxu0 0
        %585 = vmatpush1.bf16.msra.mxu0 %v571
        %586 = vmatprep.subr.bf16.mxu0 0
        %587 = vmatpush1.bf16.msra.mxu0 %v572
        %588 = vmatprep.subr.bf16.mxu0 0
        %589 = vmatpush1.bf16.msra.mxu0 0
        %590 = vmatprep.subr.bf16.mxu0 0
        %591 = vmatpush1.bf16.msra.mxu0 0
        %592 = vmatprep.subr.bf16.mxu0 0
        %593 = vmatpush1.bf16.msra.mxu0 0
        %594 = vmatprep.subr.bf16.mxu0 0
        %595 = vmatpush1.bf16.msra.mxu0 0
        %596 = vmatprep.subr.bf16.mxu0 0
        %597 = vmatpush1.bf16.msra.mxu0 0
        %598 = vmatprep.subr.bf16.mxu0 0
        %599 = vmatpush1.bf16.msra.mxu0 0
        %600 = vmatprep.subr.bf16.mxu0 0
        %601 = vmatpush1.bf16.msra.mxu0 0
        %602 = vmatprep.subr.bf16.mxu0 0
        %603 = vmatpush1.bf16.msra.mxu0 0
        %604 = vmatprep.subr.bf16.mxu0 0
        %605 = vmatpush1.bf16.msra.mxu0 0
        %606 = vmatprep.subr.bf16.mxu0 0
        %607 = vmatpush1.bf16.msra.mxu0 0
        %608 = vmatprep.subr.bf16.mxu0 0
        %609 = vmatpush1.bf16.msra.mxu0 0
        %610 = vmatprep.subr.bf16.mxu0 0
        %611 = vmatpush1.bf16.msra.mxu0 0
        %612 = vmatprep.mubr.bf16.mxu0 0
        %613 = vmatmul.mubr.bf16.gmra.mrb[0].mxu0 %v578
        %v614 = vpop.f32.mrb[0].mxu0
        %v615 = vadd.f32 %v551, %v614
        %v616 = vpop.f32.mrb[0].mxu0
        %v617 = vpop.f32.mrb[0].mxu0
        %v618 = vadd.f32 %v551, %v617
        %v619 = vpop.f32.mrb[0].mxu0
        %620 = vdwg.mxu0
        %v621 = vld [vmem:[%s5] sm:$0xf]
        %v622 = vld [vmem:[%s5 + $0x4] sm:$0xf]
        %v623 = vld [vmem:[%s5 + $0x8] sm:$0xf]
        %v624 = vld [vmem:[%s5 + $0xc] sm:$0xf]
        %v625 = vld [vmem:[%s5 + $0x10] sm:$0xf]
        %v626 = vld [vmem:[%s5 + $0x14] sm:$0xf]
        %v627 = vld [vmem:[%s5 + $0x18] sm:$0xf]
        %v628 = vld [vmem:[%s5 + $0x1c] sm:$0xf]
        %v629 = vld [vmem:[%s6] sm:$0x1]
        %v631 = vlaneseq
        %v632 = vshrl.u32 %v631, 7
        %v633 = vsub.s32 0, %v632
        %v634 = vrot.slane %v629, %v633
        %v644 = vunpack.c.l.b16 %v621
        %v645 = vunpack.c.l.b16 %v622
        %v646 = vunpack.c.l.b16 %v623
        %v647 = vunpack.c.l.b16 %v624
        %v648 = vunpack.c.l.b16 %v625
        %v649 = vunpack.c.l.b16 %v626
        %v650 = vunpack.c.l.b16 %v627
        %v651 = vunpack.c.l.b16 %v628
        %v652 = vpack.c.b16 %v645, %v644
        %v653 = vpack.c.b16 %v647, %v646
        %v654 = vpack.c.b16 %v649, %v648
        %v655 = vpack.c.b16 %v651, %v650
        %660 = vmatprep.subr.bf16.mxu0 0
        %661 = vmatpush1.bf16.msra.mxu0 %v652
        %662 = vmatprep.subr.bf16.mxu0 0
        %663 = vmatpush1.bf16.msra.mxu0 %v653
        %664 = vmatprep.subr.bf16.mxu0 0
        %665 = vmatpush1.bf16.msra.mxu0 %v654
        %666 = vmatprep.subr.bf16.mxu0 0
        %667 = vmatpush1.bf16.msra.mxu0 %v655
        %668 = vmatprep.subr.bf16.mxu0 0
        %669 = vmatpush1.bf16.msra.mxu0 0
        %670 = vmatprep.subr.bf16.mxu0 0
        %671 = vmatpush1.bf16.msra.mxu0 0
        %672 = vmatprep.subr.bf16.mxu0 0
        %673 = vmatpush1.bf16.msra.mxu0 0
        %674 = vmatprep.subr.bf16.mxu0 0
        %675 = vmatpush1.bf16.msra.mxu0 0
        %676 = vmatprep.subr.bf16.mxu0 0
        %677 = vmatpush1.bf16.msra.mxu0 0
        %678 = vmatprep.subr.bf16.mxu0 0
        %679 = vmatpush1.bf16.msra.mxu0 0
        %680 = vmatprep.subr.bf16.mxu0 0
        %681 = vmatpush1.bf16.msra.mxu0 0
        %682 = vmatprep.subr.bf16.mxu0 0
        %683 = vmatpush1.bf16.msra.mxu0 0
        %684 = vmatprep.subr.bf16.mxu0 0
        %685 = vmatpush1.bf16.msra.mxu0 0
        %686 = vmatprep.subr.bf16.mxu0 0
        %687 = vmatpush1.bf16.msra.mxu0 0
        %688 = vmatprep.subr.bf16.mxu0 0
        %689 = vmatpush1.bf16.msra.mxu0 0
        %690 = vmatprep.subr.bf16.mxu0 0
        %691 = vmatpush1.bf16.msra.mxu0 0
        %692 = vmatprep.mubr.bf16.mxu0 0
        %693 = vmatmul.mubr.bf16.gmra.mrb[0].mxu0 %v578
        %v694 = vpop.f32.mrb[0].mxu0
        %v695 = vadd.f32 %v634, %v694
        %v696 = vpop.f32.mrb[0].mxu0
        %v697 = vpop.f32.mrb[0].mxu0
        %v698 = vadd.f32 %v634, %v697
        %v699 = vpop.f32.mrb[0].mxu0
        %700 = vdwg.mxu0
        %v701 = vld [vmem:[#allocation2] sm:$0xf]
        %v702 = vld [vmem:[#allocation2 + $0x4] sm:$0xf]
        %v703 = vld [vmem:[#allocation2 + $0x8] sm:$0xf]
        %v704 = vld [vmem:[#allocation2 + $0xc] sm:$0xf]
        %v705 = vld [vmem:[#allocation2 + $0x10] sm:$0xf]
        %v706 = vld [vmem:[#allocation2 + $0x14] sm:$0xf]
        %v707 = vld [vmem:[#allocation2 + $0x18] sm:$0xf]
        %v708 = vld [vmem:[#allocation2 + $0x1c] sm:$0xf]
        %v709 = vld [vmem:[%s8] sm:$0x1]
        %v711 = vlaneseq
        %v712 = vshrl.u32 %v711, 7
        %v713 = vsub.s32 0, %v712
        %v714 = vrot.slane %v709, %v713
        %v724 = vunpack.c.l.b16 %v701
        %v725 = vunpack.c.l.b16 %v702
        %v726 = vunpack.c.l.b16 %v703
        %v727 = vunpack.c.l.b16 %v704
        %v728 = vunpack.c.l.b16 %v705
        %v729 = vunpack.c.l.b16 %v706
        %v730 = vunpack.c.l.b16 %v707
        %v731 = vunpack.c.l.b16 %v708
        %v732 = vpack.c.b16 %v725, %v724
        %v733 = vpack.c.b16 %v727, %v726
        %v734 = vpack.c.b16 %v729, %v728
        %v735 = vpack.c.b16 %v731, %v730
        %740 = vmatprep.subr.bf16.mxu0 0
        %741 = vmatpush1.bf16.msra.mxu0 %v732
        %742 = vmatprep.subr.bf16.mxu0 0
        %743 = vmatpush1.bf16.msra.mxu0 %v733
        %744 = vmatprep.subr.bf16.mxu0 0
        %745 = vmatpush1.bf16.msra.mxu0 %v734
        %746 = vmatprep.subr.bf16.mxu0 0
        %747 = vmatpush1.bf16.msra.mxu0 %v735
        %748 = vmatprep.subr.bf16.mxu0 0
        %749 = vmatpush1.bf16.msra.mxu0 0
        %750 = vmatprep.subr.bf16.mxu0 0
        %751 = vmatpush1.bf16.msra.mxu0 0
        %752 = vmatprep.subr.bf16.mxu0 0
        %753 = vmatpush1.bf16.msra.mxu0 0
        %754 = vmatprep.subr.bf16.mxu0 0
        %755 = vmatpush1.bf16.msra.mxu0 0
        %756 = vmatprep.subr.bf16.mxu0 0
        %757 = vmatpush1.bf16.msra.mxu0 0
        %758 = vmatprep.subr.bf16.mxu0 0
        %759 = vmatpush1.bf16.msra.mxu0 0
        %760 = vmatprep.subr.bf16.mxu0 0
        %761 = vmatpush1.bf16.msra.mxu0 0
        %762 = vmatprep.subr.bf16.mxu0 0
        %763 = vmatpush1.bf16.msra.mxu0 0
        %764 = vmatprep.subr.bf16.mxu0 0
        %765 = vmatpush1.bf16.msra.mxu0 0
        %766 = vmatprep.subr.bf16.mxu0 0
        %767 = vmatpush1.bf16.msra.mxu0 0
        %768 = vmatprep.subr.bf16.mxu0 0
        %769 = vmatpush1.bf16.msra.mxu0 0
        %770 = vmatprep.subr.bf16.mxu0 0
        %771 = vmatpush1.bf16.msra.mxu0 0
        %772 = vmatprep.mubr.bf16.mxu0 0
        %773 = vmatmul.mubr.bf16.gmra.mrb[0].mxu0 %v578
        %v774 = vpop.f32.mrb[0].mxu0
        %v775 = vadd.f32 %v714, %v774
        %v776 = vpop.f32.mrb[0].mxu0
        %v777 = vpop.f32.mrb[0].mxu0
        %v778 = vadd.f32 %v714, %v777
        %v779 = vpop.f32.mrb[0].mxu0
        %780 = vdwg.mxu0
        %v781 = vpack.c.bf16 %v618, %v615
        %v783 = vunpack.c.l.b16 %v781
        %v784 = vunpack.c.h.b16 %v781
        %v785 = vpack.c.b16 %v783, %v783
        %v786 = vpack.c.b16 %v784, %v784
        %vm789 = vcmask 519168
        %790 = vst.msk [vmem:[%s466] sm:$0xf] %vm789, %v785
        %791 = vst.msk [vmem:[%s466 + $0x4] sm:$0xf] %vm789, %v786
        %v792 = vpack.c.bf16 %v698, %v695
        %v794 = vunpack.c.l.b16 %v792
        %v795 = vunpack.c.h.b16 %v792
        %v796 = vpack.c.b16 %v794, %v794
        %v797 = vpack.c.b16 %v795, %v795
        %800 = vst.msk [vmem:[%s476] sm:$0xf] %vm789, %v796
        %801 = vst.msk [vmem:[%s476 + $0x4] sm:$0xf] %vm789, %v797
        %v802 = vpack.c.bf16 %v778, %v775
        %v804 = vunpack.c.l.b16 %v802
        %v805 = vunpack.c.h.b16 %v802
        %v806 = vpack.c.b16 %v804, %v804
        %v807 = vpack.c.b16 %v805, %v805
        %810 = vst.msk [vmem:[%s486] sm:$0xf] %vm789, %v806
        %811 = vst.msk [vmem:[%s486 + $0x4] sm:$0xf] %vm789, %v807
        %s812 = smul.u32 2, %s29
        %p813 = scmp.lt.s32.totalorder %s28, 1
        %s814 = scalar_select %p813, %s28, 1
        %p815 = scmp.lt.s32.totalorder %s812, 7
        %s816 = scalar_select %p815, %s812, 7
        %s817 = smul.addr %s814, 8
        %s818 = sadd.s32 %s816, %s817
        %s819 = smul.addr %s818, 4
        %s820 = scalar_lea.vmem %s9, %s819
        %s821 = smul.u32 2, %s29
        %p822 = scmp.lt.s32.totalorder %s28, 1
        %s823 = scalar_select %p822, %s28, 1
        %p824 = scmp.lt.s32.totalorder %s821, 7
        %s825 = scalar_select %p824, %s821, 7
        %s826 = smul.addr %s823, 8
        %s827 = sadd.s32 %s825, %s826
        %s828 = smul.addr %s827, 4
        %s829 = scalar_lea.vmem %s10, %s828
        %s830 = smul.u32 2, %s29
        %p831 = scmp.lt.s32.totalorder %s28, 1
        %s832 = scalar_select %p831, %s28, 1
        %p833 = scmp.lt.s32.totalorder %s830, 7
        %s834 = scalar_select %p833, %s830, 7
        %s835 = smul.addr %s832, 8
        %s836 = sadd.s32 %s834, %s835
        %s837 = smul.addr %s836, 4
        %s838 = scalar_lea.vmem %s11, %s837
        // Predicated region
        $region61: #{block_forward.2} parent=55 // pred_check
          %p839 = pneg %p252
        $region62: #{block_forward.2} parent=55 // pred_check_branch
          %841 = sbr.rel (%p839) target = $region64
        $region63: #{block_forward.2} parent=55 // pred_region
          %s842 = smul.u32 2, %s29
        $region64: #{block_forward.2} parent=55 // pred_fallthru
          _
        // Predicated region
        $region65: #{block_forward.2} parent=55 // pred_check
          %p843 = pneg %p280
        $region66: #{block_forward.2} parent=55 // pred_check_branch
          %845 = sbr.rel (%p843) target = $region68
        $region67: #{block_forward.2} parent=55 // pred_region
          %s846 = smul.u32 2, %s29
        $region68: #{block_forward.2} parent=55 // pred_fallthru
          _
        // Predicated region
        $region69: #{block_forward.2} parent=55 // pred_check
          %p847 = pneg %p308
        $region70: #{block_forward.2} parent=55 // pred_check_branch
          %849 = sbr.rel (%p847) target = $region72
        $region71: #{block_forward.2} parent=55 // pred_region
          %s850 = smul.u32 2, %s29
        $region72: #{block_forward.2} parent=55 // pred_fallthru
          _
      $region56: #{block_forward.2} parent=5 // pred_fallthru
        _
      %p851 = scmp.le.s32.totalorder 2, %s19
      // Predicated region
      $region73: #{block_forward.2} parent=5 // pred_check
        %p852 = pneg %p851
      $region74: #{block_forward.2} parent=5 // pred_check_branch
        %854 = sbr.rel (%p852) target = $region76
      $region75: #{block_forward.2} parent=5 // pred_region
        %s855 = ssub.s32 %s19, 2
        // Predicated region
        $region77: #{block_forward.2} parent=75 // pred_check
          %p856 = pneg %p258
        $region78: #{block_forward.2} parent=75 // pred_check_branch
          %858 = sbr.rel (%p856) target = $region80
        $region79: #{block_forward.2} parent=75 // pred_region
          %s859 = smul.u32 2, %s31
          %p860 = scmp.lt.s32.totalorder %s30, 1
          %s861 = scalar_select %p860, %s30, 1
          %p862 = scmp.lt.s32.totalorder %s859, 7
          %s863 = scalar_select %p862, %s859, 7
          %s864 = smul.addr %s861, 8
          %s865 = sadd.s32 %s863, %s864
          %s866 = smul.addr %s865, 4
          %s867 = scalar_lea.vmem %s9, %s866
        $region80: #{block_forward.2} parent=75 // pred_fallthru
          _
        // Predicated region
        $region81: #{block_forward.2} parent=75 // pred_check
          %p868 = pneg %p286
        $region82: #{block_forward.2} parent=75 // pred_check_branch
          %870 = sbr.rel (%p868) target = $region84
        $region83: #{block_forward.2} parent=75 // pred_region
          %s871 = smul.u32 2, %s31
          %p872 = scmp.lt.s32.totalorder %s30, 1
          %s873 = scalar_select %p872, %s30, 1
          %p874 = scmp.lt.s32.totalorder %s871, 7
          %s875 = scalar_select %p874, %s871, 7
          %s876 = smul.addr %s873, 8
          %s877 = sadd.s32 %s875, %s876
          %s878 = smul.addr %s877, 4
          %s879 = scalar_lea.vmem %s10, %s878
        $region84: #{block_forward.2} parent=75 // pred_fallthru
          _
        // Predicated region
        $region85: #{block_forward.2} parent=75 // pred_check
          %p880 = pneg %p314
        $region86: #{block_forward.2} parent=75 // pred_check_branch
          %882 = sbr.rel (%p880) target = $region88
        $region87: #{block_forward.2} parent=75 // pred_region
          %s883 = smul.u32 2, %s31
          %p884 = scmp.lt.s32.totalorder %s30, 1
          %s885 = scalar_select %p884, %s30, 1
          %p886 = scmp.lt.s32.totalorder %s883, 7
          %s887 = scalar_select %p886, %s883, 7
          %s888 = smul.addr %s885, 8
          %s889 = sadd.s32 %s887, %s888
          %s890 = smul.addr %s889, 4
          %s891 = scalar_lea.vmem %s11, %s890
        $region88: #{block_forward.2} parent=75 // pred_fallthru
          _
      $region76: #{block_forward.2} parent=5 // pred_fallthru
        _
    $region6: #{block_forward.2} parent=1 // loop_footer
      %s23 = sadd.s32 1, %s19
    $region7: #{block_forward.2} parent=1 // loop_footer_branch
      %18 = sbr.rel target = $region3
    $region8: #{block_forward.2} parent=1 // loop_exit
      _
    %892 = vsyncpa [#allocation3], 1
    %s893 = scalar_lea.sflag [#allocation3], 1
    %894 = vsyncpa %s893, 1

// kernel: block_forward.3
$region0: #{block_forward.3}
  #allocation0 [shape = 'u32[]', space=smem, size = 0x4, offset = 0x4, fixed_abs, tag = 'smem constant byte address 0x4 - core index']
  #allocation1 [shape = 'u32[144,128]{1,0:T(1,128)}', space=vmem, size = 0x12000, scoped, tag = 'internal scratch']
  #allocation2 [shape = 'f32[16,64]{1,0:T(8,128)}', space=vmem, size = 0x2000, scoped, tag = 'scratch operand']
  #allocation3 [shape = 'bf16[16,64]{1,0:T(16,128)(2,1)}', space=vmem, size = 0x1000, scoped, tag = 'scratch operand']
  #allocation4 [shape = 'f32[16,64]{1,0:T(8,128)}', space=vmem, size = 0x2000, scoped, tag = 'scratch operand']
  %s0 = inlined_call_operand.vmem [shape: f32[2,64,64], index: 0, kind: input, shape index: {}]
  %s1 = inlined_call_operand.vmem [shape: bf16[2,64,64], index: 1, kind: input, shape index: {}]
  %s2 = inlined_call_operand.vmem [shape: bf16[2,64,64], index: 2, kind: input, shape index: {}]
  %s3 = inlined_call_operand.vmem [shape: bf16[2,64,64], index: 3, kind: input, shape index: {}]
  %s4 = inlined_call_operand.vmem [shape: bf16[64,64], index: 4, kind: input, shape index: {}]
  %s5 = inlined_call_operand.vmem [shape: f32[1,64], index: 5, kind: input, shape index: {}]
  %s6 = inlined_call_operand.vmem [shape: f32[1,64], index: 6, kind: input, shape index: {}]
  %s7 = inlined_call_operand.vmem [shape: f32[1,64], index: 7, kind: input, shape index: {}]
  %s8 = inlined_call_operand.vmem [shape: bf16[64,256], index: 8, kind: input, shape index: {}]
  %s9 = inlined_call_operand.vmem [shape: f32[1,256], index: 9, kind: input, shape index: {}]
  %s10 = inlined_call_operand.vmem [shape: bf16[256,64], index: 10, kind: input, shape index: {}]
  %s11 = inlined_call_operand.vmem [shape: f32[1,64], index: 11, kind: input, shape index: {}]
  %s12 = inlined_call_operand.hbm [shape: f32[2,64,64], index: 12, kind: output, shape index: {}]
  %s13 = sld [smem:[#allocation0]]
  $region130: #{block_forward.3} parent=0
    _
  %s15 = ssub.s32 1, %s13
  %s16 = scalar_select 0, %s15, %s13
  $region1: #{block_forward.3} parent=0
    #allocation5 [shape = 'u8[32768]{0}', space=vmem, size = 0x8000, scoped, tag = 'input window, operand 8']
    #allocation6 [shape = 'u8[16384]{0}', space=vmem, size = 0x4000, scoped, tag = 'output window, operand 0']
    #allocation7 [shape = 's32[2]{0}', space=sflag, size = 0x8, scoped, tag = 'scoped memory for block_forward.3']
    %17 = vsyncpa [#allocation7], 0
    %s18 = scalar_lea.sflag [#allocation7], 1
    %19 = vsyncpa %s18, 0
    loop: start=0, step=1, limit=18
    $region2: #{block_forward.3} parent=1 // loop_pre_header
      _
    $region3: #{block_forward.3} parent=1 // loop_header
      %s21 = sphi 0, %s25
      %p22 = scmp.ge.s32.totalorder %s21, 18
      %s28 = sphi 0, %s47
      %s29 = sphi 0, %s43
      %s30 = sphi 0, %s39
      %s31 = sphi 0, %s28
      %s32 = sphi 0, %s29
      %s33 = sphi 0, %s30
      %s34 = sphi 0, %s31
      %s35 = sphi 0, %s32
      %s36 = sphi 0, %s33
      %s52 = sphi 0, %s54
      %s55 = sphi 0, %s52
      %s56 = sphi 0, %s55
      %s72 = sphi 0, %s56
      %s80 = sphi 0, %s82
      %s83 = sphi 0, %s80
      %s84 = sphi 0, %s83
      %s100 = sphi 0, %s84
      %s106 = sphi 0, %s108
      %s109 = sphi 0, %s106
      %s110 = sphi 0, %s109
      %s126 = sphi 0, %s110
      %s132 = sphi 0, %s134
      %s135 = sphi 0, %s132
      %s136 = sphi 0, %s135
      %s152 = sphi 0, %s136
      %s156 = sphi 0, %s156
      %s158 = sphi 0, %s156
      %s159 = sphi 0, %s158
      %s173 = sphi 0, %s159
      %s177 = sphi 0, %s177
      %s179 = sphi 0, %s177
      %s180 = sphi 0, %s179
      %s194 = sphi 0, %s180
      %s198 = sphi 0, %s198
      %s200 = sphi 0, %s198
      %s201 = sphi 0, %s200
      %s215 = sphi 0, %s201
      %s219 = sphi 0, %s219
      %s221 = sphi 0, %s219
      %s222 = sphi 0, %s221
      %s236 = sphi 0, %s222
      %s242 = sphi 0, %s244
      %s245 = sphi 0, %s242
      %s246 = sphi 0, %s245
      %s262 = sphi 0, %s246
      %s268 = sphi 0, %s270
      %s271 = sphi 0, %s268
      %s272 = sphi 0, %s271
      %s288 = sphi 0, %s272
      %s294 = sphi 0, %s296
      %s297 = sphi 0, %s294
      %s298 = sphi 0, %s297
      %s314 = sphi 0, %s298
      %s318 = sphi 0, %s318
      %s320 = sphi 0, %s318
      %s321 = sphi 0, %s320
      %s335 = sphi 0, %s321
      %s343 = sphi 0, %s345
      %s346 = sphi 0, %s343
      %s347 = sphi 0, %s346
      %s363 = sphi 0, %s347
    $region4: #{block_forward.3} parent=1 // loop_header_branch
      %24 = sbr.rel (%p22) target = $region8
    $region5: #{block_forward.3} parent=1 // loop_body
      %s26 = ssub.s32 %s21, 1
      %s27 = ssub.s32 %s21, 2
      %s37 = sadd.s32 1, %s30
      %p38 = scmp.ge.s32.totalorder %s37, 2
      %s39 = scalar_select %p38, 0, %s37
      %s40 = sadd.s32 1, %s29
      %s41 = scalar_select %p38, %s40, %s29
      %p42 = scmp.ge.s32.totalorder %s41, 4
      %s43 = scalar_select %p42, 0, %s41
      %s44 = sadd.s32 1, %s28
      %s45 = scalar_select %p42, %s44, %s28
      %p46 = scmp.ge.s32.totalorder %s45, 2
      %s47 = scalar_select %p46, 0, %s45
      %s48 = ssub.s32 %s28, %s47
      %s49 = ssub.s32 %s29, %s43
      %s50 = sor.u32 %s48, %s49
      %p51 = scmp.eq.s32.totalorder %s50, 0
      %s53 = sadd.s32 %s52, 1
      %s54 = scalar_select %p51, %s52, %s53
      %p57 = pneg %p51
      %p58 = scmp.eq.s32.totalorder %s21, 15
      %p59 = por %p57, %p58
      %p60 = scmp.ne.s32.totalorder %s52, %s55
      %p61 = scmp.eq.s32.totalorder %s21, 0
      %p62 = por %p60, %p61
      %p63 = scmp.ne.s32.totalorder %s52, %s55
      %p64 = scmp.eq.s32.totalorder %s26, 15
      %p65 = por %p63, %p64
      %p66 = scmp.ne.s32.totalorder %s55, %s56
      %p67 = scmp.eq.s32.totalorder %s26, 0
      %p68 = por %p66, %p67
      %p69 = scmp.ne.s32.totalorder %s55, %s56
      %p70 = scmp.eq.s32.totalorder %s27, 15
      %p71 = por %p69, %p70
      %p73 = scmp.ne.s32.totalorder %s56, %s72
      %p74 = scmp.eq.s32.totalorder %s27, 0
      %p75 = por %p73, %p74
      %s76 = ssub.s32 %s28, %s47
      %s77 = ssub.s32 %s29, %s43
      %s78 = sor.u32 %s76, %s77
      %p79 = scmp.eq.s32.totalorder %s78, 0
      %s81 = sadd.s32 %s80, 1
      %s82 = scalar_select %p79, %s80, %s81
      %p85 = pneg %p79
      %p86 = scmp.eq.s32.totalorder %s21, 15
      %p87 = por %p85, %p86
      %p88 = scmp.ne.s32.totalorder %s80, %s83
      %p89 = scmp.eq.s32.totalorder %s21, 0
      %p90 = por %p88, %p89
      %p91 = scmp.ne.s32.totalorder %s80, %s83
      %p92 = scmp.eq.s32.totalorder %s26, 15
      %p93 = por %p91, %p92
      %p94 = scmp.ne.s32.totalorder %s83, %s84
      %p95 = scmp.eq.s32.totalorder %s26, 0
      %p96 = por %p94, %p95
      %p97 = scmp.ne.s32.totalorder %s83, %s84
      %p98 = scmp.eq.s32.totalorder %s27, 15
      %p99 = por %p97, %p98
      %p101 = scmp.ne.s32.totalorder %s84, %s100
      %p102 = scmp.eq.s32.totalorder %s27, 0
      %p103 = por %p101, %p102
      %s104 = ssub.s32 %s28, %s47
      %p105 = scmp.eq.s32.totalorder %s104, 0
      %s107 = sadd.s32 %s106, 1
      %s108 = scalar_select %p105, %s106, %s107
      %p111 = pneg %p105
      %p112 = scmp.eq.s32.totalorder %s21, 15
      %p113 = por %p111, %p112
      %p114 = scmp.ne.s32.totalorder %s106, %s109
      %p115 = scmp.eq.s32.totalorder %s21, 0
      %p116 = por %p114, %p115
      %p117 = scmp.ne.s32.totalorder %s106, %s109
      %p118 = scmp.eq.s32.totalorder %s26, 15
      %p119 = por %p117, %p118
      %p120 = scmp.ne.s32.totalorder %s109, %s110
      %p121 = scmp.eq.s32.totalorder %s26, 0
      %p122 = por %p120, %p121
      %p123 = scmp.ne.s32.totalorder %s109, %s110
      %p124 = scmp.eq.s32.totalorder %s27, 15
      %p125 = por %p123, %p124
      %p127 = scmp.ne.s32.totalorder %s110, %s126
      %p128 = scmp.eq.s32.totalorder %s27, 0
      %p129 = por %p127, %p128
      %s130 = ssub.s32 %s28, %s47
      %p131 = scmp.eq.s32.totalorder %s130, 0
      %s133 = sadd.s32 %s132, 1
      %s134 = scalar_select %p131, %s132, %s133
      %p137 = pneg %p131
      %p138 = scmp.eq.s32.totalorder %s21, 15
      %p139 = por %p137, %p138
      %p140 = scmp.ne.s32.totalorder %s132, %s135
      %p141 = scmp.eq.s32.totalorder %s21, 0
      %p142 = por %p140, %p141
      %p143 = scmp.ne.s32.totalorder %s132, %s135
      %p144 = scmp.eq.s32.totalorder %s26, 15
      %p145 = por %p143, %p144
      %p146 = scmp.ne.s32.totalorder %s135, %s136
      %p147 = scmp.eq.s32.totalorder %s26, 0
      %p148 = por %p146, %p147
      %p149 = scmp.ne.s32.totalorder %s135, %s136
      %p150 = scmp.eq.s32.totalorder %s27, 15
      %p151 = por %p149, %p150
      %p153 = scmp.ne.s32.totalorder %s136, %s152
      %p154 = scmp.eq.s32.totalorder %s27, 0
      %p155 = por %p153, %p154
      %s157 = sadd.s32 %s156, 1
      %p160 = scmp.eq.s32.totalorder %s21, 15
      %p161 = scmp.ne.s32.totalorder %s156, %s158
      %p162 = scmp.eq.s32.totalorder %s21, 0
      %p163 = por %p161, %p162
      %p164 = scmp.ne.s32.totalorder %s156, %s158
      %p165 = scmp.eq.s32.totalorder %s26, 15
      %p166 = por %p164, %p165
      %p167 = scmp.ne.s32.totalorder %s158, %s159
      %p168 = scmp.eq.s32.totalorder %s26, 0
      %p169 = por %p167, %p168
      %p170 = scmp.ne.s32.totalorder %s158, %s159
      %p171 = scmp.eq.s32.totalorder %s27, 15
      %p172 = por %p170, %p171
      %p174 = scmp.ne.s32.totalorder %s159, %s173
      %p175 = scmp.eq.s32.totalorder %s27, 0
      %p176 = por %p174, %p175
      %s178 = sadd.s32 %s177, 1
      %p181 = scmp.eq.s32.totalorder %s21, 15
      %p182 = scmp.ne.s32.totalorder %s177, %s179
      %p183 = scmp.eq.s32.totalorder %s21, 0
      %p184 = por %p182, %p183
      %p185 = scmp.ne.s32.totalorder %s177, %s179
      %p186 = scmp.eq.s32.totalorder %s26, 15
      %p187 = por %p185, %p186
      %p188 = scmp.ne.s32.totalorder %s179, %s180
      %p189 = scmp.eq.s32.totalorder %s26, 0
      %p190 = por %p188, %p189
      %p191 = scmp.ne.s32.totalorder %s179, %s180
      %p192 = scmp.eq.s32.totalorder %s27, 15
      %p193 = por %p191, %p192
      %p195 = scmp.ne.s32.totalorder %s180, %s194
      %p196 = scmp.eq.s32.totalorder %s27, 0
      %p197 = por %p195, %p196
      %s199 = sadd.s32 %s198, 1
      %p202 = scmp.eq.s32.totalorder %s21, 15
      %p203 = scmp.ne.s32.totalorder %s198, %s200
      %p204 = scmp.eq.s32.totalorder %s21, 0
      %p205 = por %p203, %p204
      %p206 = scmp.ne.s32.totalorder %s198, %s200
      %p207 = scmp.eq.s32.totalorder %s26, 15
      %p208 = por %p206, %p207
      %p209 = scmp.ne.s32.totalorder %s200, %s201
      %p210 = scmp.eq.s32.totalorder %s26, 0
      %p211 = por %p209, %p210
      %p212 = scmp.ne.s32.totalorder %s200, %s201
      %p213 = scmp.eq.s32.totalorder %s27, 15
      %p214 = por %p212, %p213
      %p216 = scmp.ne.s32.totalorder %s201, %s215
      %p217 = scmp.eq.s32.totalorder %s27, 0
      %p218 = por %p216, %p217
      %s220 = sadd.s32 %s219, 1
      %p223 = scmp.eq.s32.totalorder %s21, 15
      %p224 = scmp.ne.s32.totalorder %s219, %s221
      %p225 = scmp.eq.s32.totalorder %s21, 0
      %p226 = por %p224, %p225
      %p227 = scmp.ne.s32.totalorder %s219, %s221
      %p228 = scmp.eq.s32.totalorder %s26, 15
      %p229 = por %p227, %p228
      %p230 = scmp.ne.s32.totalorder %s221, %s222
      %p231 = scmp.eq.s32.totalorder %s26, 0
      %p232 = por %p230, %p231
      %p233 = scmp.ne.s32.totalorder %s221, %s222
      %p234 = scmp.eq.s32.totalorder %s27, 15
      %p235 = por %p233, %p234
      %p237 = scmp.ne.s32.totalorder %s222, %s236
      %p238 = scmp.eq.s32.totalorder %s27, 0
      %p239 = por %p237, %p238
      %s240 = ssub.s32 %s30, %s39
      %p241 = scmp.eq.s32.totalorder %s240, 0
      %s243 = sadd.s32 %s242, 1
      %s244 = scalar_select %p241, %s242, %s243
      %p247 = pneg %p241
      %p248 = scmp.eq.s32.totalorder %s21, 15
      %p249 = por %p247, %p248
      %p250 = scmp.ne.s32.totalorder %s242, %s245
      %p251 = scmp.eq.s32.totalorder %s21, 0
      %p252 = por %p250, %p251
      %p253 = scmp.ne.s32.totalorder %s242, %s245
      %p254 = scmp.eq.s32.totalorder %s26, 15
      %p255 = por %p253, %p254
      %p256 = scmp.ne.s32.totalorder %s245, %s246
      %p257 = scmp.eq.s32.totalorder %s26, 0
      %p258 = por %p256, %p257
      %p259 = scmp.ne.s32.totalorder %s245, %s246
      %p260 = scmp.eq.s32.totalorder %s27, 15
      %p261 = por %p259, %p260
      %p263 = scmp.ne.s32.totalorder %s246, %s262
      %p264 = scmp.eq.s32.totalorder %s27, 0
      %p265 = por %p263, %p264
      %s266 = ssub.s32 %s30, %s39
      %p267 = scmp.eq.s32.totalorder %s266, 0
      %s269 = sadd.s32 %s268, 1
      %s270 = scalar_select %p267, %s268, %s269
      %p273 = pneg %p267
      %p274 = scmp.eq.s32.totalorder %s21, 15
      %p275 = por %p273, %p274
      %p276 = scmp.ne.s32.totalorder %s268, %s271
      %p277 = scmp.eq.s32.totalorder %s21, 0
      %p278 = por %p276, %p277
      %p279 = scmp.ne.s32.totalorder %s268, %s271
      %p280 = scmp.eq.s32.totalorder %s26, 15
      %p281 = por %p279, %p280
      %p282 = scmp.ne.s32.totalorder %s271, %s272
      %p283 = scmp.eq.s32.totalorder %s26, 0
      %p284 = por %p282, %p283
      %p285 = scmp.ne.s32.totalorder %s271, %s272
      %p286 = scmp.eq.s32.totalorder %s27, 15
      %p287 = por %p285, %p286
      %p289 = scmp.ne.s32.totalorder %s272, %s288
      %p290 = scmp.eq.s32.totalorder %s27, 0
      %p291 = por %p289, %p290
      %s292 = ssub.s32 %s30, %s39
      %p293 = scmp.eq.s32.totalorder %s292, 0
      %s295 = sadd.s32 %s294, 1
      %s296 = scalar_select %p293, %s294, %s295
      %p299 = pneg %p293
      %p300 = scmp.eq.s32.totalorder %s21, 15
      %p301 = por %p299, %p300
      %p302 = scmp.ne.s32.totalorder %s294, %s297
      %p303 = scmp.eq.s32.totalorder %s21, 0
      %p304 = por %p302, %p303
      %p305 = scmp.ne.s32.totalorder %s294, %s297
      %p306 = scmp.eq.s32.totalorder %s26, 15
      %p307 = por %p305, %p306
      %p308 = scmp.ne.s32.totalorder %s297, %s298
      %p309 = scmp.eq.s32.totalorder %s26, 0
      %p310 = por %p308, %p309
      %p311 = scmp.ne.s32.totalorder %s297, %s298
      %p312 = scmp.eq.s32.totalorder %s27, 15
      %p313 = por %p311, %p312
      %p315 = scmp.ne.s32.totalorder %s298, %s314
      %p316 = scmp.eq.s32.totalorder %s27, 0
      %p317 = por %p315, %p316
      %s319 = sadd.s32 %s318, 1
      %p322 = scmp.eq.s32.totalorder %s21, 15
      %p323 = scmp.ne.s32.totalorder %s318, %s320
      %p324 = scmp.eq.s32.totalorder %s21, 0
      %p325 = por %p323, %p324
      %p326 = scmp.ne.s32.totalorder %s318, %s320
      %p327 = scmp.eq.s32.totalorder %s26, 15
      %p328 = por %p326, %p327
      %p329 = scmp.ne.s32.totalorder %s320, %s321
      %p330 = scmp.eq.s32.totalorder %s26, 0
      %p331 = por %p329, %p330
      %p332 = scmp.ne.s32.totalorder %s320, %s321
      %p333 = scmp.eq.s32.totalorder %s27, 15
      %p334 = por %p332, %p333
      %p336 = scmp.ne.s32.totalorder %s321, %s335
      %p337 = scmp.eq.s32.totalorder %s27, 0
      %p338 = por %p336, %p337
      %s339 = ssub.s32 %s28, %s47
      %s340 = ssub.s32 %s29, %s43
      %s341 = sor.u32 %s339, %s340
      %p342 = scmp.eq.s32.totalorder %s341, 0
      %s344 = sadd.s32 %s343, 1
      %s345 = scalar_select %p342, %s343, %s344
      %p348 = pneg %p342
      %p349 = scmp.eq.s32.totalorder %s21, 15
      %p350 = por %p348, %p349
      %p351 = scmp.ne.s32.totalorder %s343, %s346
      %p352 = scmp.eq.s32.totalorder %s21, 0
      %p353 = por %p351, %p352
      %p354 = scmp.ne.s32.totalorder %s343, %s346
      %p355 = scmp.eq.s32.totalorder %s26, 15
      %p356 = por %p354, %p355
      %p357 = scmp.ne.s32.totalorder %s346, %s347
      %p358 = scmp.eq.s32.totalorder %s26, 0
      %p359 = por %p357, %p358
      %p360 = scmp.ne.s32.totalorder %s346, %s347
      %p361 = scmp.eq.s32.totalorder %s27, 15
      %p362 = por %p360, %p361
      %p364 = scmp.ne.s32.totalorder %s347, %s363
      %p365 = scmp.eq.s32.totalorder %s27, 0
      %p366 = por %p364, %p365
      %p367 = scmp.le.s32.totalorder 1, %s21
      %p368 = scmp.lt.s32.totalorder %s21, 17
      %p369 = pnand %p367, %p368
      %p370 = pneg %p369
      // Predicated region
      $region9: #{block_forward.3} parent=5 // pred_check
        _
      $region10: #{block_forward.3} parent=5 // pred_check_branch
        %372 = sbr.rel (%p369) target = $region12
      $region11: #{block_forward.3} parent=5 // pred_region
        %s373 = ssub.s32 %s21, 1
        // Predicated region
        $region13: #{block_forward.3} parent=11 // pred_check
          %p374 = pneg %p169
        $region14: #{block_forward.3} parent=11 // pred_check_branch
          %376 = sbr.rel (%p374) target = $region16
        $region15: #{block_forward.3} parent=11 // pred_region
          _
        $region16: #{block_forward.3} parent=11 // pred_fallthru
          _
        // Predicated region
        $region17: #{block_forward.3} parent=11 // pred_check
          %p377 = pneg %p190
        $region18: #{block_forward.3} parent=11 // pred_check_branch
          %379 = sbr.rel (%p377) target = $region20
        $region19: #{block_forward.3} parent=11 // pred_region
          _
        $region20: #{block_forward.3} parent=11 // pred_fallthru
          _
        // Predicated region
        $region21: #{block_forward.3} parent=11 // pred_check
          %p380 = pneg %p211
        $region22: #{block_forward.3} parent=11 // pred_check_branch
          %382 = sbr.rel (%p380) target = $region24
        $region23: #{block_forward.3} parent=11 // pred_region
          _
        $region24: #{block_forward.3} parent=11 // pred_fallthru
          _
        // Predicated region
        $region25: #{block_forward.3} parent=11 // pred_check
          %p383 = pneg %p232
        $region26: #{block_forward.3} parent=11 // pred_check_branch
          %385 = sbr.rel (%p383) target = $region28
        $region27: #{block_forward.3} parent=11 // pred_region
          _
        $region28: #{block_forward.3} parent=11 // pred_fallthru
          _
        // Predicated region
        $region29: #{block_forward.3} parent=11 // pred_check
          %p386 = pneg %p331
        $region30: #{block_forward.3} parent=11 // pred_check_branch
          %388 = sbr.rel (%p386) target = $region32
        $region31: #{block_forward.3} parent=11 // pred_region
          _
        $region32: #{block_forward.3} parent=11 // pred_fallthru
          _
      $region12: #{block_forward.3} parent=5 // pred_fallthru
        _
      %p389 = scmp.lt.s32.totalorder %s21, 16
      // Predicated region
      $region33: #{block_forward.3} parent=5 // pred_check
        %p390 = pneg %p389
      $region34: #{block_forward.3} parent=5 // pred_check_branch
        %392 = sbr.rel (%p390) target = $region36
      $region35: #{block_forward.3} parent=5 // pred_region
        // Predicated region
        $region37: #{block_forward.3} parent=35 // pred_check
          %p393 = pneg %p62
        $region38: #{block_forward.3} parent=35 // pred_check_branch
          %395 = sbr.rel (%p393) target = $region40
        $region39: #{block_forward.3} parent=35 // pred_region
          %s396 = smul.u32 2, %s29
          %p397 = scmp.lt.s32.totalorder %s28, 1
          %s398 = scalar_select %p397, %s28, 1
          %p399 = scmp.lt.s32.totalorder %s396, 7
          %s400 = scalar_select %p399, %s396, 7
          %s401 = smul.addr %s398, 8
          %s402 = sadd.s32 %s400, %s401
          %s403 = smul.addr %s402, 8
          %s404 = scalar_lea.vmem %s0, %s403
          %s405 = smul.u32 2, %s29
        $region40: #{block_forward.3} parent=35 // pred_fallthru
          _
        // Predicated region
        $region41: #{block_forward.3} parent=35 // pred_check
          %p406 = pneg %p90
        $region42: #{block_forward.3} parent=35 // pred_check_branch
          %408 = sbr.rel (%p406) target = $region44
        $region43: #{block_forward.3} parent=35 // pred_region
          %s409 = smul.u32 2, %s29
          %p410 = scmp.lt.s32.totalorder %s28, 1
          %s411 = scalar_select %p410, %s28, 1
          %p412 = scmp.lt.s32.totalorder %s409, 7
          %s413 = scalar_select %p412, %s409, 7
          %s414 = smul.addr %s411, 8
          %s415 = sadd.s32 %s413, %s414
          %s416 = smul.addr %s415, 4
          %s417 = scalar_lea.vmem %s1, %s416
          %s418 = smul.u32 2, %s29
        $region44: #{block_forward.3} parent=35 // pred_fallthru
          _
        // Predicated region
        $region45: #{block_forward.3} parent=35 // pred_check
          %p419 = pneg %p116
        $region46: #{block_forward.3} parent=35 // pred_check_branch
          %421 = sbr.rel (%p419) target = $region48
        $region47: #{block_forward.3} parent=35 // pred_region
          %p422 = scmp.lt.s32.totalorder %s28, 1
          %s423 = scalar_select %p422, %s28, 1
          %s424 = smul.addr %s423, 8
          %s425 = smul.addr %s424, 4
          %s426 = scalar_lea.vmem %s2, %s425
        $region48: #{block_forward.3} parent=35 // pred_fallthru
          _
        // Predicated region
        $region49: #{block_forward.3} parent=35 // pred_check
          %p427 = pneg %p142
        $region50: #{block_forward.3} parent=35 // pred_check_branch
          %429 = sbr.rel (%p427) target = $region52
        $region51: #{block_forward.3} parent=35 // pred_region
          %p430 = scmp.lt.s32.totalorder %s28, 1
          %s431 = scalar_select %p430, %s28, 1
          %s432 = smul.addr %s431, 8
          %s433 = smul.addr %s432, 4
          %s434 = scalar_lea.vmem %s3, %s433
        $region52: #{block_forward.3} parent=35 // pred_fallthru
          _
        // Predicated region
        $region53: #{block_forward.3} parent=35 // pred_check
          %p435 = pneg %p252
        $region54: #{block_forward.3} parent=35 // pred_check_branch
          %437 = sbr.rel (%p435) target = $region56
        $region55: #{block_forward.3} parent=35 // pred_region
          %s438 = sand.u32 %s242, 1
          %s439 = sand.u32 %s242, 1
          %s440 = smul.addr %s439, 32
          %s441 = scalar_lea.vmem [#allocation5], %s440
          %s442 = smul.addr %s30, 4
          %s443 = scalar_lea.vmem %s8, %s442
          // Predicated region
          $region57: #{block_forward.3} parent=55 // pred_check
            _
          $region58: #{block_forward.3} parent=55 // pred_check_branch
            %445 = sbr.rel (0) target = $region60
          $region59: #{block_forward.3} parent=55 // pred_region
            // Predicated region
            $region61: #{block_forward.3} parent=59 // pred_check
              _
            $region62: #{block_forward.3} parent=59 // pred_check_branch
              %447 = sbr.rel target = $region64
            $region63: #{block_forward.3} parent=59 // pred_region
              // Predicated region
              $region76: #{block_forward.3} parent=63 // pred_check
                _
              $region77: #{block_forward.3} parent=63 // pred_check_branch
                %476 = sbr.rel (0) target = $region79
              $region78: #{block_forward.3} parent=63 // pred_region
                loop: start=0, step=1, limit=1
                $region80: #{block_forward.3} parent=78 // loop_pre_header
                  _
                $region81: #{block_forward.3} parent=78 // loop_header
                  %s478 = sphi 0, %s482
                  %p479 = scmp.ge.s32.totalorder %s478, 1
                  %s483 = sphi %s443, %s443
                  %s484 = sphi %s441, %s441
                $region82: #{block_forward.3} parent=78 // loop_header_branch
                  %481 = sbr.rel (%p479) target = $region86
                $region83: #{block_forward.3} parent=78 // loop_body
                  _
                $region84: #{block_forward.3} parent=78 // loop_footer
                  %s482 = sadd.s32 1, %s478
                $region85: #{block_forward.3} parent=78 // loop_footer_branch
                  %477 = sbr.rel target = $region81
                $region86: #{block_forward.3} parent=78 // loop_exit
                  _
                loop: start=0, step=1, limit=1
                $region87: #{block_forward.3} parent=78 // loop_pre_header
                  _
                $region88: #{block_forward.3} parent=78 // loop_header
                  %s487 = sphi 0, %s491
                  %p488 = scmp.ge.s32.totalorder %s487, 1
                  %s492 = sphi %s443, %s443
                  %s493 = sphi %s441, %s441
                $region89: #{block_forward.3} parent=78 // loop_header_branch
                  %490 = sbr.rel (%p488) target = $region93
                $region90: #{block_forward.3} parent=78 // loop_body
                  %v494 = vld [vmem:[%s492] sm:$0xf]
                  %495 = vst [vmem:[%s493] sm:$0xf] %v494
                  %v496 = vld [vmem:[%s492 + $0x8] sm:$0xf]
                  %497 = vst [vmem:[%s493 + $0x4] sm:$0xf] %v496
                  %v498 = vld [vmem:[%s492 + $0x10] sm:$0xf]
                  %499 = vst [vmem:[%s493 + $0x8] sm:$0xf] %v498
                  %v500 = vld [vmem:[%s492 + $0x18] sm:$0xf]
                  %501 = vst [vmem:[%s493 + $0xc] sm:$0xf] %v500
                  %v502 = vld [vmem:[%s492 + $0x20] sm:$0xf]
                  %503 = vst [vmem:[%s493 + $0x10] sm:$0xf] %v502
                  %v504 = vld [vmem:[%s492 + $0x28] sm:$0xf]
                  %505 = vst [vmem:[%s493 + $0x14] sm:$0xf] %v504
                  %v506 = vld [vmem:[%s492 + $0x30] sm:$0xf]
                  %507 = vst [vmem:[%s493 + $0x18] sm:$0xf] %v506
                  %v508 = vld [vmem:[%s492 + $0x38] sm:$0xf]
                  %509 = vst [vmem:[%s493 + $0x1c] sm:$0xf] %v508
                $region91: #{block_forward.3} parent=78 // loop_footer
                  %s491 = sadd.s32 1, %s487
                $region92: #{block_forward.3} parent=78 // loop_footer_branch
                  %486 = sbr.rel target = $region88
                $region93: #{block_forward.3} parent=78 // loop_exit
                  _
              $region79: #{block_forward.3} parent=63 // pred_fallthru
                _
            $region64: #{block_forward.3} parent=59 // pred_fallthru
              _
            // Predicated region
            $region65: #{block_forward.3} parent=59 // pred_check
              _
            $region66: #{block_forward.3} parent=59 // pred_check_branch
              %449 = sbr.rel (0) target = $region68
            $region67: #{block_forward.3} parent=59 // pred_region
              loop: start=0, step=1, limit=1
              $region69: #{block_forward.3} parent=67 // loop_pre_header
                _
              $region70: #{block_forward.3} parent=67 // loop_header
                %s452 = sphi 0, %s456
                %p453 = scmp.ge.s32.totalorder %s452, 1
                %s457 = sphi %s443, %s443
                %s458 = sphi %s441, %s441
              $region71: #{block_forward.3} parent=67 // loop_header_branch
                %455 = sbr.rel (%p453) target = $region75
              $region72: #{block_forward.3} parent=67 // loop_body
                %v459 = vld [vmem:[%s457] sm:$0xf]
                %460 = vst [vmem:[%s458] sm:$0xf] %v459
                %v461 = vld [vmem:[%s457 + $0x8] sm:$0xf]
                %462 = vst [vmem:[%s458 + $0x4] sm:$0xf] %v461
                %v463 = vld [vmem:[%s457 + $0x10] sm:$0xf]
                %464 = vst [vmem:[%s458 + $0x8] sm:$0xf] %v463
                %v465 = vld [vmem:[%s457 + $0x18] sm:$0xf]
                %466 = vst [vmem:[%s458 + $0xc] sm:$0xf] %v465
                %v467 = vld [vmem:[%s457 + $0x20] sm:$0xf]
                %468 = vst [vmem:[%s458 + $0x10] sm:$0xf] %v467
                %v469 = vld [vmem:[%s457 + $0x28] sm:$0xf]
                %470 = vst [vmem:[%s458 + $0x14] sm:$0xf] %v469
                %v471 = vld [vmem:[%s457 + $0x30] sm:$0xf]
                %472 = vst [vmem:[%s458 + $0x18] sm:$0xf] %v471
                %v473 = vld [vmem:[%s457 + $0x38] sm:$0xf]
                %474 = vst [vmem:[%s458 + $0x1c] sm:$0xf] %v473
              $region73: #{block_forward.3} parent=67 // loop_footer
                %s456 = sadd.s32 1, %s452
              $region74: #{block_forward.3} parent=67 // loop_footer_branch
                %451 = sbr.rel target = $region70
              $region75: #{block_forward.3} parent=67 // loop_exit
                _
            $region68: #{block_forward.3} parent=59 // pred_fallthru
              _
          $region60: #{block_forward.3} parent=55 // pred_fallthru
            _
          %510 = vnop
        $region56: #{block_forward.3} parent=35 // pred_fallthru
          _
        // Predicated region
        $region94: #{block_forward.3} parent=35 // pred_check
          %p511 = pneg %p278
        $region95: #{block_forward.3} parent=35 // pred_check_branch
          %513 = sbr.rel (%p511) target = $region97
        $region96: #{block_forward.3} parent=35 // pred_region
          %p514 = scmp.lt.s32.totalorder %s30, 1
          %s515 = scalar_select %p514, %s30, 1
          %s516 = scalar_lea.vmem %s9, %s515
        $region97: #{block_forward.3} parent=35 // pred_fallthru
          _
        // Predicated region
        $region98: #{block_forward.3} parent=35 // pred_check
          %p517 = pneg %p304
        $region99: #{block_forward.3} parent=35 // pred_check_branch
          %519 = sbr.rel (%p517) target = $region101
        $region100: #{block_forward.3} parent=35 // pred_region
          %s520 = smul.u32 16, %s30
          %p521 = scmp.lt.s32.totalorder %s520, 31
          %s522 = scalar_select %p521, %s520, 31
          %s523 = smul.addr %s522, 4
          %s524 = scalar_lea.vmem %s10, %s523
          %s525 = smul.u32 16, %s30
        $region101: #{block_forward.3} parent=35 // pred_fallthru
          _
      $region36: #{block_forward.3} parent=5 // pred_fallthru
        _
      %p526 = scmp.le.s32.totalorder 1, %s21
      %p527 = scmp.lt.s32.totalorder %s21, 17
      %p528 = pnand %p526, %p527
      %p529 = pneg %p528
      // Predicated region
      $region102: #{block_forward.3} parent=5 // pred_check
        _
      $region103: #{block_forward.3} parent=5 // pred_check_branch
        %531 = sbr.rel (%p528) target = $region105
      $region104: #{block_forward.3} parent=5 // pred_region
        %s532 = ssub.s32 %s21, 1
        %s533 = sand.u32 %s245, 1
        %s534 = sand.u32 %s245, 1
        %s535 = smul.addr %s534, 32
        %s536 = scalar_lea.vmem [#allocation5], %s535
        // Predicated region
        $region106: #{block_forward.3} parent=104 // pred_check
          %p537 = pneg %p258
        $region107: #{block_forward.3} parent=104 // pred_check_branch
          %539 = sbr.rel (%p537) target = $region109
        $region108: #{block_forward.3} parent=104 // pred_region
          _
        $region109: #{block_forward.3} parent=104 // pred_fallthru
          _
        %s540 = smul.u32 2, %s32
        %p541 = scmp.lt.s32.totalorder %s31, 1
        %s542 = scalar_select %p541, %s31, 1
        %p543 = scmp.lt.s32.totalorder %s540, 7
        %s544 = scalar_select %p543, %s540, 7
        %s545 = smul.addr %s542, 8
        %s546 = sadd.s32 %s544, %s545
        %s547 = smul.addr %s546, 8
        %s548 = scalar_lea.vmem %s0, %s547
        %p549 = pneg %p68
        %p550 = pneg %p65
        %s551 = smul.u32 2, %s32
        %p552 = scmp.lt.s32.totalorder %s31, 1
        %s553 = scalar_select %p552, %s31, 1
        %p554 = scmp.lt.s32.totalorder %s551, 7
        %s555 = scalar_select %p554, %s551, 7
        %s556 = smul.addr %s553, 8
        %s557 = sadd.s32 %s555, %s556
        %s558 = smul.addr %s557, 4
        %s559 = scalar_lea.vmem %s1, %s558
        %p560 = pneg %p96
        %p561 = pneg %p93
        %p562 = scmp.lt.s32.totalorder %s31, 1
        %s563 = scalar_select %p562, %s31, 1
        %s564 = smul.addr %s563, 8
        %s565 = smul.addr %s564, 4
        %s566 = scalar_lea.vmem %s2, %s565
        %p567 = pneg %p122
        %p568 = pneg %p119
        %p569 = scmp.lt.s32.totalorder %s31, 1
        %s570 = scalar_select %p569, %s31, 1
        %s571 = smul.addr %s570, 8
        %s572 = smul.addr %s571, 4
        %s573 = scalar_lea.vmem %s3, %s572
        %p574 = pneg %p148
        %p575 = pneg %p145
        %p576 = pneg %p169
        %p577 = pneg %p166
        %p578 = pneg %p190
        %p579 = pneg %p187
        %p580 = pneg %p211
        %p581 = pneg %p208
        %p582 = pneg %p232
        %p583 = pneg %p229
        %s584 = sand.u32 %s245, 1
        %s585 = sand.u32 %s245, 1
        %s586 = smul.addr %s585, 32
        %s587 = scalar_lea.vmem [#allocation5], %s586
        %p588 = pneg %p258
        %p589 = pneg %p255
        %p590 = scmp.lt.s32.totalorder %s33, 1
        %s591 = scalar_select %p590, %s33, 1
        %s592 = scalar_lea.vmem %s9, %s591
        %p593 = pneg %p284
        %p594 = pneg %p281
        %s595 = smul.u32 16, %s33
        %p596 = scmp.lt.s32.totalorder %s595, 31
        %s597 = scalar_select %p596, %s595, 31
        %s598 = smul.addr %s597, 4
        %s599 = scalar_lea.vmem %s10, %s598
        %p600 = pneg %p310
        %p601 = pneg %p307
        %p602 = pneg %p331
        %p603 = pneg %p328
        %p604 = pneg %p359
        %p605 = pneg %p356
        %s606 = sand.u32 %s346, 1
        %s607 = scalar_lea.sflag [#allocation7], %s606
        %s608 = sand.u32 %s346, 1
        %s609 = smul.addr %s608, 16
        %s610 = scalar_lea.vmem [#allocation6], %s609
        %s611 = smul.u32 2, %s32
        %p612 = scmp.lt.s32.totalorder %s31, 1
        %s613 = scalar_select %p612, %s31, 1
        %p614 = scmp.lt.s32.totalorder %s611, 7
        %s615 = scalar_select %p614, %s611, 7
        %s616 = smul.addr %s613, 8
        %s617 = sadd.s32 %s615, %s616
        %s618 = smul.addr %s617, 8
        %s619 = scalar_lea.vmem %s0, %s618
        %s620 = smul.u32 2, %s32
        %s621 = smul.u32 2, %s32
        %p622 = scmp.lt.s32.totalorder %s31, 1
        %s623 = scalar_select %p622, %s31, 1
        %p624 = scmp.lt.s32.totalorder %s621, 7
        %s625 = scalar_select %p624, %s621, 7
        %s626 = smul.addr %s623, 8
        %s627 = sadd.s32 %s625, %s626
        %s628 = smul.addr %s627, 4
        %s629 = scalar_lea.vmem %s1, %s628
        %s630 = smul.u32 2, %s32
        %p631 = scmp.lt.s32.totalorder %s31, 1
        %s632 = scalar_select %p631, %s31, 1
        %s633 = smul.addr %s632, 8
        %s634 = smul.addr %s633, 4
        %s635 = scalar_lea.vmem %s2, %s634
        %p636 = scmp.lt.s32.totalorder %s31, 1
        %s637 = scalar_select %p636, %s31, 1
        %s638 = smul.addr %s637, 8
        %s639 = smul.addr %s638, 4
        %s640 = scalar_lea.vmem %s3, %s639
        %p641 = scmp.lt.s32.totalorder %s33, 1
        %s642 = scalar_select %p641, %s33, 1
        %s643 = scalar_lea.vmem %s9, %s642
        %s644 = smul.u32 16, %s33
        %p645 = scmp.lt.s32.totalorder %s644, 31
        %s646 = scalar_select %p645, %s644, 31
        %s647 = smul.addr %s646, 4
        %s648 = scalar_lea.vmem %s10, %s647
        %s649 = smul.u32 16, %s33
        %s650 = smul.u32 2, %s32
        %s652 = smul.u32 %s32, 16
        %p653 = scmp.eq.s32.totalorder %s33, 0
        // Predicated region
        $region110: #{block_forward.3} parent=104 // pred_check
          %p654 = pneg %p653
        $region111: #{block_forward.3} parent=104 // pred_check_branch
          %656 = sbr.rel (%p654) target = $region113
        $region112: #{block_forward.3} parent=104 // pred_region
          %v657 = vld [vmem:[%s619] sm:$0xff]
          %v658 = vld [vmem:[%s619 + $0x8] sm:$0xff]
          %v659 = vld [vmem:[%s629] sm:$0xf]
          %v660 = vld [vmem:[%s629 + $0x4] sm:$0xf]
          %v661 = vld [vmem:[%s635] sm:$0xf]
          %v662 = vld [vmem:[%s635 + $0x4] sm:$0xf]
          %v663 = vld [vmem:[%s635 + $0x8] sm:$0xf]
          %v664 = vld [vmem:[%s635 + $0xc] sm:$0xf]
          %v665 = vld [vmem:[%s635 + $0x10] sm:$0xf]
          %v666 = vld [vmem:[%s635 + $0x14] sm:$0xf]
          %v667 = vld [vmem:[%s635 + $0x18] sm:$0xf]
          %v668 = vld [vmem:[%s635 + $0x1c] sm:$0xf]
          %v669 = vld [vmem:[%s640] sm:$0xf]
          %v670 = vld [vmem:[%s640 + $0x4] sm:$0xf]
          %v671 = vld [vmem:[%s640 + $0x8] sm:$0xf]
          %v672 = vld [vmem:[%s640 + $0xc] sm:$0xf]
          %v673 = vld [vmem:[%s640 + $0x10] sm:$0xf]
          %v674 = vld [vmem:[%s640 + $0x14] sm:$0xf]
          %v675 = vld [vmem:[%s640 + $0x18] sm:$0xf]
          %v676 = vld [vmem:[%s640 + $0x1c] sm:$0xf]
          %679 = vrot.lane.b32.xlu0 %v659, 112
          %v680 = vpop.permute.xlu0 %679
          %681 = vrot.lane.b32.xlu0 %v660, 112
          %v682 = vpop.permute.xlu0 %681
          %683 = vrot.lane.b32.xlu0 %v659, 96
          %v684 = vpop.permute.xlu0 %683
          %685 = vrot.lane.b32.xlu0 %v660, 96
          %v686 = vpop.permute.xlu0 %685
          %687 = vrot.lane.b32.xlu0 %v659, 80
          %v688 = vpop.permute.xlu0 %687
          %689 = vrot.lane.b32.xlu0 %v660, 80
          %v690 = vpop.permute.xlu0 %689
          %v693 = vpack.i.b16 %v680, %v659
          %v694 = vshrl.u32 %v659, 16
          %v695 = vshrl.u32 %v680, 16
          %v696 = vpack.i.b16 %v695, %v694
          %v699 = vpack.i.b16 %v688, %v684
          %v700 = vshrl.u32 %v684, 16
          %v701 = vshrl.u32 %v688, 16
          %v702 = vpack.i.b16 %v701, %v700
          %v705 = vpack.i.b16 %v682, %v660
          %v706 = vshrl.u32 %v660, 16
          %v707 = vshrl.u32 %v682, 16
          %v708 = vpack.i.b16 %v707, %v706
          %v711 = vpack.i.b16 %v690, %v686
          %v712 = vshrl.u32 %v686, 16
          %v713 = vshrl.u32 %v690, 16
          %v714 = vpack.i.b16 %v713, %v712
          %v717 = vunpack.c.l.s4 1983009808
          %v718 = vunpack.c.0.s8 %v717
          %v719 = vlaneseq
          %v720 = vshrl.u32 %v719, 7
          %v721 = vsub.s32 %v718, %v720
          %v722 = vrot.slane %v693, %v721
          %v725 = vunpack.c.l.s4 1983009808
          %v726 = vunpack.c.0.s8 %v725
          %v727 = vlaneseq
          %v728 = vshrl.u32 %v727, 7
          %v729 = vsub.s32 %v726, %v728
          %v730 = vrot.slane %v699, %v729
          %v731 = vcombine.low %v722, %v730
          %v732 = vcombine.high %v722, %v730
          %v734 = vunpack.c.l.s4 1934713408
          %v735 = vunpack.c.0.s8 %v734
          %v736 = vlaneseq
          %v737 = vshrl.u32 %v736, 7
          %v738 = vsub.s32 %v735, %v737
          %v739 = vrot.slane %v731, %v738
          %v741 = vunpack.c.l.s4 1934713408
          %v742 = vunpack.c.0.s8 %v741
          %v743 = vlaneseq
          %v744 = vshrl.u32 %v743, 7
          %v745 = vsub.s32 %v742, %v744
          %v746 = vrot.slane %v732, %v745
          %v747 = vcombine.high %v739, 0
          %v748 = vcombine.high %v746, 0
          %v751 = vunpack.c.l.s4 1983009808
          %v752 = vunpack.c.0.s8 %v751
          %v753 = vlaneseq
          %v754 = vshrl.u32 %v753, 7
          %v755 = vsub.s32 %v752, %v754
          %v756 = vrot.slane %v696, %v755
          %v759 = vunpack.c.l.s4 1983009808
          %v760 = vunpack.c.0.s8 %v759
          %v761 = vlaneseq
          %v762 = vshrl.u32 %v761, 7
          %v763 = vsub.s32 %v760, %v762
          %v764 = vrot.slane %v702, %v763
          %v765 = vcombine.low %v756, %v764
          %v766 = vcombine.high %v756, %v764
          %v768 = vunpack.c.l.s4 1934713408
          %v769 = vunpack.c.0.s8 %v768
          %v770 = vlaneseq
          %v771 = vshrl.u32 %v770, 7
          %v772 = vsub.s32 %v769, %v771
          %v773 = vrot.slane %v765, %v772
          %v775 = vunpack.c.l.s4 1934713408
          %v776 = vunpack.c.0.s8 %v775
          %v777 = vlaneseq
          %v778 = vshrl.u32 %v777, 7
          %v779 = vsub.s32 %v776, %v778
          %v780 = vrot.slane %v766, %v779
          %v781 = vcombine.high %v773, 0
          %v782 = vcombine.high %v780, 0
          %v785 = vunpack.c.l.s4 1983009808
          %v786 = vunpack.c.0.s8 %v785
          %v787 = vlaneseq
          %v788 = vshrl.u32 %v787, 7
          %v789 = vsub.s32 %v786, %v788
          %v790 = vrot.slane %v705, %v789
          %v793 = vunpack.c.l.s4 1983009808
          %v794 = vunpack.c.0.s8 %v793
          %v795 = vlaneseq
          %v796 = vshrl.u32 %v795, 7
          %v797 = vsub.s32 %v794, %v796
          %v798 = vrot.slane %v711, %v797
          %v799 = vcombine.low %v790, %v798
          %v800 = vcombine.high %v790, %v798
          %v802 = vunpack.c.l.s4 1934713408
          %v803 = vunpack.c.0.s8 %v802
          %v804 = vlaneseq
          %v805 = vshrl.u32 %v804, 7
          %v806 = vsub.s32 %v803, %v805
          %v807 = vrot.slane %v799, %v806
          %v809 = vunpack.c.l.s4 1934713408
          %v810 = vunpack.c.0.s8 %v809
          %v811 = vlaneseq
          %v812 = vshrl.u32 %v811, 7
          %v813 = vsub.s32 %v810, %v812
          %v814 = vrot.slane %v800, %v813
          %v815 = vcombine.high %v807, 0
          %v816 = vcombine.high %v814, 0
          %v819 = vunpack.c.l.s4 1983009808
          %v820 = vunpack.c.0.s8 %v819
          %v821 = vlaneseq
          %v822 = vshrl.u32 %v821, 7
          %v823 = vsub.s32 %v820, %v822
          %v824 = vrot.slane %v708, %v823
          %v827 = vunpack.c.l.s4 1983009808
          %v828 = vunpack.c.0.s8 %v827
          %v829 = vlaneseq
          %v830 = vshrl.u32 %v829, 7
          %v831 = vsub.s32 %v828, %v830
          %v832 = vrot.slane %v714, %v831
          %v833 = vcombine.low %v824, %v832
          %v834 = vcombine.high %v824, %v832
          %v836 = vunpack.c.l.s4 1934713408
          %v837 = vunpack.c.0.s8 %v836
          %v838 = vlaneseq
          %v839 = vshrl.u32 %v838, 7
          %v840 = vsub.s32 %v837, %v839
          %v841 = vrot.slane %v833, %v840
          %v843 = vunpack.c.l.s4 1934713408
          %v844 = vunpack.c.0.s8 %v843
          %v845 = vlaneseq
          %v846 = vshrl.u32 %v845, 7
          %v847 = vsub.s32 %v844, %v846
          %v848 = vrot.slane %v834, %v847
          %v849 = vcombine.high %v841, 0
          %v850 = vcombine.high %v848, 0
          %v851 = vcombine.low %v739, %v746
          %v853 = vunpack.c.l.s4 1983009808
          %v854 = vunpack.c.0.s8 %v853
          %v855 = vlaneseq
          %v856 = vshrl.u32 %v855, 7
          %v857 = vsub.s32 %v854, %v856
          %v858 = vrot.slane %v851, %v857
          %v859 = vcombine.low %v747, %v748
          %v861 = vunpack.c.l.s4 1983009808
          %v862 = vunpack.c.0.s8 %v861
          %v863 = vlaneseq
          %v864 = vshrl.u32 %v863, 7
          %v865 = vsub.s32 %v862, %v864
          %v866 = vrot.slane %v859, %v865
          %v867 = vcombine.low %v858, %v866
          %v869 = vunpack.c.l.s4 1934713408
          %v870 = vunpack.c.0.s8 %v869
          %v871 = vlaneseq
          %v872 = vshrl.u32 %v871, 7
          %v873 = vsub.s32 %v870, %v872
          %v874 = vrot.slane %v867, %v873
          %v875 = vcombine.high %v874, 0
          %v876 = vcombine.low %v773, %v780
          %v878 = vunpack.c.l.s4 1983009808
          %v879 = vunpack.c.0.s8 %v878
          %v880 = vlaneseq
          %v881 = vshrl.u32 %v880, 7
          %v882 = vsub.s32 %v879, %v881
          %v883 = vrot.slane %v876, %v882
          %v884 = vcombine.low %v781, %v782
          %v886 = vunpack.c.l.s4 1983009808
          %v887 = vunpack.c.0.s8 %v886
          %v888 = vlaneseq
          %v889 = vshrl.u32 %v888, 7
          %v890 = vsub.s32 %v887, %v889
          %v891 = vrot.slane %v884, %v890
          %v892 = vcombine.low %v883, %v891
          %v894 = vunpack.c.l.s4 1934713408
          %v895 = vunpack.c.0.s8 %v894
          %v896 = vlaneseq
          %v897 = vshrl.u32 %v896, 7
          %v898 = vsub.s32 %v895, %v897
          %v899 = vrot.slane %v892, %v898
          %v900 = vcombine.high %v899, 0
          %v901 = vcombine.low %v807, %v814
          %v903 = vunpack.c.l.s4 1983009808
          %v904 = vunpack.c.0.s8 %v903
          %v905 = vlaneseq
          %v906 = vshrl.u32 %v905, 7
          %v907 = vsub.s32 %v904, %v906
          %v908 = vrot.slane %v901, %v907
          %v909 = vcombine.low %v815, %v816
          %v911 = vunpack.c.l.s4 1983009808
          %v912 = vunpack.c.0.s8 %v911
          %v913 = vlaneseq
          %v914 = vshrl.u32 %v913, 7
          %v915 = vsub.s32 %v912, %v914
          %v916 = vrot.slane %v909, %v915
          %v917 = vcombine.low %v908, %v916
          %v919 = vunpack.c.l.s4 1934713408
          %v920 = vunpack.c.0.s8 %v919
          %v921 = vlaneseq
          %v922 = vshrl.u32 %v921, 7
          %v923 = vsub.s32 %v920, %v922
          %v924 = vrot.slane %v917, %v923
          %v925 = vcombine.high %v924, 0
          %v926 = vcombine.low %v841, %v848
          %v928 = vunpack.c.l.s4 1983009808
          %v929 = vunpack.c.0.s8 %v928
          %v930 = vlaneseq
          %v931 = vshrl.u32 %v930, 7
          %v932 = vsub.s32 %v929, %v931
          %v933 = vrot.slane %v926, %v932
          %v934 = vcombine.low %v849, %v850
          %v936 = vunpack.c.l.s4 1983009808
          %v937 = vunpack.c.0.s8 %v936
          %v938 = vlaneseq
          %v939 = vshrl.u32 %v938, 7
          %v940 = vsub.s32 %v937, %v939
          %v941 = vrot.slane %v934, %v940
          %v942 = vcombine.low %v933, %v941
          %v944 = vunpack.c.l.s4 1934713408
          %v945 = vunpack.c.0.s8 %v944
          %v946 = vlaneseq
          %v947 = vshrl.u32 %v946, 7
          %v948 = vsub.s32 %v945, %v947
          %v949 = vrot.slane %v942, %v948
          %v950 = vcombine.high %v949, 0
          %v953 = vpack.i.b16 %v899, %v874
          %v954 = vshrl.u32 %v874, 16
          %v955 = vshrl.u32 %v899, 16
          %v956 = vpack.i.b16 %v955, %v954
          %v959 = vpack.i.b16 %v900, %v875
          %v960 = vshrl.u32 %v875, 16
          %v961 = vshrl.u32 %v900, 16
          %v962 = vpack.i.b16 %v961, %v960
          %v965 = vpack.i.b16 %v949, %v924
          %v966 = vshrl.u32 %v924, 16
          %v967 = vshrl.u32 %v949, 16
          %v968 = vpack.i.b16 %v967, %v966
          %v971 = vpack.i.b16 %v950, %v925
          %v972 = vshrl.u32 %v925, 16
          %v973 = vshrl.u32 %v950, 16
          %v974 = vpack.i.b16 %v973, %v972
          %983 = vrot.lane.b32.xlu0 %v661, 112
          %v984 = vpop.permute.xlu0 %983
          %985 = vrot.lane.b32.xlu0 %v662, 112
          %v986 = vpop.permute.xlu0 %985
          %987 = vrot.lane.b32.xlu0 %v663, 112
          %v988 = vpop.permute.xlu0 %987
          %989 = vrot.lane.b32.xlu0 %v664, 112
          %v990 = vpop.permute.xlu0 %989
          %991 = vrot.lane.b32.xlu0 %v665, 112
          %v992 = vpop.permute.xlu0 %991
          %993 = vrot.lane.b32.xlu0 %v666, 112
          %v994 = vpop.permute.xlu0 %993
          %995 = vrot.lane.b32.xlu0 %v667, 112
          %v996 = vpop.permute.xlu0 %995
          %997 = vrot.lane.b32.xlu0 %v668, 112
          %v998 = vpop.permute.xlu0 %997
          %999 = vrot.lane.b32.xlu0 %v661, 96
          %v1000 = vpop.permute.xlu0 %999
          %1001 = vrot.lane.b32.xlu0 %v662, 96
          %v1002 = vpop.permute.xlu0 %1001
          %1003 = vrot.lane.b32.xlu0 %v663, 96
          %v1004 = vpop.permute.xlu0 %1003
          %1005 = vrot.lane.b32.xlu0 %v664, 96
          %v1006 = vpop.permute.xlu0 %1005
          %1007 = vrot.lane.b32.xlu0 %v665, 96
          %v1008 = vpop.permute.xlu0 %1007
          %1009 = vrot.lane.b32.xlu0 %v666, 96
          %v1010 = vpop.permute.xlu0 %1009
          %1011 = vrot.lane.b32.xlu0 %v667, 96
          %v1012 = vpop.permute.xlu0 %1011
          %1013 = vrot.lane.b32.xlu0 %v668, 96
          %v1014 = vpop.permute.xlu0 %1013
          %1015 = vrot.lane.b32.xlu0 %v661, 80
          %v1016 = vpop.permute.xlu0 %1015
          %1017 = vrot.lane.b32.xlu0 %v662, 80
          %v1018 = vpop.permute.xlu0 %1017
          %1019 = vrot.lane.b32.xlu0 %v663, 80
          %v1020 = vpop.permute.xlu0 %1019
          %1021 = vrot.lane.b32.xlu0 %v664, 80
          %v1022 = vpop.permute.xlu0 %1021
          %1023 = vrot.lane.b32.xlu0 %v665, 80
          %v1024 = vpop.permute.xlu0 %1023
          %1025 = vrot.lane.b32.xlu0 %v666, 80
          %v1026 = vpop.permute.xlu0 %1025
          %1027 = vrot.lane.b32.xlu0 %v667, 80
          %v1028 = vpop.permute.xlu0 %1027
          %1029 = vrot.lane.b32.xlu0 %v668, 80
          %v1030 = vpop.permute.xlu0 %1029
          %v1033 = vpack.i.b16 %v984, %v661
          %v1034 = vshrl.u32 %v661, 16
          %v1035 = vshrl.u32 %v984, 16
          %v1036 = vpack.i.b16 %v1035, %v1034
          %v1039 = vpack.i.b16 %v1016, %v1000
          %v1040 = vshrl.u32 %v1000, 16
          %v1041 = vshrl.u32 %v1016, 16
          %v1042 = vpack.i.b16 %v1041, %v1040
          %v1045 = vpack.i.b16 %v986, %v662
          %v1046 = vshrl.u32 %v662, 16
          %v1047 = vshrl.u32 %v986, 16
          %v1048 = vpack.i.b16 %v1047, %v1046
          %v1051 = vpack.i.b16 %v1018, %v1002
          %v1052 = vshrl.u32 %v1002, 16
          %v1053 = vshrl.u32 %v1018, 16
          %v1054 = vpack.i.b16 %v1053, %v1052
          %v1057 = vpack.i.b16 %v988, %v663
          %v1058 = vshrl.u32 %v663, 16
          %v1059 = vshrl.u32 %v988, 16
          %v1060 = vpack.i.b16 %v1059, %v1058
          %v1063 = vpack.i.b16 %v1020, %v1004
          %v1064 = vshrl.u32 %v1004, 16
          %v1065 = vshrl.u32 %v1020, 16
          %v1066 = vpack.i.b16 %v1065, %v1064
          %v1069 = vpack.i.b16 %v990, %v664
          %v1070 = vshrl.u32 %v664, 16
          %v1071 = vshrl.u32 %v990, 16
          %v1072 = vpack.i.b16 %v1071, %v1070
          %v1075 = vpack.i.b16 %v1022, %v1006
          %v1076 = vshrl.u32 %v1006, 16
          %v1077 = vshrl.u32 %v1022, 16
          %v1078 = vpack.i.b16 %v1077, %v1076
          %v1081 = vpack.i.b16 %v992, %v665
          %v1082 = vshrl.u32 %v665, 16
          %v1083 = vshrl.u32 %v992, 16
          %v1084 = vpack.i.b16 %v1083, %v1082
          %v1087 = vpack.i.b16 %v1024, %v1008
          %v1088 = vshrl.u32 %v1008, 16
          %v1089 = vshrl.u32 %v1024, 16
          %v1090 = vpack.i.b16 %v1089, %v1088
          %v1093 = vpack.i.b16 %v994, %v666
          %v1094 = vshrl.u32 %v666, 16
          %v1095 = vshrl.u32 %v994, 16
          %v1096 = vpack.i.b16 %v1095, %v1094
          %v1099 = vpack.i.b16 %v1026, %v1010
          %v1100 = vshrl.u32 %v1010, 16
          %v1101 = vshrl.u32 %v1026, 16
          %v1102 = vpack.i.b16 %v1101, %v1100
          %v1105 = vpack.i.b16 %v996, %v667
          %v1106 = vshrl.u32 %v667, 16
          %v1107 = vshrl.u32 %v996, 16
          %v1108 = vpack.i.b16 %v1107, %v1106
          %v1111 = vpack.i.b16 %v1028, %v1012
          %v1112 = vshrl.u32 %v1012, 16
          %v1113 = vshrl.u32 %v1028, 16
          %v1114 = vpack.i.b16 %v1113, %v1112
          %v1117 = vpack.i.b16 %v998, %v668
          %v1118 = vshrl.u32 %v668, 16
          %v1119 = vshrl.u32 %v998, 16
          %v1120 = vpack.i.b16 %v1119, %v1118
          %v1123 = vpack.i.b16 %v1030, %v1014
          %v1124 = vshrl.u32 %v1014, 16
          %v1125 = vshrl.u32 %v1030, 16
          %v1126 = vpack.i.b16 %v1125, %v1124
          %v1129 = vunpack.c.l.s4 1983009808
          %v1130 = vunpack.c.0.s8 %v1129
          %v1131 = vlaneseq
          %v1132 = vshrl.u32 %v1131, 7
          %v1133 = vsub.s32 %v1130, %v1132
          %v1134 = vrot.slane %v1033, %v1133
          %v1137 = vunpack.c.l.s4 1983009808
          %v1138 = vunpack.c.0.s8 %v1137
          %v1139 = vlaneseq
          %v1140 = vshrl.u32 %v1139, 7
          %v1141 = vsub.s32 %v1138, %v1140
          %v1142 = vrot.slane %v1039, %v1141
          %v1143 = vcombine.low %v1134, %v1142
          %v1144 = vcombine.high %v1134, %v1142
          %v1146 = vunpack.c.l.s4 1934713408
          %v1147 = vunpack.c.0.s8 %v1146
          %v1148 = vlaneseq
          %v1149 = vshrl.u32 %v1148, 7
          %v1150 = vsub.s32 %v1147, %v1149
          %v1151 = vrot.slane %v1143, %v1150
          %v1153 = vunpack.c.l.s4 1934713408
          %v1154 = vunpack.c.0.s8 %v1153
          %v1155 = vlaneseq
          %v1156 = vshrl.u32 %v1155, 7
          %v1157 = vsub.s32 %v1154, %v1156
          %v1158 = vrot.slane %v1144, %v1157
          %v1159 = vcombine.high %v1151, 0
          %v1160 = vcombine.high %v1158, 0
          %v1163 = vunpack.c.l.s4 1983009808
          %v1164 = vunpack.c.0.s8 %v1163
          %v1165 = vlaneseq
          %v1166 = vshrl.u32 %v1165, 7
          %v1167 = vsub.s32 %v1164, %v1166
          %v1168 = vrot.slane %v1036, %v1167
          %v1171 = vunpack.c.l.s4 1983009808
          %v1172 = vunpack.c.0.s8 %v1171
          %v1173 = vlaneseq
          %v1174 = vshrl.u32 %v1173, 7
          %v1175 = vsub.s32 %v1172, %v1174
          %v1176 = vrot.slane %v1042, %v1175
          %v1177 = vcombine.low %v1168, %v1176
          %v1178 = vcombine.high %v1168, %v1176
          %v1180 = vunpack.c.l.s4 1934713408
          %v1181 = vunpack.c.0.s8 %v1180
          %v1182 = vlaneseq
          %v1183 = vshrl.u32 %v1182, 7
          %v1184 = vsub.s32 %v1181, %v1183
          %v1185 = vrot.slane %v1177, %v1184
          %v1187 = vunpack.c.l.s4 1934713408
          %v1188 = vunpack.c.0.s8 %v1187
          %v1189 = vlaneseq
          %v1190 = vshrl.u32 %v1189, 7
          %v1191 = vsub.s32 %v1188, %v1190
          %v1192 = vrot.slane %v1178, %v1191
          %v1193 = vcombine.high %v1185, 0
          %v1194 = vcombine.high %v1192, 0
          %v1197 = vunpack.c.l.s4 1983009808
          %v1198 = vunpack.c.0.s8 %v1197
          %v1199 = vlaneseq
          %v1200 = vshrl.u32 %v1199, 7
          %v1201 = vsub.s32 %v1198, %v1200
          %v1202 = vrot.slane %v1045, %v1201
          %v1205 = vunpack.c.l.s4 1983009808
          %v1206 = vunpack.c.0.s8 %v1205
          %v1207 = vlaneseq
          %v1208 = vshrl.u32 %v1207, 7
          %v1209 = vsub.s32 %v1206, %v1208
          %v1210 = vrot.slane %v1051, %v1209
          %v1211 = vcombine.low %v1202, %v1210
          %v1212 = vcombine.high %v1202, %v1210
          %v1214 = vunpack.c.l.s4 1934713408
          %v1215 = vunpack.c.0.s8 %v1214
          %v1216 = vlaneseq
          %v1217 = vshrl.u32 %v1216, 7
          %v1218 = vsub.s32 %v1215, %v1217
          %v1219 = vrot.slane %v1211, %v1218
          %v1221 = vunpack.c.l.s4 1934713408
          %v1222 = vunpack.c.0.s8 %v1221
          %v1223 = vlaneseq
          %v1224 = vshrl.u32 %v1223, 7
          %v1225 = vsub.s32 %v1222, %v1224
          %v1226 = vrot.slane %v1212, %v1225
          %v1227 = vcombine.high %v1219, 0
          %v1228 = vcombine.high %v1226, 0
          %v1231 = vunpack.c.l.s4 1983009808
          %v1232 = vunpack.c.0.s8 %v1231
          %v1233 = vlaneseq
          %v1234 = vshrl.u32 %v1233, 7
          %v1235 = vsub.s32 %v1232, %v1234
          %v1236 = vrot.slane %v1048, %v1235
          %v1239 = vunpack.c.l.s4 1983009808
          %v1240 = vunpack.c.0.s8 %v1239
          %v1241 = vlaneseq
          %v1242 = vshrl.u32 %v1241, 7
          %v1243 = vsub.s32 %v1240, %v1242
          %v1244 = vrot.slane %v1054, %v1243
          %v1245 = vcombine.low %v1236, %v1244
          %v1246 = vcombine.high %v1236, %v1244
          %v1248 = vunpack.c.l.s4 1934713408
          %v1249 = vunpack.c.0.s8 %v1248
          %v1250 = vlaneseq
          %v1251 = vshrl.u32 %v1250, 7
          %v1252 = vsub.s32 %v1249, %v1251
          %v1253 = vrot.slane %v1245, %v1252
          %v1255 = vunpack.c.l.s4 1934713408
          %v1256 = vunpack.c.0.s8 %v1255
          %v1257 = vlaneseq
          %v1258 = vshrl.u32 %v1257, 7
          %v1259 = vsub.s32 %v1256, %v1258
          %v1260 = vrot.slane %v1246, %v1259
          %v1261 = vcombine.high %v1253, 0
          %v1262 = vcombine.high %v1260, 0
          %v1265 = vunpack.c.l.s4 1983009808
          %v1266 = vunpack.c.0.s8 %v1265
          %v1267 = vlaneseq
          %v1268 = vshrl.u32 %v1267, 7
          %v1269 = vsub.s32 %v1266, %v1268
          %v1270 = vrot.slane %v1057, %v1269
          %v1273 = vunpack.c.l.s4 1983009808
          %v1274 = vunpack.c.0.s8 %v1273
          %v1275 = vlaneseq
          %v1276 = vshrl.u32 %v1275, 7
          %v1277 = vsub.s32 %v1274, %v1276
          %v1278 = vrot.slane %v1063, %v1277
          %v1279 = vcombine.low %v1270, %v1278
          %v1280 = vcombine.high %v1270, %v1278
          %v1282 = vunpack.c.l.s4 1934713408
          %v1283 = vunpack.c.0.s8 %v1282
          %v1284 = vlaneseq
          %v1285 = vshrl.u32 %v1284, 7
          %v1286 = vsub.s32 %v1283, %v1285
          %v1287 = vrot.slane %v1279, %v1286
          %v1289 = vunpack.c.l.s4 1934713408
          %v1290 = vunpack.c.0.s8 %v1289
          %v1291 = vlaneseq
          %v1292 = vshrl.u32 %v1291, 7
          %v1293 = vsub.s32 %v1290, %v1292
          %v1294 = vrot.slane %v1280, %v1293
          %v1295 = vcombine.high %v1287, 0
          %v1296 = vcombine.high %v1294, 0
          %v1299 = vunpack.c.l.s4 1983009808
          %v1300 = vunpack.c.0.s8 %v1299
          %v1301 = vlaneseq
          %v1302 = vshrl.u32 %v1301, 7
          %v1303 = vsub.s32 %v1300, %v1302
          %v1304 = vrot.slane %v1060, %v1303
          %v1307 = vunpack.c.l.s4 1983009808
          %v1308 = vunpack.c.0.s8 %v1307
          %v1309 = vlaneseq
          %v1310 = vshrl.u32 %v1309, 7
          %v1311 = vsub.s32 %v1308, %v1310
          %v1312 = vrot.slane %v1066, %v1311
          %v1313 = vcombine.low %v1304, %v1312
          %v1314 = vcombine.high %v1304, %v1312
          %v1316 = vunpack.c.l.s4 1934713408
          %v1317 = vunpack.c.0.s8 %v1316
          %v1318 = vlaneseq
          %v1319 = vshrl.u32 %v1318, 7
          %v1320 = vsub.s32 %v1317, %v1319
          %v1321 = vrot.slane %v1313, %v1320
          %v1323 = vunpack.c.l.s4 1934713408
          %v1324 = vunpack.c.0.s8 %v1323
          %v1325 = vlaneseq
          %v1326 = vshrl.u32 %v1325, 7
          %v1327 = vsub.s32 %v1324, %v1326
          %v1328 = vrot.slane %v1314, %v1327
          %v1329 = vcombine.high %v1321, 0
          %v1330 = vcombine.high %v1328, 0
          %v1333 = vunpack.c.l.s4 1983009808
          %v1334 = vunpack.c.0.s8 %v1333
          %v1335 = vlaneseq
          %v1336 = vshrl.u32 %v1335, 7
          %v1337 = vsub.s32 %v1334, %v1336
          %v1338 = vrot.slane %v1069, %v1337
          %v1341 = vunpack.c.l.s4 1983009808
          %v1342 = vunpack.c.0.s8 %v1341
          %v1343 = vlaneseq
          %v1344 = vshrl.u32 %v1343, 7
          %v1345 = vsub.s32 %v1342, %v1344
          %v1346 = vrot.slane %v1075, %v1345
          %v1347 = vcombine.low %v1338, %v1346
          %v1348 = vcombine.high %v1338, %v1346
          %v1350 = vunpack.c.l.s4 1934713408
          %v1351 = vunpack.c.0.s8 %v1350
          %v1352 = vlaneseq
          %v1353 = vshrl.u32 %v1352, 7
          %v1354 = vsub.s32 %v1351, %v1353
          %v1355 = vrot.slane %v1347, %v1354
          %v1357 = vunpack.c.l.s4 1934713408
          %v1358 = vunpack.c.0.s8 %v1357
          %v1359 = vlaneseq
          %v1360 = vshrl.u32 %v1359, 7
          %v1361 = vsub.s32 %v1358, %v1360
          %v1362 = vrot.slane %v1348, %v1361
          %v1363 = vcombine.high %v1355, 0
          %v1364 = vcombine.high %v1362, 0
          %v1367 = vunpack.c.l.s4 1983009808
          %v1368 = vunpack.c.0.s8 %v1367
          %v1369 = vlaneseq
          %v1370 = vshrl.u32 %v1369, 7
          %v1371 = vsub.s32 %v1368, %v1370
          %v1372 = vrot.slane %v1072, %v1371
          %v1375 = vunpack.c.l.s4 1983009808
          %v1376 = vunpack.c.0.s8 %v1375
          %v1377 = vlaneseq
          %v1378 = vshrl.u32 %v1377, 7
          %v1379 = vsub.s32 %v1376, %v1378
          %v1380 = vrot.slane %v1078, %v1379
          %v1381 = vcombine.low %v1372, %v1380
          %v1382 = vcombine.high %v1372, %v1380
          %v1384 = vunpack.c.l.s4 1934713408
          %v1385 = vunpack.c.0.s8 %v1384
          %v1386 = vlaneseq
          %v1387 = vshrl.u32 %v1386, 7
          %v1388 = vsub.s32 %v1385, %v1387
          %v1389 = vrot.slane %v1381, %v1388
          %v1391 = vunpack.c.l.s4 1934713408
          %v1392 = vunpack.c.0.s8 %v1391
          %v1393 = vlaneseq
          %v1394 = vshrl.u32 %v1393, 7
          %v1395 = vsub.s32 %v1392, %v1394
          %v1396 = vrot.slane %v1382, %v1395
          %v1397 = vcombine.high %v1389, 0
          %v1398 = vcombine.high %v1396, 0
          %v1401 = vunpack.c.l.s4 1983009808
          %v1402 = vunpack.c.0.s8 %v1401
          %v1403 = vlaneseq
          %v1404 = vshrl.u32 %v1403, 7
          %v1405 = vsub.s32 %v1402, %v1404
          %v1406 = vrot.slane %v1081, %v1405
          %v1409 = vunpack.c.l.s4 1983009808
          %v1410 = vunpack.c.0.s8 %v1409
          %v1411 = vlaneseq
          %v1412 = vshrl.u32 %v1411, 7
          %v1413 = vsub.s32 %v1410, %v1412
          %v1414 = vrot.slane %v1087, %v1413
          %v1415 = vcombine.low %v1406, %v1414
          %v1416 = vcombine.high %v1406, %v1414
          %v1418 = vunpack.c.l.s4 1934713408
          %v1419 = vunpack.c.0.s8 %v1418
          %v1420 = vlaneseq
          %v1421 = vshrl.u32 %v1420, 7
          %v1422 = vsub.s32 %v1419, %v1421
          %v1423 = vrot.slane %v1415, %v1422
          %v1425 = vunpack.c.l.s4 1934713408
          %v1426 = vunpack.c.0.s8 %v1425
          %v1427 = vlaneseq
          %v1428 = vshrl.u32 %v1427, 7
          %v1429 = vsub.s32 %v1426, %v1428
          %v1430 = vrot.slane %v1416, %v1429
          %v1431 = vcombine.high %v1423, 0
          %v1432 = vcombine.high %v1430, 0
          %v1435 = vunpack.c.l.s4 1983009808
          %v1436 = vunpack.c.0.s8 %v1435
          %v1437 = vlaneseq
          %v1438 = vshrl.u32 %v1437, 7
          %v1439 = vsub.s32 %v1436, %v1438
          %v1440 = vrot.slane %v1084, %v1439
          %v1443 = vunpack.c.l.s4 1983009808
          %v1444 = vunpack.c.0.s8 %v1443
          %v1445 = vlaneseq
          %v1446 = vshrl.u32 %v1445, 7
          %v1447 = vsub.s32 %v1444, %v1446
          %v1448 = vrot.slane %v1090, %v1447
          %v1449 = vcombine.low %v1440, %v1448
          %v1450 = vcombine.high %v1440, %v1448
          %v1452 = vunpack.c.l.s4 1934713408
          %v1453 = vunpack.c.0.s8 %v1452
          %v1454 = vlaneseq
          %v1455 = vshrl.u32 %v1454, 7
          %v1456 = vsub.s32 %v1453, %v1455
          %v1457 = vrot.slane %v1449, %v1456
          %v1459 = vunpack.c.l.s4 1934713408
          %v1460 = vunpack.c.0.s8 %v1459
          %v1461 = vlaneseq
          %v1462 = vshrl.u32 %v1461, 7
          %v1463 = vsub.s32 %v1460, %v1462
          %v1464 = vrot.slane %v1450, %v1463
          %v1465 = vcombine.high %v1457, 0
          %v1466 = vcombine.high %v1464, 0
          %v1469 = vunpack.c.l.s4 1983009808
          %v1470 = vunpack.c.0.s8 %v1469
          %v1471 = vlaneseq
          %v1472 = vshrl.u32 %v1471, 7
          %v1473 = vsub.s32 %v1470, %v1472
          %v1474 = vrot.slane %v1093, %v1473
          %v1477 = vunpack.c.l.s4 1983009808
          %v1478 = vunpack.c.0.s8 %v1477
          %v1479 = vlaneseq
          %v1480 = vshrl.u32 %v1479, 7
          %v1481 = vsub.s32 %v1478, %v1480
          %v1482 = vrot.slane %v1099, %v1481
          %v1483 = vcombine.low %v1474, %v1482
          %v1484 = vcombine.high %v1474, %v1482
          %v1486 = vunpack.c.l.s4 1934713408
          %v1487 = vunpack.c.0.s8 %v1486
          %v1488 = vlaneseq
          %v1489 = vshrl.u32 %v1488, 7
          %v1490 = vsub.s32 %v1487, %v1489
          %v1491 = vrot.slane %v1483, %v1490
          %v1493 = vunpack.c.l.s4 1934713408
          %v1494 = vunpack.c.0.s8 %v1493
          %v1495 = vlaneseq
          %v1496 = vshrl.u32 %v1495, 7
          %v1497 = vsub.s32 %v1494, %v1496
          %v1498 = vrot.slane %v1484, %v1497
          %v1499 = vcombine.high %v1491, 0
          %v1500 = vcombine.high %v1498, 0
          %v1503 = vunpack.c.l.s4 1983009808
          %v1504 = vunpack.c.0.s8 %v1503
          %v1505 = vlaneseq
          %v1506 = vshrl.u32 %v1505, 7
          %v1507 = vsub.s32 %v1504, %v1506
          %v1508 = vrot.slane %v1096, %v1507
          %v1511 = vunpack.c.l.s4 1983009808
          %v1512 = vunpack.c.0.s8 %v1511
          %v1513 = vlaneseq
          %v1514 = vshrl.u32 %v1513, 7
          %v1515 = vsub.s32 %v1512, %v1514
          %v1516 = vrot.slane %v1102, %v1515
          %v1517 = vcombine.low %v1508, %v1516
          %v1518 = vcombine.high %v1508, %v1516
          %v1520 = vunpack.c.l.s4 1934713408
          %v1521 = vunpack.c.0.s8 %v1520
          %v1522 = vlaneseq
          %v1523 = vshrl.u32 %v1522, 7
          %v1524 = vsub.s32 %v1521, %v1523
          %v1525 = vrot.slane %v1517, %v1524
          %v1527 = vunpack.c.l.s4 1934713408
          %v1528 = vunpack.c.0.s8 %v1527
          %v1529 = vlaneseq
          %v1530 = vshrl.u32 %v1529, 7
          %v1531 = vsub.s32 %v1528, %v1530
          %v1532 = vrot.slane %v1518, %v1531
          %v1533 = vcombine.high %v1525, 0
          %v1534 = vcombine.high %v1532, 0
          %v1537 = vunpack.c.l.s4 1983009808
          %v1538 = vunpack.c.0.s8 %v1537
          %v1539 = vlaneseq
          %v1540 = vshrl.u32 %v1539, 7
          %v1541 = vsub.s32 %v1538, %v1540
          %v1542 = vrot.slane %v1105, %v1541
          %v1545 = vunpack.c.l.s4 1983009808
          %v1546 = vunpack.c.0.s8 %v1545
          %v1547 = vlaneseq
          %v1548 = vshrl.u32 %v1547, 7
          %v1549 = vsub.s32 %v1546, %v1548
          %v1550 = vrot.slane %v1111, %v1549
          %v1551 = vcombine.low %v1542, %v1550
          %v1552 = vcombine.high %v1542, %v1550
          %v1554 = vunpack.c.l.s4 1934713408
          %v1555 = vunpack.c.0.s8 %v1554
          %v1556 = vlaneseq
          %v1557 = vshrl.u32 %v1556, 7
          %v1558 = vsub.s32 %v1555, %v1557
          %v1559 = vrot.slane %v1551, %v1558
          %v1561 = vunpack.c.l.s4 1934713408
          %v1562 = vunpack.c.0.s8 %v1561
          %v1563 = vlaneseq
          %v1564 = vshrl.u32 %v1563, 7
          %v1565 = vsub.s32 %v1562, %v1564
          %v1566 = vrot.slane %v1552, %v1565
          %v1567 = vcombine.high %v1559, 0
          %v1568 = vcombine.high %v1566, 0
          %v1571 = vunpack.c.l.s4 1983009808
          %v1572 = vunpack.c.0.s8 %v1571
          %v1573 = vlaneseq
          %v1574 = vshrl.u32 %v1573, 7
          %v1575 = vsub.s32 %v1572, %v1574
          %v1576 = vrot.slane %v1108, %v1575
          %v1579 = vunpack.c.l.s4 1983009808
          %v1580 = vunpack.c.0.s8 %v1579
          %v1581 = vlaneseq
          %v1582 = vshrl.u32 %v1581, 7
          %v1583 = vsub.s32 %v1580, %v1582
          %v1584 = vrot.slane %v1114, %v1583
          %v1585 = vcombine.low %v1576, %v1584
          %v1586 = vcombine.high %v1576, %v1584
          %v1588 = vunpack.c.l.s4 1934713408
          %v1589 = vunpack.c.0.s8 %v1588
          %v1590 = vlaneseq
          %v1591 = vshrl.u32 %v1590, 7
          %v1592 = vsub.s32 %v1589, %v1591
          %v1593 = vrot.slane %v1585, %v1592
          %v1595 = vunpack.c.l.s4 1934713408
          %v1596 = vunpack.c.0.s8 %v1595
          %v1597 = vlaneseq
          %v1598 = vshrl.u32 %v1597, 7
          %v1599 = vsub.s32 %v1596, %v1598
          %v1600 = vrot.slane %v1586, %v1599
          %v1601 = vcombine.high %v1593, 0
          %v1602 = vcombine.high %v1600, 0
          %v1605 = vunpack.c.l.s4 1983009808
          %v1606 = vunpack.c.0.s8 %v1605
          %v1607 = vlaneseq
          %v1608 = vshrl.u32 %v1607, 7
          %v1609 = vsub.s32 %v1606, %v1608
          %v1610 = vrot.slane %v1117, %v1609
          %v1613 = vunpack.c.l.s4 1983009808
          %v1614 = vunpack.c.0.s8 %v1613
          %v1615 = vlaneseq
          %v1616 = vshrl.u32 %v1615, 7
          %v1617 = vsub.s32 %v1614, %v1616
          %v1618 = vrot.slane %v1123, %v1617
          %v1619 = vcombine.low %v1610, %v1618
          %v1620 = vcombine.high %v1610, %v1618
          %v1622 = vunpack.c.l.s4 1934713408
          %v1623 = vunpack.c.0.s8 %v1622
          %v1624 = vlaneseq
          %v1625 = vshrl.u32 %v1624, 7
          %v1626 = vsub.s32 %v1623, %v1625
          %v1627 = vrot.slane %v1619, %v1626
          %v1629 = vunpack.c.l.s4 1934713408
          %v1630 = vunpack.c.0.s8 %v1629
          %v1631 = vlaneseq
          %v1632 = vshrl.u32 %v1631, 7
          %v1633 = vsub.s32 %v1630, %v1632
          %v1634 = vrot.slane %v1620, %v1633
          %v1635 = vcombine.high %v1627, 0
          %v1636 = vcombine.high %v1634, 0
          %v1639 = vunpack.c.l.s4 1983009808
          %v1640 = vunpack.c.0.s8 %v1639
          %v1641 = vlaneseq
          %v1642 = vshrl.u32 %v1641, 7
          %v1643 = vsub.s32 %v1640, %v1642
          %v1644 = vrot.slane %v1120, %v1643
          %v1647 = vunpack.c.l.s4 1983009808
          %v1648 = vunpack.c.0.s8 %v1647
          %v1649 = vlaneseq
          %v1650 = vshrl.u32 %v1649, 7
          %v1651 = vsub.s32 %v1648, %v1650
          %v1652 = vrot.slane %v1126, %v1651
          %v1653 = vcombine.low %v1644, %v1652
          %v1654 = vcombine.high %v1644, %v1652
          %v1656 = vunpack.c.l.s4 1934713408
          %v1657 = vunpack.c.0.s8 %v1656
          %v1658 = vlaneseq
          %v1659 = vshrl.u32 %v1658, 7
          %v1660 = vsub.s32 %v1657, %v1659
          %v1661 = vrot.slane %v1653, %v1660
          %v1663 = vunpack.c.l.s4 1934713408
          %v1664 = vunpack.c.0.s8 %v1663
          %v1665 = vlaneseq
          %v1666 = vshrl.u32 %v1665, 7
          %v1667 = vsub.s32 %v1664, %v1666
          %v1668 = vrot.slane %v1654, %v1667
          %v1669 = vcombine.high %v1661, 0
          %v1670 = vcombine.high %v1668, 0
          %v1671 = vcombine.low %v1151, %v1158
          %v1673 = vunpack.c.l.s4 1983009808
          %v1674 = vunpack.c.0.s8 %v1673
          %v1675 = vlaneseq
          %v1676 = vshrl.u32 %v1675, 7
          %v1677 = vsub.s32 %v1674, %v1676
          %v1678 = vrot.slane %v1671, %v1677
          %v1679 = vcombine.low %v1159, %v1160
          %v1681 = vunpack.c.l.s4 1983009808
          %v1682 = vunpack.c.0.s8 %v1681
          %v1683 = vlaneseq
          %v1684 = vshrl.u32 %v1683, 7
          %v1685 = vsub.s32 %v1682, %v1684
          %v1686 = vrot.slane %v1679, %v1685
          %v1687 = vcombine.low %v1678, %v1686
          %v1689 = vunpack.c.l.s4 1934713408
          %v1690 = vunpack.c.0.s8 %v1689
          %v1691 = vlaneseq
          %v1692 = vshrl.u32 %v1691, 7
          %v1693 = vsub.s32 %v1690, %v1692
          %v1694 = vrot.slane %v1687, %v1693
          %v1695 = vcombine.high %v1694, 0
          %v1696 = vcombine.low %v1185, %v1192
          %v1698 = vunpack.c.l.s4 1983009808
          %v1699 = vunpack.c.0.s8 %v1698
          %v1700 = vlaneseq
          %v1701 = vshrl.u32 %v1700, 7
          %v1702 = vsub.s32 %v1699, %v1701
          %v1703 = vrot.slane %v1696, %v1702
          %v1704 = vcombine.low %v1193, %v1194
          %v1706 = vunpack.c.l.s4 1983009808
          %v1707 = vunpack.c.0.s8 %v1706
          %v1708 = vlaneseq
          %v1709 = vshrl.u32 %v1708, 7
          %v1710 = vsub.s32 %v1707, %v1709
          %v1711 = vrot.slane %v1704, %v1710
          %v1712 = vcombine.low %v1703, %v1711
          %v1714 = vunpack.c.l.s4 1934713408
          %v1715 = vunpack.c.0.s8 %v1714
          %v1716 = vlaneseq
          %v1717 = vshrl.u32 %v1716, 7
          %v1718 = vsub.s32 %v1715, %v1717
          %v1719 = vrot.slane %v1712, %v1718
          %v1720 = vcombine.high %v1719, 0
          %v1721 = vcombine.low %v1219, %v1226
          %v1723 = vunpack.c.l.s4 1983009808
          %v1724 = vunpack.c.0.s8 %v1723
          %v1725 = vlaneseq
          %v1726 = vshrl.u32 %v1725, 7
          %v1727 = vsub.s32 %v1724, %v1726
          %v1728 = vrot.slane %v1721, %v1727
          %v1729 = vcombine.low %v1227, %v1228
          %v1731 = vunpack.c.l.s4 1983009808
          %v1732 = vunpack.c.0.s8 %v1731
          %v1733 = vlaneseq
          %v1734 = vshrl.u32 %v1733, 7
          %v1735 = vsub.s32 %v1732, %v1734
          %v1736 = vrot.slane %v1729, %v1735
          %v1737 = vcombine.low %v1728, %v1736
          %v1739 = vunpack.c.l.s4 1934713408
          %v1740 = vunpack.c.0.s8 %v1739
          %v1741 = vlaneseq
          %v1742 = vshrl.u32 %v1741, 7
          %v1743 = vsub.s32 %v1740, %v1742
          %v1744 = vrot.slane %v1737, %v1743
          %v1745 = vcombine.high %v1744, 0
          %v1746 = vcombine.low %v1253, %v1260
          %v1748 = vunpack.c.l.s4 1983009808
          %v1749 = vunpack.c.0.s8 %v1748
          %v1750 = vlaneseq
          %v1751 = vshrl.u32 %v1750, 7
          %v1752 = vsub.s32 %v1749, %v1751
          %v1753 = vrot.slane %v1746, %v1752
          %v1754 = vcombine.low %v1261, %v1262
          %v1756 = vunpack.c.l.s4 1983009808
          %v1757 = vunpack.c.0.s8 %v1756
          %v1758 = vlaneseq
          %v1759 = vshrl.u32 %v1758, 7
          %v1760 = vsub.s32 %v1757, %v1759
          %v1761 = vrot.slane %v1754, %v1760
          %v1762 = vcombine.low %v1753, %v1761
          %v1764 = vunpack.c.l.s4 1934713408
          %v1765 = vunpack.c.0.s8 %v1764
          %v1766 = vlaneseq
          %v1767 = vshrl.u32 %v1766, 7
          %v1768 = vsub.s32 %v1765, %v1767
          %v1769 = vrot.slane %v1762, %v1768
          %v1770 = vcombine.high %v1769, 0
          %v1771 = vcombine.low %v1287, %v1294
          %v1773 = vunpack.c.l.s4 1983009808
          %v1774 = vunpack.c.0.s8 %v1773
          %v1775 = vlaneseq
          %v1776 = vshrl.u32 %v1775, 7
          %v1777 = vsub.s32 %v1774, %v1776
          %v1778 = vrot.slane %v1771, %v1777
          %v1779 = vcombine.low %v1295, %v1296
          %v1781 = vunpack.c.l.s4 1983009808
          %v1782 = vunpack.c.0.s8 %v1781
          %v1783 = vlaneseq
          %v1784 = vshrl.u32 %v1783, 7
          %v1785 = vsub.s32 %v1782, %v1784
          %v1786 = vrot.slane %v1779, %v1785
          %v1787 = vcombine.low %v1778, %v1786
          %v1789 = vunpack.c.l.s4 1934713408
          %v1790 = vunpack.c.0.s8 %v1789
          %v1791 = vlaneseq
          %v1792 = vshrl.u32 %v1791, 7
          %v1793 = vsub.s32 %v1790, %v1792
          %v1794 = vrot.slane %v1787, %v1793
          %v1795 = vcombine.high %v1794, 0
          %v1796 = vcombine.low %v1321, %v1328
          %v1798 = vunpack.c.l.s4 1983009808
          %v1799 = vunpack.c.0.s8 %v1798
          %v1800 = vlaneseq
          %v1801 = vshrl.u32 %v1800, 7
          %v1802 = vsub.s32 %v1799, %v1801
          %v1803 = vrot.slane %v1796, %v1802
          %v1804 = vcombine.low %v1329, %v1330
          %v1806 = vunpack.c.l.s4 1983009808
          %v1807 = vunpack.c.0.s8 %v1806
          %v1808 = vlaneseq
          %v1809 = vshrl.u32 %v1808, 7
          %v1810 = vsub.s32 %v1807, %v1809
          %v1811 = vrot.slane %v1804, %v1810
          %v1812 = vcombine.low %v1803, %v1811
          %v1814 = vunpack.c.l.s4 1934713408
          %v1815 = vunpack.c.0.s8 %v1814
          %v1816 = vlaneseq
          %v1817 = vshrl.u32 %v1816, 7
          %v1818 = vsub.s32 %v1815, %v1817
          %v1819 = vrot.slane %v1812, %v1818
          %v1820 = vcombine.high %v1819, 0
          %v1821 = vcombine.low %v1355, %v1362
          %v1823 = vunpack.c.l.s4 1983009808
          %v1824 = vunpack.c.0.s8 %v1823
          %v1825 = vlaneseq
          %v1826 = vshrl.u32 %v1825, 7
          %v1827 = vsub.s32 %v1824, %v1826
          %v1828 = vrot.slane %v1821, %v1827
          %v1829 = vcombine.low %v1363, %v1364
          %v1831 = vunpack.c.l.s4 1983009808
          %v1832 = vunpack.c.0.s8 %v1831
          %v1833 = vlaneseq
          %v1834 = vshrl.u32 %v1833, 7
          %v1835 = vsub.s32 %v1832, %v1834
          %v1836 = vrot.slane %v1829, %v1835
          %v1837 = vcombine.low %v1828, %v1836
          %v1839 = vunpack.c.l.s4 1934713408
          %v1840 = vunpack.c.0.s8 %v1839
          %v1841 = vlaneseq
          %v1842 = vshrl.u32 %v1841, 7
          %v1843 = vsub.s32 %v1840, %v1842
          %v1844 = vrot.slane %v1837, %v1843
          %v1845 = vcombine.high %v1844, 0
          %v1846 = vcombine.low %v1389, %v1396
          %v1848 = vunpack.c.l.s4 1983009808
          %v1849 = vunpack.c.0.s8 %v1848
          %v1850 = vlaneseq
          %v1851 = vshrl.u32 %v1850, 7
          %v1852 = vsub.s32 %v1849, %v1851
          %v1853 = vrot.slane %v1846, %v1852
          %v1854 = vcombine.low %v1397, %v1398
          %v1856 = vunpack.c.l.s4 1983009808
          %v1857 = vunpack.c.0.s8 %v1856
          %v1858 = vlaneseq
          %v1859 = vshrl.u32 %v1858, 7
          %v1860 = vsub.s32 %v1857, %v1859
          %v1861 = vrot.slane %v1854, %v1860
          %v1862 = vcombine.low %v1853, %v1861
          %v1864 = vunpack.c.l.s4 1934713408
          %v1865 = vunpack.c.0.s8 %v1864
          %v1866 = vlaneseq
          %v1867 = vshrl.u32 %v1866, 7
          %v1868 = vsub.s32 %v1865, %v1867
          %v1869 = vrot.slane %v1862, %v1868
          %v1870 = vcombine.high %v1869, 0
          %v1871 = vcombine.low %v1423, %v1430
          %v1873 = vunpack.c.l.s4 1983009808
          %v1874 = vunpack.c.0.s8 %v1873
          %v1875 = vlaneseq
          %v1876 = vshrl.u32 %v1875, 7
          %v1877 = vsub.s32 %v1874, %v1876
          %v1878 = vrot.slane %v1871, %v1877
          %v1879 = vcombine.low %v1431, %v1432
          %v1881 = vunpack.c.l.s4 1983009808
          %v1882 = vunpack.c.0.s8 %v1881
          %v1883 = vlaneseq
          %v1884 = vshrl.u32 %v1883, 7
          %v1885 = vsub.s32 %v1882, %v1884
          %v1886 = vrot.slane %v1879, %v1885
          %v1887 = vcombine.low %v1878, %v1886
          %v1889 = vunpack.c.l.s4 1934713408
          %v1890 = vunpack.c.0.s8 %v1889
          %v1891 = vlaneseq
          %v1892 = vshrl.u32 %v1891, 7
          %v1893 = vsub.s32 %v1890, %v1892
          %v1894 = vrot.slane %v1887, %v1893
          %v1895 = vcombine.high %v1894, 0
          %v1896 = vcombine.low %v1457, %v1464
          %v1898 = vunpack.c.l.s4 1983009808
          %v1899 = vunpack.c.0.s8 %v1898
          %v1900 = vlaneseq
          %v1901 = vshrl.u32 %v1900, 7
          %v1902 = vsub.s32 %v1899, %v1901
          %v1903 = vrot.slane %v1896, %v1902
          %v1904 = vcombine.low %v1465, %v1466
          %v1906 = vunpack.c.l.s4 1983009808
          %v1907 = vunpack.c.0.s8 %v1906
          %v1908 = vlaneseq
          %v1909 = vshrl.u32 %v1908, 7
          %v1910 = vsub.s32 %v1907, %v1909
          %v1911 = vrot.slane %v1904, %v1910
          %v1912 = vcombine.low %v1903, %v1911
          %v1914 = vunpack.c.l.s4 1934713408
          %v1915 = vunpack.c.0.s8 %v1914
          %v1916 = vlaneseq
          %v1917 = vshrl.u32 %v1916, 7
          %v1918 = vsub.s32 %v1915, %v1917
          %v1919 = vrot.slane %v1912, %v1918
          %v1920 = vcombine.high %v1919, 0
          %v1921 = vcombine.low %v1491, %v1498
          %v1923 = vunpack.c.l.s4 1983009808
          %v1924 = vunpack.c.0.s8 %v1923
          %v1925 = vlaneseq
          %v1926 = vshrl.u32 %v1925, 7
          %v1927 = vsub.s32 %v1924, %v1926
          %v1928 = vrot.slane %v1921, %v1927
          %v1929 = vcombine.low %v1499, %v1500
          %v1931 = vunpack.c.l.s4 1983009808
          %v1932 = vunpack.c.0.s8 %v1931
          %v1933 = vlaneseq
          %v1934 = vshrl.u32 %v1933, 7
          %v1935 = vsub.s32 %v1932, %v1934
          %v1936 = vrot.slane %v1929, %v1935
          %v1937 = vcombine.low %v1928, %v1936
          %v1939 = vunpack.c.l.s4 1934713408
          %v1940 = vunpack.c.0.s8 %v1939
          %v1941 = vlaneseq
          %v1942 = vshrl.u32 %v1941, 7
          %v1943 = vsub.s32 %v1940, %v1942
          %v1944 = vrot.slane %v1937, %v1943
          %v1945 = vcombine.high %v1944, 0
          %v1946 = vcombine.low %v1525, %v1532
          %v1948 = vunpack.c.l.s4 1983009808
          %v1949 = vunpack.c.0.s8 %v1948
          %v1950 = vlaneseq
          %v1951 = vshrl.u32 %v1950, 7
          %v1952 = vsub.s32 %v1949, %v1951
          %v1953 = vrot.slane %v1946, %v1952
          %v1954 = vcombine.low %v1533, %v1534
          %v1956 = vunpack.c.l.s4 1983009808
          %v1957 = vunpack.c.0.s8 %v1956
          %v1958 = vlaneseq
          %v1959 = vshrl.u32 %v1958, 7
          %v1960 = vsub.s32 %v1957, %v1959
          %v1961 = vrot.slane %v1954, %v1960
          %v1962 = vcombine.low %v1953, %v1961
          %v1964 = vunpack.c.l.s4 1934713408
          %v1965 = vunpack.c.0.s8 %v1964
          %v1966 = vlaneseq
          %v1967 = vshrl.u32 %v1966, 7
          %v1968 = vsub.s32 %v1965, %v1967
          %v1969 = vrot.slane %v1962, %v1968
          %v1970 = vcombine.high %v1969, 0
          %v1971 = vcombine.low %v1559, %v1566
          %v1973 = vunpack.c.l.s4 1983009808
          %v1974 = vunpack.c.0.s8 %v1973
          %v1975 = vlaneseq
          %v1976 = vshrl.u32 %v1975, 7
          %v1977 = vsub.s32 %v1974, %v1976
          %v1978 = vrot.slane %v1971, %v1977
          %v1979 = vcombine.low %v1567, %v1568
          %v1981 = vunpack.c.l.s4 1983009808
          %v1982 = vunpack.c.0.s8 %v1981
          %v1983 = vlaneseq
          %v1984 = vshrl.u32 %v1983, 7
          %v1985 = vsub.s32 %v1982, %v1984
          %v1986 = vrot.slane %v1979, %v1985
          %v1987 = vcombine.low %v1978, %v1986
          %v1989 = vunpack.c.l.s4 1934713408
          %v1990 = vunpack.c.0.s8 %v1989
          %v1991 = vlaneseq
          %v1992 = vshrl.u32 %v1991, 7
          %v1993 = vsub.s32 %v1990, %v1992
          %v1994 = vrot.slane %v1987, %v1993
          %v1995 = vcombine.high %v1994, 0
          %v1996 = vcombine.low %v1593, %v1600
          %v1998 = vunpack.c.l.s4 1983009808
          %v1999 = vunpack.c.0.s8 %v1998
          %v2000 = vlaneseq
          %v2001 = vshrl.u32 %v2000, 7
          %v2002 = vsub.s32 %v1999, %v2001
          %v2003 = vrot.slane %v1996, %v2002
          %v2004 = vcombine.low %v1601, %v1602
          %v2006 = vunpack.c.l.s4 1983009808
          %v2007 = vunpack.c.0.s8 %v2006
          %v2008 = vlaneseq
          %v2009 = vshrl.u32 %v2008, 7
          %v2010 = vsub.s32 %v2007, %v2009
          %v2011 = vrot.slane %v2004, %v2010
          %v2012 = vcombine.low %v2003, %v2011
          %v2014 = vunpack.c.l.s4 1934713408
          %v2015 = vunpack.c.0.s8 %v2014
          %v2016 = vlaneseq
          %v2017 = vshrl.u32 %v2016, 7
          %v2018 = vsub.s32 %v2015, %v2017
          %v2019 = vrot.slane %v2012, %v2018
          %v2020 = vcombine.high %v2019, 0
          %v2021 = vcombine.low %v1627, %v1634
          %v2023 = vunpack.c.l.s4 1983009808
          %v2024 = vunpack.c.0.s8 %v2023
          %v2025 = vlaneseq
          %v2026 = vshrl.u32 %v2025, 7
          %v2027 = vsub.s32 %v2024, %v2026
          %v2028 = vrot.slane %v2021, %v2027
          %v2029 = vcombine.low %v1635, %v1636
          %v2031 = vunpack.c.l.s4 1983009808
          %v2032 = vunpack.c.0.s8 %v2031
          %v2033 = vlaneseq
          %v2034 = vshrl.u32 %v2033, 7
          %v2035 = vsub.s32 %v2032, %v2034
          %v2036 = vrot.slane %v2029, %v2035
          %v2037 = vcombine.low %v2028, %v2036
          %v2039 = vunpack.c.l.s4 1934713408
          %v2040 = vunpack.c.0.s8 %v2039
          %v2041 = vlaneseq
          %v2042 = vshrl.u32 %v2041, 7
          %v2043 = vsub.s32 %v2040, %v2042
          %v2044 = vrot.slane %v2037, %v2043
          %v2045 = vcombine.high %v2044, 0
          %v2046 = vcombine.low %v1661, %v1668
          %v2048 = vunpack.c.l.s4 1983009808
          %v2049 = vunpack.c.0.s8 %v2048
          %v2050 = vlaneseq
          %v2051 = vshrl.u32 %v2050, 7
          %v2052 = vsub.s32 %v2049, %v2051
          %v2053 = vrot.slane %v2046, %v2052
          %v2054 = vcombine.low %v1669, %v1670
          %v2056 = vunpack.c.l.s4 1983009808
          %v2057 = vunpack.c.0.s8 %v2056
          %v2058 = vlaneseq
          %v2059 = vshrl.u32 %v2058, 7
          %v2060 = vsub.s32 %v2057, %v2059
          %v2061 = vrot.slane %v2054, %v2060
          %v2062 = vcombine.low %v2053, %v2061
          %v2064 = vunpack.c.l.s4 1934713408
          %v2065 = vunpack.c.0.s8 %v2064
          %v2066 = vlaneseq
          %v2067 = vshrl.u32 %v2066, 7
          %v2068 = vsub.s32 %v2065, %v2067
          %v2069 = vrot.slane %v2062, %v2068
          %v2070 = vcombine.high %v2069, 0
          %v2073 = vpack.i.b16 %v1719, %v1694
          %v2074 = vshrl.u32 %v1694, 16
          %v2075 = vshrl.u32 %v1719, 16
          %v2076 = vpack.i.b16 %v2075, %v2074
          %v2079 = vpack.i.b16 %v1720, %v1695
          %v2080 = vshrl.u32 %v1695, 16
          %v2081 = vshrl.u32 %v1720, 16
          %v2082 = vpack.i.b16 %v2081, %v2080
          %v2085 = vpack.i.b16 %v1769, %v1744
          %v2086 = vshrl.u32 %v1744, 16
          %v2087 = vshrl.u32 %v1769, 16
          %v2088 = vpack.i.b16 %v2087, %v2086
          %v2091 = vpack.i.b16 %v1770, %v1745
          %v2092 = vshrl.u32 %v1745, 16
          %v2093 = vshrl.u32 %v1770, 16
          %v2094 = vpack.i.b16 %v2093, %v2092
          %v2097 = vpack.i.b16 %v1819, %v1794
          %v2098 = vshrl.u32 %v1794, 16
          %v2099 = vshrl.u32 %v1819, 16
          %v2100 = vpack.i.b16 %v2099, %v2098
          %v2103 = vpack.i.b16 %v1820, %v1795
          %v2104 = vshrl.u32 %v1795, 16
          %v2105 = vshrl.u32 %v1820, 16
          %v2106 = vpack.i.b16 %v2105, %v2104
          %v2109 = vpack.i.b16 %v1869, %v1844
          %v2110 = vshrl.u32 %v1844, 16
          %v2111 = vshrl.u32 %v1869, 16
          %v2112 = vpack.i.b16 %v2111, %v2110
          %v2115 = vpack.i.b16 %v1870, %v1845
          %v2116 = vshrl.u32 %v1845, 16
          %v2117 = vshrl.u32 %v1870, 16
          %v2118 = vpack.i.b16 %v2117, %v2116
          %v2121 = vpack.i.b16 %v1919, %v1894
          %v2122 = vshrl.u32 %v1894, 16
          %v2123 = vshrl.u32 %v1919, 16
          %v2124 = vpack.i.b16 %v2123, %v2122
          %v2127 = vpack.i.b16 %v1920, %v1895
          %v2128 = vshrl.u32 %v1895, 16
          %v2129 = vshrl.u32 %v1920, 16
          %v2130 = vpack.i.b16 %v2129, %v2128
          %v2133 = vpack.i.b16 %v1969, %v1944
          %v2134 = vshrl.u32 %v1944, 16
          %v2135 = vshrl.u32 %v1969, 16
          %v2136 = vpack.i.b16 %v2135, %v2134
          %v2139 = vpack.i.b16 %v1970, %v1945
          %v2140 = vshrl.u32 %v1945, 16
          %v2141 = vshrl.u32 %v1970, 16
          %v2142 = vpack.i.b16 %v2141, %v2140
          %v2145 = vpack.i.b16 %v2019, %v1994
          %v2146 = vshrl.u32 %v1994, 16
          %v2147 = vshrl.u32 %v2019, 16
          %v2148 = vpack.i.b16 %v2147, %v2146
          %v2151 = vpack.i.b16 %v2020, %v1995
          %v2152 = vshrl.u32 %v1995, 16
          %v2153 = vshrl.u32 %v2020, 16
          %v2154 = vpack.i.b16 %v2153, %v2152
          %v2157 = vpack.i.b16 %v2069, %v2044
          %v2158 = vshrl.u32 %v2044, 16
          %v2159 = vshrl.u32 %v2069, 16
          %v2160 = vpack.i.b16 %v2159, %v2158
          %v2163 = vpack.i.b16 %v2070, %v2045
          %v2164 = vshrl.u32 %v2045, 16
          %v2165 = vshrl.u32 %v2070, 16
          %v2166 = vpack.i.b16 %v2165, %v2164
          %2175 = vrot.lane.b32.xlu0 %v669, 112
          %v2176 = vpop.permute.xlu0 %2175
          %2177 = vrot.lane.b32.xlu0 %v670, 112
          %v2178 = vpop.permute.xlu0 %2177
          %2179 = vrot.lane.b32.xlu0 %v671, 112
          %v2180 = vpop.permute.xlu0 %2179
          %2181 = vrot.lane.b32.xlu0 %v672, 112
          %v2182 = vpop.permute.xlu0 %2181
          %2183 = vrot.lane.b32.xlu0 %v673, 112
          %v2184 = vpop.permute.xlu0 %2183
          %2185 = vrot.lane.b32.xlu0 %v674, 112
          %v2186 = vpop.permute.xlu0 %2185
          %2187 = vrot.lane.b32.xlu0 %v675, 112
          %v2188 = vpop.permute.xlu0 %2187
          %2189 = vrot.lane.b32.xlu0 %v676, 112
          %v2190 = vpop.permute.xlu0 %2189
          %2191 = vrot.lane.b32.xlu0 %v669, 96
          %v2192 = vpop.permute.xlu0 %2191
          %2193 = vrot.lane.b32.xlu0 %v670, 96
          %v2194 = vpop.permute.xlu0 %2193
          %2195 = vrot.lane.b32.xlu0 %v671, 96
          %v2196 = vpop.permute.xlu0 %2195
          %2197 = vrot.lane.b32.xlu0 %v672, 96
          %v2198 = vpop.permute.xlu0 %2197
          %2199 = vrot.lane.b32.xlu0 %v673, 96
          %v2200 = vpop.permute.xlu0 %2199
          %2201 = vrot.lane.b32.xlu0 %v674, 96
          %v2202 = vpop.permute.xlu0 %2201
          %2203 = vrot.lane.b32.xlu0 %v675, 96
          %v2204 = vpop.permute.xlu0 %2203
          %2205 = vrot.lane.b32.xlu0 %v676, 96
          %v2206 = vpop.permute.xlu0 %2205
          %2207 = vrot.lane.b32.xlu0 %v669, 80
          %v2208 = vpop.permute.xlu0 %2207
          %2209 = vrot.lane.b32.xlu0 %v670, 80
          %v2210 = vpop.permute.xlu0 %2209
          %2211 = vrot.lane.b32.xlu0 %v671, 80
          %v2212 = vpop.permute.xlu0 %2211
          %2213 = vrot.lane.b32.xlu0 %v672, 80
          %v2214 = vpop.permute.xlu0 %2213
          %2215 = vrot.lane.b32.xlu0 %v673, 80
          %v2216 = vpop.permute.xlu0 %2215
          %2217 = vrot.lane.b32.xlu0 %v674, 80
          %v2218 = vpop.permute.xlu0 %2217
          %2219 = vrot.lane.b32.xlu0 %v675, 80
          %v2220 = vpop.permute.xlu0 %2219
          %2221 = vrot.lane.b32.xlu0 %v676, 80
          %v2222 = vpop.permute.xlu0 %2221
          %v2225 = vpack.i.b16 %v2176, %v669
          %v2226 = vshrl.u32 %v669, 16
          %v2227 = vshrl.u32 %v2176, 16
          %v2228 = vpack.i.b16 %v2227, %v2226
          %v2231 = vpack.i.b16 %v2208, %v2192
          %v2232 = vshrl.u32 %v2192, 16
          %v2233 = vshrl.u32 %v2208, 16
          %v2234 = vpack.i.b16 %v2233, %v2232
          %v2237 = vpack.i.b16 %v2178, %v670
          %v2238 = vshrl.u32 %v670, 16
          %v2239 = vshrl.u32 %v2178, 16
          %v2240 = vpack.i.b16 %v2239, %v2238
          %v2243 = vpack.i.b16 %v2210, %v2194
          %v2244 = vshrl.u32 %v2194, 16
          %v2245 = vshrl.u32 %v2210, 16
          %v2246 = vpack.i.b16 %v2245, %v2244
          %v2249 = vpack.i.b16 %v2180, %v671
          %v2250 = vshrl.u32 %v671, 16
          %v2251 = vshrl.u32 %v2180, 16
          %v2252 = vpack.i.b16 %v2251, %v2250
          %v2255 = vpack.i.b16 %v2212, %v2196
          %v2256 = vshrl.u32 %v2196, 16
          %v2257 = vshrl.u32 %v2212, 16
          %v2258 = vpack.i.b16 %v2257, %v2256
          %v2261 = vpack.i.b16 %v2182, %v672
          %v2262 = vshrl.u32 %v672, 16
          %v2263 = vshrl.u32 %v2182, 16
          %v2264 = vpack.i.b16 %v2263, %v2262
          %v2267 = vpack.i.b16 %v2214, %v2198
          %v2268 = vshrl.u32 %v2198, 16
          %v2269 = vshrl.u32 %v2214, 16
          %v2270 = vpack.i.b16 %v2269, %v2268
          %v2273 = vpack.i.b16 %v2184, %v673
          %v2274 = vshrl.u32 %v673, 16
          %v2275 = vshrl.u32 %v2184, 16
          %v2276 = vpack.i.b16 %v2275, %v2274
          %v2279 = vpack.i.b16 %v2216, %v2200
          %v2280 = vshrl.u32 %v2200, 16
          %v2281 = vshrl.u32 %v2216, 16
          %v2282 = vpack.i.b16 %v2281, %v2280
          %v2285 = vpack.i.b16 %v2186, %v674
          %v2286 = vshrl.u32 %v674, 16
          %v2287 = vshrl.u32 %v2186, 16
          %v2288 = vpack.i.b16 %v2287, %v2286
          %v2291 = vpack.i.b16 %v2218, %v2202
          %v2292 = vshrl.u32 %v2202, 16
          %v2293 = vshrl.u32 %v2218, 16
          %v2294 = vpack.i.b16 %v2293, %v2292
          %v2297 = vpack.i.b16 %v2188, %v675
          %v2298 = vshrl.u32 %v675, 16
          %v2299 = vshrl.u32 %v2188, 16
          %v2300 = vpack.i.b16 %v2299, %v2298
          %v2303 = vpack.i.b16 %v2220, %v2204
          %v2304 = vshrl.u32 %v2204, 16
          %v2305 = vshrl.u32 %v2220, 16
          %v2306 = vpack.i.b16 %v2305, %v2304
          %v2309 = vpack.i.b16 %v2190, %v676
          %v2310 = vshrl.u32 %v676, 16
          %v2311 = vshrl.u32 %v2190, 16
          %v2312 = vpack.i.b16 %v2311, %v2310
          %v2315 = vpack.i.b16 %v2222, %v2206
          %v2316 = vshrl.u32 %v2206, 16
          %v2317 = vshrl.u32 %v2222, 16
          %v2318 = vpack.i.b16 %v2317, %v2316
          %v2321 = vunpack.c.l.s4 1983009808
          %v2322 = vunpack.c.0.s8 %v2321
          %v2323 = vlaneseq
          %v2324 = vshrl.u32 %v2323, 7
          %v2325 = vsub.s32 %v2322, %v2324
          %v2326 = vrot.slane %v2225, %v2325
          %v2329 = vunpack.c.l.s4 1983009808
          %v2330 = vunpack.c.0.s8 %v2329
          %v2331 = vlaneseq
          %v2332 = vshrl.u32 %v2331, 7
          %v2333 = vsub.s32 %v2330, %v2332
          %v2334 = vrot.slane %v2231, %v2333
          %v2335 = vcombine.low %v2326, %v2334
          %v2336 = vcombine.high %v2326, %v2334
          %v2338 = vunpack.c.l.s4 1934713408
          %v2339 = vunpack.c.0.s8 %v2338
          %v2340 = vlaneseq
          %v2341 = vshrl.u32 %v2340, 7
          %v2342 = vsub.s32 %v2339, %v2341
          %v2343 = vrot.slane %v2335, %v2342
          %v2345 = vunpack.c.l.s4 1934713408
          %v2346 = vunpack.c.0.s8 %v2345
          %v2347 = vlaneseq
          %v2348 = vshrl.u32 %v2347, 7
          %v2349 = vsub.s32 %v2346, %v2348
          %v2350 = vrot.slane %v2336, %v2349
          %v2351 = vcombine.high %v2343, 0
          %v2352 = vcombine.high %v2350, 0
          %v2355 = vunpack.c.l.s4 1983009808
          %v2356 = vunpack.c.0.s8 %v2355
          %v2357 = vlaneseq
          %v2358 = vshrl.u32 %v2357, 7
          %v2359 = vsub.s32 %v2356, %v2358
          %v2360 = vrot.slane %v2228, %v2359
          %v2363 = vunpack.c.l.s4 1983009808
          %v2364 = vunpack.c.0.s8 %v2363
          %v2365 = vlaneseq
          %v2366 = vshrl.u32 %v2365, 7
          %v2367 = vsub.s32 %v2364, %v2366
          %v2368 = vrot.slane %v2234, %v2367
          %v2369 = vcombine.low %v2360, %v2368
          %v2370 = vcombine.high %v2360, %v2368
          %v2372 = vunpack.c.l.s4 1934713408
          %v2373 = vunpack.c.0.s8 %v2372
          %v2374 = vlaneseq
          %v2375 = vshrl.u32 %v2374, 7
          %v2376 = vsub.s32 %v2373, %v2375
          %v2377 = vrot.slane %v2369, %v2376
          %v2379 = vunpack.c.l.s4 1934713408
          %v2380 = vunpack.c.0.s8 %v2379
          %v2381 = vlaneseq
          %v2382 = vshrl.u32 %v2381, 7
          %v2383 = vsub.s32 %v2380, %v2382
          %v2384 = vrot.slane %v2370, %v2383
          %v2385 = vcombine.high %v2377, 0
          %v2386 = vcombine.high %v2384, 0
          %v2389 = vunpack.c.l.s4 1983009808
          %v2390 = vunpack.c.0.s8 %v2389
          %v2391 = vlaneseq
          %v2392 = vshrl.u32 %v2391, 7
          %v2393 = vsub.s32 %v2390, %v2392
          %v2394 = vrot.slane %v2237, %v2393
          %v2397 = vunpack.c.l.s4 1983009808
          %v2398 = vunpack.c.0.s8 %v2397
          %v2399 = vlaneseq
          %v2400 = vshrl.u32 %v2399, 7
          %v2401 = vsub.s32 %v2398, %v2400
          %v2402 = vrot.slane %v2243, %v2401
          %v2403 = vcombine.low %v2394, %v2402
          %v2404 = vcombine.high %v2394, %v2402
          %v2406 = vunpack.c.l.s4 1934713408
          %v2407 = vunpack.c.0.s8 %v2406
          %v2408 = vlaneseq
          %v2409 = vshrl.u32 %v2408, 7
          %v2410 = vsub.s32 %v2407, %v2409
          %v2411 = vrot.slane %v2403, %v2410
          %v2413 = vunpack.c.l.s4 1934713408
          %v2414 = vunpack.c.0.s8 %v2413
          %v2415 = vlaneseq
          %v2416 = vshrl.u32 %v2415, 7
          %v2417 = vsub.s32 %v2414, %v2416
          %v2418 = vrot.slane %v2404, %v2417
          %v2419 = vcombine.high %v2411, 0
          %v2420 = vcombine.high %v2418, 0
          %v2423 = vunpack.c.l.s4 1983009808
          %v2424 = vunpack.c.0.s8 %v2423
          %v2425 = vlaneseq
          %v2426 = vshrl.u32 %v2425, 7
          %v2427 = vsub.s32 %v2424, %v2426
          %v2428 = vrot.slane %v2240, %v2427
          %v2431 = vunpack.c.l.s4 1983009808
          %v2432 = vunpack.c.0.s8 %v2431
          %v2433 = vlaneseq
          %v2434 = vshrl.u32 %v2433, 7
          %v2435 = vsub.s32 %v2432, %v2434
          %v2436 = vrot.slane %v2246, %v2435
          %v2437 = vcombine.low %v2428, %v2436
          %v2438 = vcombine.high %v2428, %v2436
          %v2440 = vunpack.c.l.s4 1934713408
          %v2441 = vunpack.c.0.s8 %v2440
          %v2442 = vlaneseq
          %v2443 = vshrl.u32 %v2442, 7
          %v2444 = vsub.s32 %v2441, %v2443
          %v2445 = vrot.slane %v2437, %v2444
          %v2447 = vunpack.c.l.s4 1934713408
          %v2448 = vunpack.c.0.s8 %v2447
          %v2449 = vlaneseq
          %v2450 = vshrl.u32 %v2449, 7
          %v2451 = vsub.s32 %v2448, %v2450
          %v2452 = vrot.slane %v2438, %v2451
          %v2453 = vcombine.high %v2445, 0
          %v2454 = vcombine.high %v2452, 0
          %v2457 = vunpack.c.l.s4 1983009808
          %v2458 = vunpack.c.0.s8 %v2457
          %v2459 = vlaneseq
          %v2460 = vshrl.u32 %v2459, 7
          %v2461 = vsub.s32 %v2458, %v2460
          %v2462 = vrot.slane %v2249, %v2461
          %v2465 = vunpack.c.l.s4 1983009808
          %v2466 = vunpack.c.0.s8 %v2465
          %v2467 = vlaneseq
          %v2468 = vshrl.u32 %v2467, 7
          %v2469 = vsub.s32 %v2466, %v2468
          %v2470 = vrot.slane %v2255, %v2469
          %v2471 = vcombine.low %v2462, %v2470
          %v2472 = vcombine.high %v2462, %v2470
          %v2474 = vunpack.c.l.s4 1934713408
          %v2475 = vunpack.c.0.s8 %v2474
          %v2476 = vlaneseq
          %v2477 = vshrl.u32 %v2476, 7
          %v2478 = vsub.s32 %v2475, %v2477
          %v2479 = vrot.slane %v2471, %v2478
          %v2481 = vunpack.c.l.s4 1934713408
          %v2482 = vunpack.c.0.s8 %v2481
          %v2483 = vlaneseq
          %v2484 = vshrl.u32 %v2483, 7
          %v2485 = vsub.s32 %v2482, %v2484
          %v2486 = vrot.slane %v2472, %v2485
          %v2487 = vcombine.high %v2479, 0
          %v2488 = vcombine.high %v2486, 0
          %v2491 = vunpack.c.l.s4 1983009808
          %v2492 = vunpack.c.0.s8 %v2491
          %v2493 = vlaneseq
          %v2494 = vshrl.u32 %v2493, 7
          %v2495 = vsub.s32 %v2492, %v2494
          %v2496 = vrot.slane %v2252, %v2495
          %v2499 = vunpack.c.l.s4 1983009808
          %v2500 = vunpack.c.0.s8 %v2499
          %v2501 = vlaneseq
          %v2502 = vshrl.u32 %v2501, 7
          %v2503 = vsub.s32 %v2500, %v2502
          %v2504 = vrot.slane %v2258, %v2503
          %v2505 = vcombine.low %v2496, %v2504
          %v2506 = vcombine.high %v2496, %v2504
          %v2508 = vunpack.c.l.s4 1934713408
          %v2509 = vunpack.c.0.s8 %v2508
          %v2510 = vlaneseq
          %v2511 = vshrl.u32 %v2510, 7
          %v2512 = vsub.s32 %v2509, %v2511
          %v2513 = vrot.slane %v2505, %v2512
          %v2515 = vunpack.c.l.s4 1934713408
          %v2516 = vunpack.c.0.s8 %v2515
          %v2517 = vlaneseq
          %v2518 = vshrl.u32 %v2517, 7
          %v2519 = vsub.s32 %v2516, %v2518
          %v2520 = vrot.slane %v2506, %v2519
          %v2521 = vcombine.high %v2513, 0
          %v2522 = vcombine.high %v2520, 0
          %v2525 = vunpack.c.l.s4 1983009808
          %v2526 = vunpack.c.0.s8 %v2525
          %v2527 = vlaneseq
          %v2528 = vshrl.u32 %v2527, 7
          %v2529 = vsub.s32 %v2526, %v2528
          %v2530 = vrot.slane %v2261, %v2529
          %v2533 = vunpack.c.l.s4 1983009808
          %v2534 = vunpack.c.0.s8 %v2533
          %v2535 = vlaneseq
          %v2536 = vshrl.u32 %v2535, 7
          %v2537 = vsub.s32 %v2534, %v2536
          %v2538 = vrot.slane %v2267, %v2537
          %v2539 = vcombine.low %v2530, %v2538
          %v2540 = vcombine.high %v2530, %v2538
          %v2542 = vunpack.c.l.s4 1934713408
          %v2543 = vunpack.c.0.s8 %v2542
          %v2544 = vlaneseq
          %v2545 = vshrl.u32 %v2544, 7
          %v2546 = vsub.s32 %v2543, %v2545
          %v2547 = vrot.slane %v2539, %v2546
          %v2549 = vunpack.c.l.s4 1934713408
          %v2550 = vunpack.c.0.s8 %v2549
          %v2551 = vlaneseq
          %v2552 = vshrl.u32 %v2551, 7
          %v2553 = vsub.s32 %v2550, %v2552
          %v2554 = vrot.slane %v2540, %v2553
          %v2555 = vcombine.high %v2547, 0
          %v2556 = vcombine.high %v2554, 0
          %v2559 = vunpack.c.l.s4 1983009808
          %v2560 = vunpack.c.0.s8 %v2559
          %v2561 = vlaneseq
          %v2562 = vshrl.u32 %v2561, 7
          %v2563 = vsub.s32 %v2560, %v2562
          %v2564 = vrot.slane %v2264, %v2563
          %v2567 = vunpack.c.l.s4 1983009808
          %v2568 = vunpack.c.0.s8 %v2567
          %v2569 = vlaneseq
          %v2570 = vshrl.u32 %v2569, 7
          %v2571 = vsub.s32 %v2568, %v2570
          %v2572 = vrot.slane %v2270, %v2571
          %v2573 = vcombine.low %v2564, %v2572
          %v2574 = vcombine.high %v2564, %v2572
          %v2576 = vunpack.c.l.s4 1934713408
          %v2577 = vunpack.c.0.s8 %v2576
          %v2578 = vlaneseq
          %v2579 = vshrl.u32 %v2578, 7
          %v2580 = vsub.s32 %v2577, %v2579
          %v2581 = vrot.slane %v2573, %v2580
          %v2583 = vunpack.c.l.s4 1934713408
          %v2584 = vunpack.c.0.s8 %v2583
          %v2585 = vlaneseq
          %v2586 = vshrl.u32 %v2585, 7
          %v2587 = vsub.s32 %v2584, %v2586
          %v2588 = vrot.slane %v2574, %v2587
          %v2589 = vcombine.high %v2581, 0
          %v2590 = vcombine.high %v2588, 0
          %v2593 = vunpack.c.l.s4 1983009808
          %v2594 = vunpack.c.0.s8 %v2593
          %v2595 = vlaneseq
          %v2596 = vshrl.u32 %v2595, 7
          %v2597 = vsub.s32 %v2594, %v2596
          %v2598 = vrot.slane %v2273, %v2597
          %v2601 = vunpack.c.l.s4 1983009808
          %v2602 = vunpack.c.0.s8 %v2601
          %v2603 = vlaneseq
          %v2604 = vshrl.u32 %v2603, 7
          %v2605 = vsub.s32 %v2602, %v2604
          %v2606 = vrot.slane %v2279, %v2605
          %v2607 = vcombine.low %v2598, %v2606
          %v2608 = vcombine.high %v2598, %v2606
          %v2610 = vunpack.c.l.s4 1934713408
          %v2611 = vunpack.c.0.s8 %v2610
          %v2612 = vlaneseq
          %v2613 = vshrl.u32 %v2612, 7
          %v2614 = vsub.s32 %v2611, %v2613
          %v2615 = vrot.slane %v2607, %v2614
          %v2617 = vunpack.c.l.s4 1934713408
          %v2618 = vunpack.c.0.s8 %v2617
          %v2619 = vlaneseq
          %v2620 = vshrl.u32 %v2619, 7
          %v2621 = vsub.s32 %v2618, %v2620
          %v2622 = vrot.slane %v2608, %v2621
          %v2623 = vcombine.high %v2615, 0
          %v2624 = vcombine.high %v2622, 0
          %v2627 = vunpack.c.l.s4 1983009808
          %v2628 = vunpack.c.0.s8 %v2627
          %v2629 = vlaneseq
          %v2630 = vshrl.u32 %v2629, 7
          %v2631 = vsub.s32 %v2628, %v2630
          %v2632 = vrot.slane %v2276, %v2631
          %v2635 = vunpack.c.l.s4 1983009808
          %v2636 = vunpack.c.0.s8 %v2635
          %v2637 = vlaneseq
          %v2638 = vshrl.u32 %v2637, 7
          %v2639 = vsub.s32 %v2636, %v2638
          %v2640 = vrot.slane %v2282, %v2639
          %v2641 = vcombine.low %v2632, %v2640
          %v2642 = vcombine.high %v2632, %v2640
          %v2644 = vunpack.c.l.s4 1934713408
          %v2645 = vunpack.c.0.s8 %v2644
          %v2646 = vlaneseq
          %v2647 = vshrl.u32 %v2646, 7
          %v2648 = vsub.s32 %v2645, %v2647
          %v2649 = vrot.slane %v2641, %v2648
          %v2651 = vunpack.c.l.s4 1934713408
          %v2652 = vunpack.c.0.s8 %v2651
          %v2653 = vlaneseq
          %v2654 = vshrl.u32 %v2653, 7
          %v2655 = vsub.s32 %v2652, %v2654
          %v2656 = vrot.slane %v2642, %v2655
          %v2657 = vcombine.high %v2649, 0
          %v2658 = vcombine.high %v2656, 0
          %v2661 = vunpack.c.l.s4 1983009808
          %v2662 = vunpack.c.0.s8 %v2661
          %v2663 = vlaneseq
          %v2664 = vshrl.u32 %v2663, 7
          %v2665 = vsub.s32 %v2662, %v2664
          %v2666 = vrot.slane %v2285, %v2665
          %v2669 = vunpack.c.l.s4 1983009808
          %v2670 = vunpack.c.0.s8 %v2669
          %v2671 = vlaneseq
          %v2672 = vshrl.u32 %v2671, 7
          %v2673 = vsub.s32 %v2670, %v2672
          %v2674 = vrot.slane %v2291, %v2673
          %v2675 = vcombine.low %v2666, %v2674
          %v2676 = vcombine.high %v2666, %v2674
          %v2678 = vunpack.c.l.s4 1934713408
          %v2679 = vunpack.c.0.s8 %v2678
          %v2680 = vlaneseq
          %v2681 = vshrl.u32 %v2680, 7
          %v2682 = vsub.s32 %v2679, %v2681
          %v2683 = vrot.slane %v2675, %v2682
          %v2685 = vunpack.c.l.s4 1934713408
          %v2686 = vunpack.c.0.s8 %v2685
          %v2687 = vlaneseq
          %v2688 = vshrl.u32 %v2687, 7
          %v2689 = vsub.s32 %v2686, %v2688
          %v2690 = vrot.slane %v2676, %v2689
          %v2691 = vcombine.high %v2683, 0
          %v2692 = vcombine.high %v2690, 0
          %v2695 = vunpack.c.l.s4 1983009808
          %v2696 = vunpack.c.0.s8 %v2695
          %v2697 = vlaneseq
          %v2698 = vshrl.u32 %v2697, 7
          %v2699 = vsub.s32 %v2696, %v2698
          %v2700 = vrot.slane %v2288, %v2699
          %v2703 = vunpack.c.l.s4 1983009808
          %v2704 = vunpack.c.0.s8 %v2703
          %v2705 = vlaneseq
          %v2706 = vshrl.u32 %v2705, 7
          %v2707 = vsub.s32 %v2704, %v2706
          %v2708 = vrot.slane %v2294, %v2707
          %v2709 = vcombine.low %v2700, %v2708
          %v2710 = vcombine.high %v2700, %v2708
          %v2712 = vunpack.c.l.s4 1934713408
          %v2713 = vunpack.c.0.s8 %v2712
          %v2714 = vlaneseq
          %v2715 = vshrl.u32 %v2714, 7
          %v2716 = vsub.s32 %v2713, %v2715
          %v2717 = vrot.slane %v2709, %v2716
          %v2719 = vunpack.c.l.s4 1934713408
          %v2720 = vunpack.c.0.s8 %v2719
          %v2721 = vlaneseq
          %v2722 = vshrl.u32 %v2721, 7
          %v2723 = vsub.s32 %v2720, %v2722
          %v2724 = vrot.slane %v2710, %v2723
          %v2725 = vcombine.high %v2717, 0
          %v2726 = vcombine.high %v2724, 0
          %v2729 = vunpack.c.l.s4 1983009808
          %v2730 = vunpack.c.0.s8 %v2729
          %v2731 = vlaneseq
          %v2732 = vshrl.u32 %v2731, 7
          %v2733 = vsub.s32 %v2730, %v2732
          %v2734 = vrot.slane %v2297, %v2733
          %v2737 = vunpack.c.l.s4 1983009808
          %v2738 = vunpack.c.0.s8 %v2737
          %v2739 = vlaneseq
          %v2740 = vshrl.u32 %v2739, 7
          %v2741 = vsub.s32 %v2738, %v2740
          %v2742 = vrot.slane %v2303, %v2741
          %v2743 = vcombine.low %v2734, %v2742
          %v2744 = vcombine.high %v2734, %v2742
          %v2746 = vunpack.c.l.s4 1934713408
          %v2747 = vunpack.c.0.s8 %v2746
          %v2748 = vlaneseq
          %v2749 = vshrl.u32 %v2748, 7
          %v2750 = vsub.s32 %v2747, %v2749
          %v2751 = vrot.slane %v2743, %v2750
          %v2753 = vunpack.c.l.s4 1934713408
          %v2754 = vunpack.c.0.s8 %v2753
          %v2755 = vlaneseq
          %v2756 = vshrl.u32 %v2755, 7
          %v2757 = vsub.s32 %v2754, %v2756
          %v2758 = vrot.slane %v2744, %v2757
          %v2759 = vcombine.high %v2751, 0
          %v2760 = vcombine.high %v2758, 0
          %v2763 = vunpack.c.l.s4 1983009808
          %v2764 = vunpack.c.0.s8 %v2763
          %v2765 = vlaneseq
          %v2766 = vshrl.u32 %v2765, 7
          %v2767 = vsub.s32 %v2764, %v2766
          %v2768 = vrot.slane %v2300, %v2767
          %v2771 = vunpack.c.l.s4 1983009808
          %v2772 = vunpack.c.0.s8 %v2771
          %v2773 = vlaneseq
          %v2774 = vshrl.u32 %v2773, 7
          %v2775 = vsub.s32 %v2772, %v2774
          %v2776 = vrot.slane %v2306, %v2775
          %v2777 = vcombine.low %v2768, %v2776
          %v2778 = vcombine.high %v2768, %v2776
          %v2780 = vunpack.c.l.s4 1934713408
          %v2781 = vunpack.c.0.s8 %v2780
          %v2782 = vlaneseq
          %v2783 = vshrl.u32 %v2782, 7
          %v2784 = vsub.s32 %v2781, %v2783
          %v2785 = vrot.slane %v2777, %v2784
          %v2787 = vunpack.c.l.s4 1934713408
          %v2788 = vunpack.c.0.s8 %v2787
          %v2789 = vlaneseq
          %v2790 = vshrl.u32 %v2789, 7
          %v2791 = vsub.s32 %v2788, %v2790
          %v2792 = vrot.slane %v2778, %v2791
          %v2793 = vcombine.high %v2785, 0
          %v2794 = vcombine.high %v2792, 0
          %v2797 = vunpack.c.l.s4 1983009808
          %v2798 = vunpack.c.0.s8 %v2797
          %v2799 = vlaneseq
          %v2800 = vshrl.u32 %v2799, 7
          %v2801 = vsub.s32 %v2798, %v2800
          %v2802 = vrot.slane %v2309, %v2801
          %v2805 = vunpack.c.l.s4 1983009808
          %v2806 = vunpack.c.0.s8 %v2805
          %v2807 = vlaneseq
          %v2808 = vshrl.u32 %v2807, 7
          %v2809 = vsub.s32 %v2806, %v2808
          %v2810 = vrot.slane %v2315, %v2809
          %v2811 = vcombine.low %v2802, %v2810
          %v2812 = vcombine.high %v2802, %v2810
          %v2814 = vunpack.c.l.s4 1934713408
          %v2815 = vunpack.c.0.s8 %v2814
          %v2816 = vlaneseq
          %v2817 = vshrl.u32 %v2816, 7
          %v2818 = vsub.s32 %v2815, %v2817
          %v2819 = vrot.slane %v2811, %v2818
          %v2821 = vunpack.c.l.s4 1934713408
          %v2822 = vunpack.c.0.s8 %v2821
          %v2823 = vlaneseq
          %v2824 = vshrl.u32 %v2823, 7
          %v2825 = vsub.s32 %v2822, %v2824
          %v2826 = vrot.slane %v2812, %v2825
          %v2827 = vcombine.high %v2819, 0
          %v2828 = vcombine.high %v2826, 0
          %v2831 = vunpack.c.l.s4 1983009808
          %v2832 = vunpack.c.0.s8 %v2831
          %v2833 = vlaneseq
          %v2834 = vshrl.u32 %v2833, 7
          %v2835 = vsub.s32 %v2832, %v2834
          %v2836 = vrot.slane %v2312, %v2835
          %v2839 = vunpack.c.l.s4 1983009808
          %v2840 = vunpack.c.0.s8 %v2839
          %v2841 = vlaneseq
          %v2842 = vshrl.u32 %v2841, 7
          %v2843 = vsub.s32 %v2840, %v2842
          %v2844 = vrot.slane %v2318, %v2843
          %v2845 = vcombine.low %v2836, %v2844
          %v2846 = vcombine.high %v2836, %v2844
          %v2848 = vunpack.c.l.s4 1934713408
          %v2849 = vunpack.c.0.s8 %v2848
          %v2850 = vlaneseq
          %v2851 = vshrl.u32 %v2850, 7
          %v2852 = vsub.s32 %v2849, %v2851
          %v2853 = vrot.slane %v2845, %v2852
          %v2855 = vunpack.c.l.s4 1934713408
          %v2856 = vunpack.c.0.s8 %v2855
          %v2857 = vlaneseq
          %v2858 = vshrl.u32 %v2857, 7
          %v2859 = vsub.s32 %v2856, %v2858
          %v2860 = vrot.slane %v2846, %v2859
          %v2861 = vcombine.high %v2853, 0
          %v2862 = vcombine.high %v2860, 0
          %v2863 = vcombine.low %v2343, %v2350
          %v2865 = vunpack.c.l.s4 1983009808
          %v2866 = vunpack.c.0.s8 %v2865
          %v2867 = vlaneseq
          %v2868 = vshrl.u32 %v2867, 7
          %v2869 = vsub.s32 %v2866, %v2868
          %v2870 = vrot.slane %v2863, %v2869
          %v2871 = vcombine.low %v2351, %v2352
          %v2873 = vunpack.c.l.s4 1983009808
          %v2874 = vunpack.c.0.s8 %v2873
          %v2875 = vlaneseq
          %v2876 = vshrl.u32 %v2875, 7
          %v2877 = vsub.s32 %v2874, %v2876
          %v2878 = vrot.slane %v2871, %v2877
          %v2879 = vcombine.low %v2870, %v2878
          %v2881 = vunpack.c.l.s4 1934713408
          %v2882 = vunpack.c.0.s8 %v2881
          %v2883 = vlaneseq
          %v2884 = vshrl.u32 %v2883, 7
          %v2885 = vsub.s32 %v2882, %v2884
          %v2886 = vrot.slane %v2879, %v2885
          %v2887 = vcombine.high %v2886, 0
          %v2888 = vcombine.low %v2377, %v2384
          %v2890 = vunpack.c.l.s4 1983009808
          %v2891 = vunpack.c.0.s8 %v2890
          %v2892 = vlaneseq
          %v2893 = vshrl.u32 %v2892, 7
          %v2894 = vsub.s32 %v2891, %v2893
          %v2895 = vrot.slane %v2888, %v2894
          %v2896 = vcombine.low %v2385, %v2386
          %v2898 = vunpack.c.l.s4 1983009808
          %v2899 = vunpack.c.0.s8 %v2898
          %v2900 = vlaneseq
          %v2901 = vshrl.u32 %v2900, 7
          %v2902 = vsub.s32 %v2899, %v2901
          %v2903 = vrot.slane %v2896, %v2902
          %v2904 = vcombine.low %v2895, %v2903
          %v2906 = vunpack.c.l.s4 1934713408
          %v2907 = vunpack.c.0.s8 %v2906
          %v2908 = vlaneseq
          %v2909 = vshrl.u32 %v2908, 7
          %v2910 = vsub.s32 %v2907, %v2909
          %v2911 = vrot.slane %v2904, %v2910
          %v2912 = vcombine.high %v2911, 0
          %v2913 = vcombine.low %v2411, %v2418
          %v2915 = vunpack.c.l.s4 1983009808
          %v2916 = vunpack.c.0.s8 %v2915
          %v2917 = vlaneseq
          %v2918 = vshrl.u32 %v2917, 7
          %v2919 = vsub.s32 %v2916, %v2918
          %v2920 = vrot.slane %v2913, %v2919
          %v2921 = vcombine.low %v2419, %v2420
          %v2923 = vunpack.c.l.s4 1983009808
          %v2924 = vunpack.c.0.s8 %v2923
          %v2925 = vlaneseq
          %v2926 = vshrl.u32 %v2925, 7
          %v2927 = vsub.s32 %v2924, %v2926
          %v2928 = vrot.slane %v2921, %v2927
          %v2929 = vcombine.low %v2920, %v2928
          %v2931 = vunpack.c.l.s4 1934713408
          %v2932 = vunpack.c.0.s8 %v2931
          %v2933 = vlaneseq
          %v2934 = vshrl.u32 %v2933, 7
          %v2935 = vsub.s32 %v2932, %v2934
          %v2936 = vrot.slane %v2929, %v2935
          %v2937 = vcombine.high %v2936, 0
          %v2938 = vcombine.low %v2445, %v2452
          %v2940 = vunpack.c.l.s4 1983009808
          %v2941 = vunpack.c.0.s8 %v2940
          %v2942 = vlaneseq
          %v2943 = vshrl.u32 %v2942, 7
          %v2944 = vsub.s32 %v2941, %v2943
          %v2945 = vrot.slane %v2938, %v2944
          %v2946 = vcombine.low %v2453, %v2454
          %v2948 = vunpack.c.l.s4 1983009808
          %v2949 = vunpack.c.0.s8 %v2948
          %v2950 = vlaneseq
          %v2951 = vshrl.u32 %v2950, 7
          %v2952 = vsub.s32 %v2949, %v2951
          %v2953 = vrot.slane %v2946, %v2952
          %v2954 = vcombine.low %v2945, %v2953
          %v2956 = vunpack.c.l.s4 1934713408
          %v2957 = vunpack.c.0.s8 %v2956
          %v2958 = vlaneseq
          %v2959 = vshrl.u32 %v2958, 7
          %v2960 = vsub.s32 %v2957, %v2959
          %v2961 = vrot.slane %v2954, %v2960
          %v2962 = vcombine.high %v2961, 0
          %v2963 = vcombine.low %v2479, %v2486
          %v2965 = vunpack.c.l.s4 1983009808
          %v2966 = vunpack.c.0.s8 %v2965
          %v2967 = vlaneseq
          %v2968 = vshrl.u32 %v2967, 7
          %v2969 = vsub.s32 %v2966, %v2968
          %v2970 = vrot.slane %v2963, %v2969
          %v2971 = vcombine.low %v2487, %v2488
          %v2973 = vunpack.c.l.s4 1983009808
          %v2974 = vunpack.c.0.s8 %v2973
          %v2975 = vlaneseq
          %v2976 = vshrl.u32 %v2975, 7
          %v2977 = vsub.s32 %v2974, %v2976
          %v2978 = vrot.slane %v2971, %v2977
          %v2979 = vcombine.low %v2970, %v2978
          %v2981 = vunpack.c.l.s4 1934713408
          %v2982 = vunpack.c.0.s8 %v2981
          %v2983 = vlaneseq
          %v2984 = vshrl.u32 %v2983, 7
          %v2985 = vsub.s32 %v2982, %v2984
          %v2986 = vrot.slane %v2979, %v2985
          %v2987 = vcombine.high %v2986, 0
          %v2988 = vcombine.low %v2513, %v2520
          %v2990 = vunpack.c.l.s4 1983009808
          %v2991 = vunpack.c.0.s8 %v2990
          %v2992 = vlaneseq
          %v2993 = vshrl.u32 %v2992, 7
          %v2994 = vsub.s32 %v2991, %v2993
          %v2995 = vrot.slane %v2988, %v2994
          %v2996 = vcombine.low %v2521, %v2522
          %v2998 = vunpack.c.l.s4 1983009808
          %v2999 = vunpack.c.0.s8 %v2998
          %v3000 = vlaneseq
          %v3001 = vshrl.u32 %v3000, 7
          %v3002 = vsub.s32 %v2999, %v3001
          %v3003 = vrot.slane %v2996, %v3002
          %v3004 = vcombine.low %v2995, %v3003
          %v3006 = vunpack.c.l.s4 1934713408
          %v3007 = vunpack.c.0.s8 %v3006
          %v3008 = vlaneseq
          %v3009 = vshrl.u32 %v3008, 7
          %v3010 = vsub.s32 %v3007, %v3009
          %v3011 = vrot.slane %v3004, %v3010
          %v3012 = vcombine.high %v3011, 0
          %v3013 = vcombine.low %v2547, %v2554
          %v3015 = vunpack.c.l.s4 1983009808
          %v3016 = vunpack.c.0.s8 %v3015
          %v3017 = vlaneseq
          %v3018 = vshrl.u32 %v3017, 7
          %v3019 = vsub.s32 %v3016, %v3018
          %v3020 = vrot.slane %v3013, %v3019
          %v3021 = vcombine.low %v2555, %v2556
          %v3023 = vunpack.c.l.s4 1983009808
          %v3024 = vunpack.c.0.s8 %v3023
          %v3025 = vlaneseq
          %v3026 = vshrl.u32 %v3025, 7
          %v3027 = vsub.s32 %v3024, %v3026
          %v3028 = vrot.slane %v3021, %v3027
          %v3029 = vcombine.low %v3020, %v3028
          %v3031 = vunpack.c.l.s4 1934713408
          %v3032 = vunpack.c.0.s8 %v3031
          %v3033 = vlaneseq
          %v3034 = vshrl.u32 %v3033, 7
          %v3035 = vsub.s32 %v3032, %v3034
          %v3036 = vrot.slane %v3029, %v3035
          %v3037 = vcombine.high %v3036, 0
          %v3038 = vcombine.low %v2581, %v2588
          %v3040 = vunpack.c.l.s4 1983009808
          %v3041 = vunpack.c.0.s8 %v3040
          %v3042 = vlaneseq
          %v3043 = vshrl.u32 %v3042, 7
          %v3044 = vsub.s32 %v3041, %v3043
          %v3045 = vrot.slane %v3038, %v3044
          %v3046 = vcombine.low %v2589, %v2590
          %v3048 = vunpack.c.l.s4 1983009808
          %v3049 = vunpack.c.0.s8 %v3048
          %v3050 = vlaneseq
          %v3051 = vshrl.u32 %v3050, 7
          %v3052 = vsub.s32 %v3049, %v3051
          %v3053 = vrot.slane %v3046, %v3052
          %v3054 = vcombine.low %v3045, %v3053
          %v3056 = vunpack.c.l.s4 1934713408
          %v3057 = vunpack.c.0.s8 %v3056
          %v3058 = vlaneseq
          %v3059 = vshrl.u32 %v3058, 7
          %v3060 = vsub.s32 %v3057, %v3059
          %v3061 = vrot.slane %v3054, %v3060
          %v3062 = vcombine.high %v3061, 0
          %v3063 = vcombine.low %v2615, %v2622
          %v3065 = vunpack.c.l.s4 1983009808
          %v3066 = vunpack.c.0.s8 %v3065
          %v3067 = vlaneseq
          %v3068 = vshrl.u32 %v3067, 7
          %v3069 = vsub.s32 %v3066, %v3068
          %v3070 = vrot.slane %v3063, %v3069
          %v3071 = vcombine.low %v2623, %v2624
          %v3073 = vunpack.c.l.s4 1983009808
          %v3074 = vunpack.c.0.s8 %v3073
          %v3075 = vlaneseq
          %v3076 = vshrl.u32 %v3075, 7
          %v3077 = vsub.s32 %v3074, %v3076
          %v3078 = vrot.slane %v3071, %v3077
          %v3079 = vcombine.low %v3070, %v3078
          %v3081 = vunpack.c.l.s4 1934713408
          %v3082 = vunpack.c.0.s8 %v3081
          %v3083 = vlaneseq
          %v3084 = vshrl.u32 %v3083, 7
          %v3085 = vsub.s32 %v3082, %v3084
          %v3086 = vrot.slane %v3079, %v3085
          %v3087 = vcombine.high %v3086, 0
          %v3088 = vcombine.low %v2649, %v2656
          %v3090 = vunpack.c.l.s4 1983009808
          %v3091 = vunpack.c.0.s8 %v3090
          %v3092 = vlaneseq
          %v3093 = vshrl.u32 %v3092, 7
          %v3094 = vsub.s32 %v3091, %v3093
          %v3095 = vrot.slane %v3088, %v3094
          %v3096 = vcombine.low %v2657, %v2658
          %v3098 = vunpack.c.l.s4 1983009808
          %v3099 = vunpack.c.0.s8 %v3098
          %v3100 = vlaneseq
          %v3101 = vshrl.u32 %v3100, 7
          %v3102 = vsub.s32 %v3099, %v3101
          %v3103 = vrot.slane %v3096, %v3102
          %v3104 = vcombine.low %v3095, %v3103
          %v3106 = vunpack.c.l.s4 1934713408
          %v3107 = vunpack.c.0.s8 %v3106
          %v3108 = vlaneseq
          %v3109 = vshrl.u32 %v3108, 7
          %v3110 = vsub.s32 %v3107, %v3109
          %v3111 = vrot.slane %v3104, %v3110
          %v3112 = vcombine.high %v3111, 0
          %v3113 = vcombine.low %v2683, %v2690
          %v3115 = vunpack.c.l.s4 1983009808
          %v3116 = vunpack.c.0.s8 %v3115
          %v3117 = vlaneseq
          %v3118 = vshrl.u32 %v3117, 7
          %v3119 = vsub.s32 %v3116, %v3118
          %v3120 = vrot.slane %v3113, %v3119
          %v3121 = vcombine.low %v2691, %v2692
          %v3123 = vunpack.c.l.s4 1983009808
          %v3124 = vunpack.c.0.s8 %v3123
          %v3125 = vlaneseq
          %v3126 = vshrl.u32 %v3125, 7
          %v3127 = vsub.s32 %v3124, %v3126
          %v3128 = vrot.slane %v3121, %v3127
          %v3129 = vcombine.low %v3120, %v3128
          %v3131 = vunpack.c.l.s4 1934713408
          %v3132 = vunpack.c.0.s8 %v3131
          %v3133 = vlaneseq
          %v3134 = vshrl.u32 %v3133, 7
          %v3135 = vsub.s32 %v3132, %v3134
          %v3136 = vrot.slane %v3129, %v3135
          %v3137 = vcombine.high %v3136, 0
          %v3138 = vcombine.low %v2717, %v2724
          %v3140 = vunpack.c.l.s4 1983009808
          %v3141 = vunpack.c.0.s8 %v3140
          %v3142 = vlaneseq
          %v3143 = vshrl.u32 %v3142, 7
          %v3144 = vsub.s32 %v3141, %v3143
          %v3145 = vrot.slane %v3138, %v3144
          %v3146 = vcombine.low %v2725, %v2726
          %v3148 = vunpack.c.l.s4 1983009808
          %v3149 = vunpack.c.0.s8 %v3148
          %v3150 = vlaneseq
          %v3151 = vshrl.u32 %v3150, 7
          %v3152 = vsub.s32 %v3149, %v3151
          %v3153 = vrot.slane %v3146, %v3152
          %v3154 = vcombine.low %v3145, %v3153
          %v3156 = vunpack.c.l.s4 1934713408
          %v3157 = vunpack.c.0.s8 %v3156
          %v3158 = vlaneseq
          %v3159 = vshrl.u32 %v3158, 7
          %v3160 = vsub.s32 %v3157, %v3159
          %v3161 = vrot.slane %v3154, %v3160
          %v3162 = vcombine.high %v3161, 0
          %v3163 = vcombine.low %v2751, %v2758
          %v3165 = vunpack.c.l.s4 1983009808
          %v3166 = vunpack.c.0.s8 %v3165
          %v3167 = vlaneseq
          %v3168 = vshrl.u32 %v3167, 7
          %v3169 = vsub.s32 %v3166, %v3168
          %v3170 = vrot.slane %v3163, %v3169
          %v3171 = vcombine.low %v2759, %v2760
          %v3173 = vunpack.c.l.s4 1983009808
          %v3174 = vunpack.c.0.s8 %v3173
          %v3175 = vlaneseq
          %v3176 = vshrl.u32 %v3175, 7
          %v3177 = vsub.s32 %v3174, %v3176
          %v3178 = vrot.slane %v3171, %v3177
          %v3179 = vcombine.low %v3170, %v3178
          %v3181 = vunpack.c.l.s4 1934713408
          %v3182 = vunpack.c.0.s8 %v3181
          %v3183 = vlaneseq
          %v3184 = vshrl.u32 %v3183, 7
          %v3185 = vsub.s32 %v3182, %v3184
          %v3186 = vrot.slane %v3179, %v3185
          %v3187 = vcombine.high %v3186, 0
          %v3188 = vcombine.low %v2785, %v2792
          %v3190 = vunpack.c.l.s4 1983009808
          %v3191 = vunpack.c.0.s8 %v3190
          %v3192 = vlaneseq
          %v3193 = vshrl.u32 %v3192, 7
          %v3194 = vsub.s32 %v3191, %v3193
          %v3195 = vrot.slane %v3188, %v3194
          %v3196 = vcombine.low %v2793, %v2794
          %v3198 = vunpack.c.l.s4 1983009808
          %v3199 = vunpack.c.0.s8 %v3198
          %v3200 = vlaneseq
          %v3201 = vshrl.u32 %v3200, 7
          %v3202 = vsub.s32 %v3199, %v3201
          %v3203 = vrot.slane %v3196, %v3202
          %v3204 = vcombine.low %v3195, %v3203
          %v3206 = vunpack.c.l.s4 1934713408
          %v3207 = vunpack.c.0.s8 %v3206
          %v3208 = vlaneseq
          %v3209 = vshrl.u32 %v3208, 7
          %v3210 = vsub.s32 %v3207, %v3209
          %v3211 = vrot.slane %v3204, %v3210
          %v3212 = vcombine.high %v3211, 0
          %v3213 = vcombine.low %v2819, %v2826
          %v3215 = vunpack.c.l.s4 1983009808
          %v3216 = vunpack.c.0.s8 %v3215
          %v3217 = vlaneseq
          %v3218 = vshrl.u32 %v3217, 7
          %v3219 = vsub.s32 %v3216, %v3218
          %v3220 = vrot.slane %v3213, %v3219
          %v3221 = vcombine.low %v2827, %v2828
          %v3223 = vunpack.c.l.s4 1983009808
          %v3224 = vunpack.c.0.s8 %v3223
          %v3225 = vlaneseq
          %v3226 = vshrl.u32 %v3225, 7
          %v3227 = vsub.s32 %v3224, %v3226
          %v3228 = vrot.slane %v3221, %v3227
          %v3229 = vcombine.low %v3220, %v3228
          %v3231 = vunpack.c.l.s4 1934713408
          %v3232 = vunpack.c.0.s8 %v3231
          %v3233 = vlaneseq
          %v3234 = vshrl.u32 %v3233, 7
          %v3235 = vsub.s32 %v3232, %v3234
          %v3236 = vrot.slane %v3229, %v3235
          %v3237 = vcombine.high %v3236, 0
          %v3238 = vcombine.low %v2853, %v2860
          %v3240 = vunpack.c.l.s4 1983009808
          %v3241 = vunpack.c.0.s8 %v3240
          %v3242 = vlaneseq
          %v3243 = vshrl.u32 %v3242, 7
          %v3244 = vsub.s32 %v3241, %v3243
          %v3245 = vrot.slane %v3238, %v3244
          %v3246 = vcombine.low %v2861, %v2862
          %v3248 = vunpack.c.l.s4 1983009808
          %v3249 = vunpack.c.0.s8 %v3248
          %v3250 = vlaneseq
          %v3251 = vshrl.u32 %v3250, 7
          %v3252 = vsub.s32 %v3249, %v3251
          %v3253 = vrot.slane %v3246, %v3252
          %v3254 = vcombine.low %v3245, %v3253
          %v3256 = vunpack.c.l.s4 1934713408
          %v3257 = vunpack.c.0.s8 %v3256
          %v3258 = vlaneseq
          %v3259 = vshrl.u32 %v3258, 7
          %v3260 = vsub.s32 %v3257, %v3259
          %v3261 = vrot.slane %v3254, %v3260
          %v3262 = vcombine.high %v3261, 0
          %v3265 = vpack.i.b16 %v2911, %v2886
          %v3266 = vshrl.u32 %v2886, 16
          %v3267 = vshrl.u32 %v2911, 16
          %v3268 = vpack.i.b16 %v3267, %v3266
          %v3271 = vpack.i.b16 %v2912, %v2887
          %v3272 = vshrl.u32 %v2887, 16
          %v3273 = vshrl.u32 %v2912, 16
          %v3274 = vpack.i.b16 %v3273, %v3272
          %v3277 = vpack.i.b16 %v2961, %v2936
          %v3278 = vshrl.u32 %v2936, 16
          %v3279 = vshrl.u32 %v2961, 16
          %v3280 = vpack.i.b16 %v3279, %v3278
          %v3283 = vpack.i.b16 %v2962, %v2937
          %v3284 = vshrl.u32 %v2937, 16
          %v3285 = vshrl.u32 %v2962, 16
          %v3286 = vpack.i.b16 %v3285, %v3284
          %v3289 = vpack.i.b16 %v3011, %v2986
          %v3290 = vshrl.u32 %v2986, 16
          %v3291 = vshrl.u32 %v3011, 16
          %v3292 = vpack.i.b16 %v3291, %v3290
          %v3295 = vpack.i.b16 %v3012, %v2987
          %v3296 = vshrl.u32 %v2987, 16
          %v3297 = vshrl.u32 %v3012, 16
          %v3298 = vpack.i.b16 %v3297, %v3296
          %v3301 = vpack.i.b16 %v3061, %v3036
          %v3302 = vshrl.u32 %v3036, 16
          %v3303 = vshrl.u32 %v3061, 16
          %v3304 = vpack.i.b16 %v3303, %v3302
          %v3307 = vpack.i.b16 %v3062, %v3037
          %v3308 = vshrl.u32 %v3037, 16
          %v3309 = vshrl.u32 %v3062, 16
          %v3310 = vpack.i.b16 %v3309, %v3308
          %v3313 = vpack.i.b16 %v3111, %v3086
          %v3314 = vshrl.u32 %v3086, 16
          %v3315 = vshrl.u32 %v3111, 16
          %v3316 = vpack.i.b16 %v3315, %v3314
          %v3319 = vpack.i.b16 %v3112, %v3087
          %v3320 = vshrl.u32 %v3087, 16
          %v3321 = vshrl.u32 %v3112, 16
          %v3322 = vpack.i.b16 %v3321, %v3320
          %v3325 = vpack.i.b16 %v3161, %v3136
          %v3326 = vshrl.u32 %v3136, 16
          %v3327 = vshrl.u32 %v3161, 16
          %v3328 = vpack.i.b16 %v3327, %v3326
          %v3331 = vpack.i.b16 %v3162, %v3137
          %v3332 = vshrl.u32 %v3137, 16
          %v3333 = vshrl.u32 %v3162, 16
          %v3334 = vpack.i.b16 %v3333, %v3332
          %v3337 = vpack.i.b16 %v3211, %v3186
          %v3338 = vshrl.u32 %v3186, 16
          %v3339 = vshrl.u32 %v3211, 16
          %v3340 = vpack.i.b16 %v3339, %v3338
          %v3343 = vpack.i.b16 %v3212, %v3187
          %v3344 = vshrl.u32 %v3187, 16
          %v3345 = vshrl.u32 %v3212, 16
          %v3346 = vpack.i.b16 %v3345, %v3344
          %v3349 = vpack.i.b16 %v3261, %v3236
          %v3350 = vshrl.u32 %v3236, 16
          %v3351 = vshrl.u32 %v3261, 16
          %v3352 = vpack.i.b16 %v3351, %v3350
          %v3355 = vpack.i.b16 %v3262, %v3237
          %v3356 = vshrl.u32 %v3237, 16
          %v3357 = vshrl.u32 %v3262, 16
          %v3358 = vpack.i.b16 %v3357, %v3356
          %v3359 = vunpack.c.l.b16 %v953
          %v3360 = vunpack.c.l.b16 %v965
          %v3361 = vpack.c.b16 %v3360, %v3359
          %v3362 = vunpack.c.l.b16 %v2073
          %v3363 = vunpack.c.l.b16 %v2085
          %v3364 = vunpack.c.l.b16 %v2097
          %v3365 = vunpack.c.l.b16 %v2109
          %v3366 = vunpack.c.l.b16 %v2121
          %v3367 = vunpack.c.l.b16 %v2133
          %v3368 = vunpack.c.l.b16 %v2145
          %v3369 = vunpack.c.l.b16 %v2157
          %v3370 = vpack.c.b16 %v3363, %v3362
          %v3371 = vpack.c.b16 %v3365, %v3364
          %v3372 = vpack.c.b16 %v3367, %v3366
          %v3373 = vpack.c.b16 %v3369, %v3368
          %vm3374 = vcmask 130048
          %v3376 = vsel %vm3374, %v3361, 0
          %v3379 = vsel %vm3374, %v3370, 0
          %v3382 = vsel %vm3374, %v3371, 0
          %v3385 = vsel %vm3374, %v3372, 0
          %v3388 = vsel %vm3374, %v3373, 0
          %3390 = vmatprep.subr.bf16.mxu0 0
          %3391 = vmatpush1.bf16.xpose.msra.mxu0 %v3379
          %3392 = vmatprep.subr.bf16.mxu0 0
          %3393 = vmatpush1.bf16.xpose.msra.mxu0 %v3382
          %3394 = vmatprep.subr.bf16.mxu0 0
          %3395 = vmatpush1.bf16.xpose.msra.mxu0 %v3385
          %3396 = vmatprep.subr.bf16.mxu0 0
          %3397 = vmatpush1.bf16.xpose.msra.mxu0 %v3388
          %3398 = vmatprep.subr.bf16.mxu0 0
          %3399 = vmatpush1.bf16.xpose.msra.mxu0 0
          %3400 = vmatprep.subr.bf16.mxu0 0
          %3401 = vmatpush1.bf16.xpose.msra.mxu0 0
          %3402 = vmatprep.subr.bf16.mxu0 0
          %3403 = vmatpush1.bf16.xpose.msra.mxu0 0
          %3404 = vmatprep.subr.bf16.mxu0 0
          %3405 = vmatpush1.bf16.xpose.msra.mxu0 0
          %3406 = vmatprep.subr.bf16.mxu0 0
          %3407 = vmatpush1.bf16.xpose.msra.mxu0 0
          %3408 = vmatprep.subr.bf16.mxu0 0
          %3409 = vmatpush1.bf16.xpose.msra.mxu0 0
          %3410 = vmatprep.subr.bf16.mxu0 0
          %3411 = vmatpush1.bf16.xpose.msra.mxu0 0
          %3412 = vmatprep.subr.bf16.mxu0 0
          %3413 = vmatpush1.bf16.xpose.msra.mxu0 0
          %3414 = vmatprep.subr.bf16.mxu0 0
          %3415 = vmatpush1.bf16.xpose.msra.mxu0 0
          %3416 = vmatprep.subr.bf16.mxu0 0
          %3417 = vmatpush1.bf16.xpose.msra.mxu0 0
          %3418 = vmatprep.subr.bf16.mxu0 0
          %3419 = vmatpush1.bf16.xpose.msra.mxu0 0
          %3420 = vmatprep.subr.bf16.mxu0 0
          %3421 = vmatpush1.bf16.xpose.msra.mxu0 0
          %3422 = vmatprep.mubr.bf16.mxu0 0
          %3423 = vmatmul.mubr.bf16.gmra.mrb[0].mxu0 %v3376
          %v3424 = vpop.f32.mrb[0].mxu0
          %v3425 = vadd.f32 0.0, %v3424
          %v3426 = vpop.f32.mrb[0].mxu0
          %v3427 = vpop.f32.mrb[0].mxu0
          %v3428 = vadd.f32 0.0, %v3427
          %v3429 = vpop.f32.mrb[0].mxu0
          %3430 = vdwg.mxu0
          %v3431 = vunpack.c.l.b16 %v956
          %v3432 = vunpack.c.l.b16 %v968
          %v3433 = vpack.c.b16 %v3432, %v3431
          %v3434 = vunpack.c.l.b16 %v2076
          %v3435 = vunpack.c.l.b16 %v2088
          %v3436 = vunpack.c.l.b16 %v2100
          %v3437 = vunpack.c.l.b16 %v2112
          %v3438 = vunpack.c.l.b16 %v2124
          %v3439 = vunpack.c.l.b16 %v2136
          %v3440 = vunpack.c.l.b16 %v2148
          %v3441 = vunpack.c.l.b16 %v2160
          %v3442 = vpack.c.b16 %v3435, %v3434
          %v3443 = vpack.c.b16 %v3437, %v3436
          %v3444 = vpack.c.b16 %v3439, %v3438
          %v3445 = vpack.c.b16 %v3441, %v3440
          %v3447 = vsel %vm3374, %v3433, 0
          %v3450 = vsel %vm3374, %v3442, 0
          %v3453 = vsel %vm3374, %v3443, 0
          %v3456 = vsel %vm3374, %v3444, 0
          %v3459 = vsel %vm3374, %v3445, 0
          %3461 = vmatprep.subr.bf16.mxu0 0
          %3462 = vmatpush1.bf16.xpose.msra.mxu0 %v3450
          %3463 = vmatprep.subr.bf16.mxu0 0
          %3464 = vmatpush1.bf16.xpose.msra.mxu0 %v3453
          %3465 = vmatprep.subr.bf16.mxu0 0
          %3466 = vmatpush1.bf16.xpose.msra.mxu0 %v3456
          %3467 = vmatprep.subr.bf16.mxu0 0
          %3468 = vmatpush1.bf16.xpose.msra.mxu0 %v3459
          %3469 = vmatprep.subr.bf16.mxu0 0
          %3470 = vmatpush1.bf16.xpose.msra.mxu0 0
          %3471 = vmatprep.subr.bf16.mxu0 0
          %3472 = vmatpush1.bf16.xpose.msra.mxu0 0
          %3473 = vmatprep.subr.bf16.mxu0 0
          %3474 = vmatpush1.bf16.xpose.msra.mxu0 0
          %3475 = vmatprep.subr.bf16.mxu0 0
          %3476 = vmatpush1.bf16.xpose.msra.mxu0 0
          %3477 = vmatprep.subr.bf16.mxu0 0
          %3478 = vmatpush1.bf16.xpose.msra.mxu0 0
          %3479 = vmatprep.subr.bf16.mxu0 0
          %3480 = vmatpush1.bf16.xpose.msra.mxu0 0
          %3481 = vmatprep.subr.bf16.mxu0 0
          %3482 = vmatpush1.bf16.xpose.msra.mxu0 0
          %3483 = vmatprep.subr.bf16.mxu0 0
          %3484 = vmatpush1.bf16.xpose.msra.mxu0 0
          %3485 = vmatprep.subr.bf16.mxu0 0
          %3486 = vmatpush1.bf16.xpose.msra.mxu0 0
          %3487 = vmatprep.subr.bf16.mxu0 0
          %3488 = vmatpush1.bf16.xpose.msra.mxu0 0
          %3489 = vmatprep.subr.bf16.mxu0 0
          %3490 = vmatpush1.bf16.xpose.msra.mxu0 0
          %3491 = vmatprep.subr.bf16.mxu0 0
          %3492 = vmatpush1.bf16.xpose.msra.mxu0 0
          %3493 = vmatprep.mubr.bf16.mxu0 0
          %3494 = vmatmul.mubr.bf16.gmra.mrb[0].mxu0 %v3447
          %v3495 = vpop.f32.mrb[0].mxu0
          %v3496 = vadd.f32 0.0, %v3495
          %v3497 = vpop.f32.mrb[0].mxu0
          %v3498 = vpop.f32.mrb[0].mxu0
          %v3499 = vadd.f32 0.0, %v3498
          %v3500 = vpop.f32.mrb[0].mxu0
          %3501 = vdwg.mxu0
          %v3502 = vunpack.c.l.b16 %v959
          %v3503 = vunpack.c.l.b16 %v971
          %v3504 = vpack.c.b16 %v3503, %v3502
          %v3505 = vunpack.c.l.b16 %v2079
          %v3506 = vunpack.c.l.b16 %v2091
          %v3507 = vunpack.c.l.b16 %v2103
          %v3508 = vunpack.c.l.b16 %v2115
          %v3509 = vunpack.c.l.b16 %v2127
          %v3510 = vunpack.c.l.b16 %v2139
          %v3511 = vunpack.c.l.b16 %v2151
          %v3512 = vunpack.c.l.b16 %v2163
          %v3513 = vpack.c.b16 %v3506, %v3505
          %v3514 = vpack.c.b16 %v3508, %v3507
          %v3515 = vpack.c.b16 %v3510, %v3509
          %v3516 = vpack.c.b16 %v3512, %v3511
          %v3518 = vsel %vm3374, %v3504, 0
          %v3521 = vsel %vm3374, %v3513, 0
          %v3524 = vsel %vm3374, %v3514, 0
          %v3527 = vsel %vm3374, %v3515, 0
          %v3530 = vsel %vm3374, %v3516, 0
          %3532 = vmatprep.subr.bf16.mxu0 0
          %3533 = vmatpush1.bf16.xpose.msra.mxu0 %v3521
          %3534 = vmatprep.subr.bf16.mxu0 0
          %3535 = vmatpush1.bf16.xpose.msra.mxu0 %v3524
          %3536 = vmatprep.subr.bf16.mxu0 0
          %3537 = vmatpush1.bf16.xpose.msra.mxu0 %v3527
          %3538 = vmatprep.subr.bf16.mxu0 0
          %3539 = vmatpush1.bf16.xpose.msra.mxu0 %v3530
          %3540 = vmatprep.subr.bf16.mxu0 0
          %3541 = vmatpush1.bf16.xpose.msra.mxu0 0
          %3542 = vmatprep.subr.bf16.mxu0 0
          %3543 = vmatpush1.bf16.xpose.msra.mxu0 0
          %3544 = vmatprep.subr.bf16.mxu0 0
          %3545 = vmatpush1.bf16.xpose.msra.mxu0 0
          %3546 = vmatprep.subr.bf16.mxu0 0
          %3547 = vmatpush1.bf16.xpose.msra.mxu0 0
          %3548 = vmatprep.subr.bf16.mxu0 0
          %3549 = vmatpush1.bf16.xpose.msra.mxu0 0
          %3550 = vmatprep.subr.bf16.mxu0 0
          %3551 = vmatpush1.bf16.xpose.msra.mxu0 0
          %3552 = vmatprep.subr.bf16.mxu0 0
          %3553 = vmatpush1.bf16.xpose.msra.mxu0 0
          %3554 = vmatprep.subr.bf16.mxu0 0
          %3555 = vmatpush1.bf16.xpose.msra.mxu0 0
          %3556 = vmatprep.subr.bf16.mxu0 0
          %3557 = vmatpush1.bf16.xpose.msra.mxu0 0
          %3558 = vmatprep.subr.bf16.mxu0 0
          %3559 = vmatpush1.bf16.xpose.msra.mxu0 0
          %3560 = vmatprep.subr.bf16.mxu0 0
          %3561 = vmatpush1.bf16.xpose.msra.mxu0 0
          %3562 = vmatprep.subr.bf16.mxu0 0
          %3563 = vmatpush1.bf16.xpose.msra.mxu0 0
          %3564 = vmatprep.mubr.bf16.mxu0 0
          %3565 = vmatmul.mubr.bf16.gmra.mrb[0].mxu0 %v3518
          %v3566 = vpop.f32.mrb[0].mxu0
          %v3567 = vadd.f32 0.0, %v3566
          %v3568 = vpop.f32.mrb[0].mxu0
          %v3569 = vpop.f32.mrb[0].mxu0
          %v3570 = vadd.f32 0.0, %v3569
          %v3571 = vpop.f32.mrb[0].mxu0
          %3572 = vdwg.mxu0
          %v3573 = vunpack.c.l.b16 %v962
          %v3574 = vunpack.c.l.b16 %v974
          %v3575 = vpack.c.b16 %v3574, %v3573
          %v3576 = vunpack.c.l.b16 %v2082
          %v3577 = vunpack.c.l.b16 %v2094
          %v3578 = vunpack.c.l.b16 %v2106
          %v3579 = vunpack.c.l.b16 %v2118
          %v3580 = vunpack.c.l.b16 %v2130
          %v3581 = vunpack.c.l.b16 %v2142
          %v3582 = vunpack.c.l.b16 %v2154
          %v3583 = vunpack.c.l.b16 %v2166
          %v3584 = vpack.c.b16 %v3577, %v3576
          %v3585 = vpack.c.b16 %v3579, %v3578
          %v3586 = vpack.c.b16 %v3581, %v3580
          %v3587 = vpack.c.b16 %v3583, %v3582
          %v3589 = vsel %vm3374, %v3575, 0
          %v3592 = vsel %vm3374, %v3584, 0
          %v3595 = vsel %vm3374, %v3585, 0
          %v3598 = vsel %vm3374, %v3586, 0
          %v3601 = vsel %vm3374, %v3587, 0
          %3603 = vmatprep.subr.bf16.mxu0 0
          %3604 = vmatpush1.bf16.xpose.msra.mxu0 %v3592
          %3605 = vmatprep.subr.bf16.mxu0 0
          %3606 = vmatpush1.bf16.xpose.msra.mxu0 %v3595
          %3607 = vmatprep.subr.bf16.mxu0 0
          %3608 = vmatpush1.bf16.xpose.msra.mxu0 %v3598
          %3609 = vmatprep.subr.bf16.mxu0 0
          %3610 = vmatpush1.bf16.xpose.msra.mxu0 %v3601
          %3611 = vmatprep.subr.bf16.mxu0 0
          %3612 = vmatpush1.bf16.xpose.msra.mxu0 0
          %3613 = vmatprep.subr.bf16.mxu0 0
          %3614 = vmatpush1.bf16.xpose.msra.mxu0 0
          %3615 = vmatprep.subr.bf16.mxu0 0
          %3616 = vmatpush1.bf16.xpose.msra.mxu0 0
          %3617 = vmatprep.subr.bf16.mxu0 0
          %3618 = vmatpush1.bf16.xpose.msra.mxu0 0
          %3619 = vmatprep.subr.bf16.mxu0 0
          %3620 = vmatpush1.bf16.xpose.msra.mxu0 0
          %3621 = vmatprep.subr.bf16.mxu0 0
          %3622 = vmatpush1.bf16.xpose.msra.mxu0 0
          %3623 = vmatprep.subr.bf16.mxu0 0
          %3624 = vmatpush1.bf16.xpose.msra.mxu0 0
          %3625 = vmatprep.subr.bf16.mxu0 0
          %3626 = vmatpush1.bf16.xpose.msra.mxu0 0
          %3627 = vmatprep.subr.bf16.mxu0 0
          %3628 = vmatpush1.bf16.xpose.msra.mxu0 0
          %3629 = vmatprep.subr.bf16.mxu0 0
          %3630 = vmatpush1.bf16.xpose.msra.mxu0 0
          %3631 = vmatprep.subr.bf16.mxu0 0
          %3632 = vmatpush1.bf16.xpose.msra.mxu0 0
          %3633 = vmatprep.subr.bf16.mxu0 0
          %3634 = vmatpush1.bf16.xpose.msra.mxu0 0
          %3635 = vmatprep.mubr.bf16.mxu0 0
          %3636 = vmatmul.mubr.bf16.gmra.mrb[0].mxu0 %v3589
          %v3637 = vpop.f32.mrb[0].mxu0
          %v3638 = vadd.f32 0.0, %v3637
          %v3639 = vpop.f32.mrb[0].mxu0
          %v3640 = vpop.f32.mrb[0].mxu0
          %v3641 = vadd.f32 0.0, %v3640
          %v3642 = vpop.f32.mrb[0].mxu0
          %3643 = vdwg.mxu0
          %v3644 = vmul.f32 %v3425, 0.25
          %v3645 = vmul.f32 %v3428, 0.25
          %v3646 = vmul.f32 %v3496, 0.25
          %v3647 = vmul.f32 %v3499, 0.25
          %v3648 = vmul.f32 %v3567, 0.25
          %v3649 = vmul.f32 %v3570, 0.25
          %v3650 = vmul.f32 %v3638, 0.25
          %v3651 = vmul.f32 %v3641, 0.25
          %v3652 = vlaneseq
          %v3653 = vshrl.u32 %v3652, 7
          %v3654 = vadd.s32 %v3653, 8
          %v3655 = vstv %s652
          %v3656 = vadd.s32 %v3655, %v3653
          %v3657 = vadd.s32 %v3655, %v3654
          %v3658 = vlaneseq
          %v3659 = vand.u32 %v3658, 127
          %vm3660 = vcmp.le.s32.totalorder %v3659, %v3656
          %vm3661 = vcmp.le.s32.totalorder %v3659, %v3657
          %v3662 = vsel %vm3660, 1, 0
          %v3663 = vsel %vm3661, 1, 0
          %vm3664 = vcmp.eq.s32.totalorder %v3662, 1
          %vm3665 = vcmp.eq.s32.totalorder %v3663, 1
          %v3666 = vsel %vm3664, %v3644, -1e+30
          %v3667 = vsel %vm3665, %v3645, -1e+30
          %v3668 = vsel %vm3664, %v3646, -1e+30
          %v3669 = vsel %vm3665, %v3647, -1e+30
          %v3670 = vsel %vm3664, %v3648, -1e+30
          %v3671 = vsel %vm3665, %v3649, -1e+30
          %v3672 = vsel %vm3664, %v3650, -1e+30
          %v3673 = vsel %vm3665, %v3651, -1e+30
          %vm3674 = vcmask 523264
          %v3675 = vsel %vm3674, %v3666, -inf
          %3676 = vmax.xlane.f32.xlu0 %v3675
          %v3677 = vpop.xlane.xlu0 %3676
          %v3678 = vsel %vm3674, %v3667, -inf
          %3679 = vmax.xlane.f32.xlu0 %v3678
          %v3680 = vpop.xlane.xlu0 %3679
          %v3681 = vsel %vm3674, %v3668, -inf
          %3682 = vmax.xlane.f32.xlu0 %v3681
          %v3683 = vpop.xlane.xlu0 %3682
          %v3684 = vsel %vm3674, %v3669, -inf
          %3685 = vmax.xlane.f32.xlu0 %v3684
          %v3686 = vpop.xlane.xlu0 %3685
          %v3687 = vsel %vm3674, %v3670, -inf
          %3688 = vmax.xlane.f32.xlu0 %v3687
          %v3689 = vpop.xlane.xlu0 %3688
          %v3690 = vsel %vm3674, %v3671, -inf
          %3691 = vmax.xlane.f32.xlu0 %v3690
          %v3692 = vpop.xlane.xlu0 %3691
          %v3693 = vsel %vm3674, %v3672, -inf
          %3694 = vmax.xlane.f32.xlu0 %v3693
          %v3695 = vpop.xlane.xlu0 %3694
          %v3696 = vsel %vm3674, %v3673, -inf
          %3697 = vmax.xlane.f32.xlu0 %v3696
          %v3698 = vpop.xlane.xlu0 %3697
          %v3699 = vsub.f32 %v3666, %v3677
          %v3700 = vsub.f32 %v3667, %v3680
          %v3701 = vsub.f32 %v3668, %v3683
          %v3702 = vsub.f32 %v3669, %v3686
          %v3703 = vsub.f32 %v3670, %v3689
          %v3704 = vsub.f32 %v3671, %v3692
          %v3705 = vsub.f32 %v3672, %v3695
          %v3706 = vsub.f32 %v3673, %v3698
          %v3707 = vmul.f32 %v3699, 1.442695
          %v3708 = vpow.pop %v3707
          %v3709 = vmul.f32 %v3700, 1.442695
          %v3710 = vpow.pop %v3709
          %v3711 = vmul.f32 %v3701, 1.442695
          %v3712 = vpow.pop %v3711
          %v3713 = vmul.f32 %v3702, 1.442695
          %v3714 = vpow.pop %v3713
          %v3715 = vmul.f32 %v3703, 1.442695
          %v3716 = vpow.pop %v3715
          %v3717 = vmul.f32 %v3704, 1.442695
          %v3718 = vpow.pop %v3717
          %v3719 = vmul.f32 %v3705, 1.442695
          %v3720 = vpow.pop %v3719
          %v3721 = vmul.f32 %v3706, 1.442695
          %v3722 = vpow.pop %v3721
          %v3723 = vsel %vm3674, %v3708, 0.0
          %3724 = vadd.xlane.f32.xlu0 %v3723
          %v3725 = vpop.xlane.xlu0 %3724
          %v3726 = vsel %vm3674, %v3710, 0.0
          %3727 = vadd.xlane.f32.xlu0 %v3726
          %v3728 = vpop.xlane.xlu0 %3727
          %v3729 = vsel %vm3674, %v3712, 0.0
          %3730 = vadd.xlane.f32.xlu0 %v3729
          %v3731 = vpop.xlane.xlu0 %3730
          %v3732 = vsel %vm3674, %v3714, 0.0
          %3733 = vadd.xlane.f32.xlu0 %v3732
          %v3734 = vpop.xlane.xlu0 %3733
          %v3735 = vsel %vm3674, %v3716, 0.0
          %3736 = vadd.xlane.f32.xlu0 %v3735
          %v3737 = vpop.xlane.xlu0 %3736
          %v3738 = vsel %vm3674, %v3718, 0.0
          %3739 = vadd.xlane.f32.xlu0 %v3738
          %v3740 = vpop.xlane.xlu0 %3739
          %v3741 = vsel %vm3674, %v3720, 0.0
          %3742 = vadd.xlane.f32.xlu0 %v3741
          %v3743 = vpop.xlane.xlu0 %3742
          %v3744 = vsel %vm3674, %v3722, 0.0
          %3745 = vadd.xlane.f32.xlu0 %v3744
          %v3746 = vpop.xlane.xlu0 %3745
          %v3747 = vrcp.pop %v3725
          %v3748 = vmul.f32 %v3708, %v3747
          %v3749 = vrcp.pop %v3728
          %v3750 = vmul.f32 %v3710, %v3749
          %v3751 = vrcp.pop %v3731
          %v3752 = vmul.f32 %v3712, %v3751
          %v3753 = vrcp.pop %v3734
          %v3754 = vmul.f32 %v3714, %v3753
          %v3755 = vrcp.pop %v3737
          %v3756 = vmul.f32 %v3716, %v3755
          %v3757 = vrcp.pop %v3740
          %v3758 = vmul.f32 %v3718, %v3757
          %v3759 = vrcp.pop %v3743
          %v3760 = vmul.f32 %v3720, %v3759
          %v3761 = vrcp.pop %v3746
          %v3762 = vmul.f32 %v3722, %v3761
          %v3763 = vpack.c.bf16 %v3750, %v3748
          %v3764 = vpack.c.bf16 %v3754, %v3752
          %v3765 = vpack.c.bf16 %v3758, %v3756
          %v3766 = vpack.c.bf16 %v3762, %v3760
          %v3767 = vunpack.c.l.b16 %v3265
          %v3768 = vunpack.c.l.b16 %v3277
          %v3769 = vunpack.c.l.b16 %v3289
          %v3770 = vunpack.c.l.b16 %v3301
          %v3771 = vunpack.c.l.b16 %v3313
          %v3772 = vunpack.c.l.b16 %v3325
          %v3773 = vunpack.c.l.b16 %v3337
          %v3774 = vunpack.c.l.b16 %v3349
          %v3775 = vpack.c.b16 %v3768, %v3767
          %v3776 = vpack.c.b16 %v3770, %v3769
          %v3777 = vpack.c.b16 %v3772, %v3771
          %v3778 = vpack.c.b16 %v3774, %v3773
          %v3784 = vsel %vm3674, %v3763, 0
          %3786 = vmatprep.subr.bf16.mxu0 0
          %3787 = vmatpush1.bf16.msra.mxu0 %v3775
          %3788 = vmatprep.subr.bf16.mxu0 0
          %3789 = vmatpush1.bf16.msra.mxu0 %v3776
          %3790 = vmatprep.subr.bf16.mxu0 0
          %3791 = vmatpush1.bf16.msra.mxu0 %v3777
          %3792 = vmatprep.subr.bf16.mxu0 0
          %3793 = vmatpush1.bf16.msra.mxu0 %v3778
          %3794 = vmatprep.subr.bf16.mxu0 0
          %3795 = vmatpush1.bf16.msra.mxu0 0
          %3796 = vmatprep.subr.bf16.mxu0 0
          %3797 = vmatpush1.bf16.msra.mxu0 0
          %3798 = vmatprep.subr.bf16.mxu0 0
          %3799 = vmatpush1.bf16.msra.mxu0 0
          %3800 = vmatprep.subr.bf16.mxu0 0
          %3801 = vmatpush1.bf16.msra.mxu0 0
          %3802 = vmatprep.subr.bf16.mxu0 0
          %3803 = vmatpush1.bf16.msra.mxu0 0
          %3804 = vmatprep.subr.bf16.mxu0 0
          %3805 = vmatpush1.bf16.msra.mxu0 0
          %3806 = vmatprep.subr.bf16.mxu0 0
          %3807 = vmatpush1.bf16.msra.mxu0 0
          %3808 = vmatprep.subr.bf16.mxu0 0
          %3809 = vmatpush1.bf16.msra.mxu0 0
          %3810 = vmatprep.subr.bf16.mxu0 0
          %3811 = vmatpush1.bf16.msra.mxu0 0
          %3812 = vmatprep.subr.bf16.mxu0 0
          %3813 = vmatpush1.bf16.msra.mxu0 0
          %3814 = vmatprep.subr.bf16.mxu0 0
          %3815 = vmatpush1.bf16.msra.mxu0 0
          %3816 = vmatprep.subr.bf16.mxu0 0
          %3817 = vmatpush1.bf16.msra.mxu0 0
          %3818 = vmatprep.mubr.bf16.mxu0 0
          %3819 = vmatmul.mubr.bf16.gmra.mrb[0].mxu0 %v3784
          %v3820 = vpop.f32.mrb[0].mxu0
          %v3821 = vadd.f32 0.0, %v3820
          %v3822 = vpop.f32.mrb[0].mxu0
          %v3823 = vpop.f32.mrb[0].mxu0
          %v3824 = vadd.f32 0.0, %v3823
          %v3825 = vpop.f32.mrb[0].mxu0
          %3826 = vdwg.mxu0
          %v3827 = vunpack.c.l.b16 %v3268
          %v3828 = vunpack.c.l.b16 %v3280
          %v3829 = vunpack.c.l.b16 %v3292
          %v3830 = vunpack.c.l.b16 %v3304
          %v3831 = vunpack.c.l.b16 %v3316
          %v3832 = vunpack.c.l.b16 %v3328
          %v3833 = vunpack.c.l.b16 %v3340
          %v3834 = vunpack.c.l.b16 %v3352
          %v3835 = vpack.c.b16 %v3828, %v3827
          %v3836 = vpack.c.b16 %v3830, %v3829
          %v3837 = vpack.c.b16 %v3832, %v3831
          %v3838 = vpack.c.b16 %v3834, %v3833
          %v3844 = vsel %vm3674, %v3764, 0
          %3846 = vmatprep.subr.bf16.mxu0 0
          %3847 = vmatpush1.bf16.msra.mxu0 %v3835
          %3848 = vmatprep.subr.bf16.mxu0 0
          %3849 = vmatpush1.bf16.msra.mxu0 %v3836
          %3850 = vmatprep.subr.bf16.mxu0 0
          %3851 = vmatpush1.bf16.msra.mxu0 %v3837
          %3852 = vmatprep.subr.bf16.mxu0 0
          %3853 = vmatpush1.bf16.msra.mxu0 %v3838
          %3854 = vmatprep.subr.bf16.mxu0 0
          %3855 = vmatpush1.bf16.msra.mxu0 0
          %3856 = vmatprep.subr.bf16.mxu0 0
          %3857 = vmatpush1.bf16.msra.mxu0 0
          %3858 = vmatprep.subr.bf16.mxu0 0
          %3859 = vmatpush1.bf16.msra.mxu0 0
          %3860 = vmatprep.subr.bf16.mxu0 0
          %3861 = vmatpush1.bf16.msra.mxu0 0
          %3862 = vmatprep.subr.bf16.mxu0 0
          %3863 = vmatpush1.bf16.msra.mxu0 0
          %3864 = vmatprep.subr.bf16.mxu0 0
          %3865 = vmatpush1.bf16.msra.mxu0 0
          %3866 = vmatprep.subr.bf16.mxu0 0
          %3867 = vmatpush1.bf16.msra.mxu0 0
          %3868 = vmatprep.subr.bf16.mxu0 0
          %3869 = vmatpush1.bf16.msra.mxu0 0
          %3870 = vmatprep.subr.bf16.mxu0 0
          %3871 = vmatpush1.bf16.msra.mxu0 0
          %3872 = vmatprep.subr.bf16.mxu0 0
          %3873 = vmatpush1.bf16.msra.mxu0 0
          %3874 = vmatprep.subr.bf16.mxu0 0
          %3875 = vmatpush1.bf16.msra.mxu0 0
          %3876 = vmatprep.subr.bf16.mxu0 0
          %3877 = vmatpush1.bf16.msra.mxu0 0
          %3878 = vmatprep.mubr.bf16.mxu0 0
          %3879 = vmatmul.mubr.bf16.gmra.mrb[0].mxu0 %v3844
          %v3880 = vpop.f32.mrb[0].mxu0
          %v3881 = vadd.f32 0.0, %v3880
          %v3882 = vpop.f32.mrb[0].mxu0
          %v3883 = vpop.f32.mrb[0].mxu0
          %v3884 = vadd.f32 0.0, %v3883
          %v3885 = vpop.f32.mrb[0].mxu0
          %3886 = vdwg.mxu0
          %v3887 = vunpack.c.l.b16 %v3271
          %v3888 = vunpack.c.l.b16 %v3283
          %v3889 = vunpack.c.l.b16 %v3295
          %v3890 = vunpack.c.l.b16 %v3307
          %v3891 = vunpack.c.l.b16 %v3319
          %v3892 = vunpack.c.l.b16 %v3331
          %v3893 = vunpack.c.l.b16 %v3343
          %v3894 = vunpack.c.l.b16 %v3355
          %v3895 = vpack.c.b16 %v3888, %v3887
          %v3896 = vpack.c.b16 %v3890, %v3889
          %v3897 = vpack.c.b16 %v3892, %v3891
          %v3898 = vpack.c.b16 %v3894, %v3893
          %v3904 = vsel %vm3674, %v3765, 0
          %3906 = vmatprep.subr.bf16.mxu0 0
          %3907 = vmatpush1.bf16.msra.mxu0 %v3895
          %3908 = vmatprep.subr.bf16.mxu0 0
          %3909 = vmatpush1.bf16.msra.mxu0 %v3896
          %3910 = vmatprep.subr.bf16.mxu0 0
          %3911 = vmatpush1.bf16.msra.mxu0 %v3897
          %3912 = vmatprep.subr.bf16.mxu0 0
          %3913 = vmatpush1.bf16.msra.mxu0 %v3898
          %3914 = vmatprep.subr.bf16.mxu0 0
          %3915 = vmatpush1.bf16.msra.mxu0 0
          %3916 = vmatprep.subr.bf16.mxu0 0
          %3917 = vmatpush1.bf16.msra.mxu0 0
          %3918 = vmatprep.subr.bf16.mxu0 0
          %3919 = vmatpush1.bf16.msra.mxu0 0
          %3920 = vmatprep.subr.bf16.mxu0 0
          %3921 = vmatpush1.bf16.msra.mxu0 0
          %3922 = vmatprep.subr.bf16.mxu0 0
          %3923 = vmatpush1.bf16.msra.mxu0 0
          %3924 = vmatprep.subr.bf16.mxu0 0
          %3925 = vmatpush1.bf16.msra.mxu0 0
          %3926 = vmatprep.subr.bf16.mxu0 0
          %3927 = vmatpush1.bf16.msra.mxu0 0
          %3928 = vmatprep.subr.bf16.mxu0 0
          %3929 = vmatpush1.bf16.msra.mxu0 0
          %3930 = vmatprep.subr.bf16.mxu0 0
          %3931 = vmatpush1.bf16.msra.mxu0 0
          %3932 = vmatprep.subr.bf16.mxu0 0
          %3933 = vmatpush1.bf16.msra.mxu0 0
          %3934 = vmatprep.subr.bf16.mxu0 0
          %3935 = vmatpush1.bf16.msra.mxu0 0
          %3936 = vmatprep.subr.bf16.mxu0 0
          %3937 = vmatpush1.bf16.msra.mxu0 0
          %3938 = vmatprep.mubr.bf16.mxu0 0
          %3939 = vmatmul.mubr.bf16.gmra.mrb[0].mxu0 %v3904
          %v3940 = vpop.f32.mrb[0].mxu0
          %v3941 = vadd.f32 0.0, %v3940
          %v3942 = vpop.f32.mrb[0].mxu0
          %v3943 = vpop.f32.mrb[0].mxu0
          %v3944 = vadd.f32 0.0, %v3943
          %v3945 = vpop.f32.mrb[0].mxu0
          %3946 = vdwg.mxu0
          %v3947 = vunpack.c.l.b16 %v3274
          %v3948 = vunpack.c.l.b16 %v3286
          %v3949 = vunpack.c.l.b16 %v3298
          %v3950 = vunpack.c.l.b16 %v3310
          %v3951 = vunpack.c.l.b16 %v3322
          %v3952 = vunpack.c.l.b16 %v3334
          %v3953 = vunpack.c.l.b16 %v3346
          %v3954 = vunpack.c.l.b16 %v3358
          %v3955 = vpack.c.b16 %v3948, %v3947
          %v3956 = vpack.c.b16 %v3950, %v3949
          %v3957 = vpack.c.b16 %v3952, %v3951
          %v3958 = vpack.c.b16 %v3954, %v3953
          %v3964 = vsel %vm3674, %v3766, 0
          %3966 = vmatprep.subr.bf16.mxu0 0
          %3967 = vmatpush1.bf16.msra.mxu0 %v3955
          %3968 = vmatprep.subr.bf16.mxu0 0
          %3969 = vmatpush1.bf16.msra.mxu0 %v3956
          %3970 = vmatprep.subr.bf16.mxu0 0
          %3971 = vmatpush1.bf16.msra.mxu0 %v3957
          %3972 = vmatprep.subr.bf16.mxu0 0
          %3973 = vmatpush1.bf16.msra.mxu0 %v3958
          %3974 = vmatprep.subr.bf16.mxu0 0
          %3975 = vmatpush1.bf16.msra.mxu0 0
          %3976 = vmatprep.subr.bf16.mxu0 0
          %3977 = vmatpush1.bf16.msra.mxu0 0
          %3978 = vmatprep.subr.bf16.mxu0 0
          %3979 = vmatpush1.bf16.msra.mxu0 0
          %3980 = vmatprep.subr.bf16.mxu0 0
          %3981 = vmatpush1.bf16.msra.mxu0 0
          %3982 = vmatprep.subr.bf16.mxu0 0
          %3983 = vmatpush1.bf16.msra.mxu0 0
          %3984 = vmatprep.subr.bf16.mxu0 0
          %3985 = vmatpush1.bf16.msra.mxu0 0
          %3986 = vmatprep.subr.bf16.mxu0 0
          %3987 = vmatpush1.bf16.msra.mxu0 0
          %3988 = vmatprep.subr.bf16.mxu0 0
          %3989 = vmatpush1.bf16.msra.mxu0 0
          %3990 = vmatprep.subr.bf16.mxu0 0
          %3991 = vmatpush1.bf16.msra.mxu0 0
          %3992 = vmatprep.subr.bf16.mxu0 0
          %3993 = vmatpush1.bf16.msra.mxu0 0
          %3994 = vmatprep.subr.bf16.mxu0 0
          %3995 = vmatpush1.bf16.msra.mxu0 0
          %3996 = vmatprep.subr.bf16.mxu0 0
          %3997 = vmatpush1.bf16.msra.mxu0 0
          %3998 = vmatprep.mubr.bf16.mxu0 0
          %3999 = vmatmul.mubr.bf16.gmra.mrb[0].mxu0 %v3964
          %v4000 = vpop.f32.mrb[0].mxu0
          %v4001 = vadd.f32 0.0, %v4000
          %v4002 = vpop.f32.mrb[0].mxu0
          %v4003 = vpop.f32.mrb[0].mxu0
          %v4004 = vadd.f32 0.0, %v4003
          %v4005 = vpop.f32.mrb[0].mxu0
          %4006 = vdwg.mxu0
          %v4007 = vcombine.low %v3821, %v3941
          %v4008 = vcombine.high %v3821, %v3941
          %v4010 = vunpack.c.l.s4 1983009808
          %v4011 = vunpack.c.0.s8 %v4010
          %v4012 = vlaneseq
          %v4013 = vshrl.u32 %v4012, 7
          %v4014 = vsub.s32 %v4011, %v4013
          %v4015 = vrot.slane %v4007, %v4014
          %v4017 = vunpack.c.l.s4 1983009808
          %v4018 = vunpack.c.0.s8 %v4017
          %v4019 = vlaneseq
          %v4020 = vshrl.u32 %v4019, 7
          %v4021 = vsub.s32 %v4018, %v4020
          %v4022 = vrot.slane %v4008, %v4021
          %v4023 = vcombine.low %v3881, %v4001
          %v4024 = vcombine.high %v3881, %v4001
          %v4026 = vunpack.c.l.s4 1983009808
          %v4027 = vunpack.c.0.s8 %v4026
          %v4028 = vlaneseq
          %v4029 = vshrl.u32 %v4028, 7
          %v4030 = vsub.s32 %v4027, %v4029
          %v4031 = vrot.slane %v4023, %v4030
          %v4033 = vunpack.c.l.s4 1983009808
          %v4034 = vunpack.c.0.s8 %v4033
          %v4035 = vlaneseq
          %v4036 = vshrl.u32 %v4035, 7
          %v4037 = vsub.s32 %v4034, %v4036
          %v4038 = vrot.slane %v4024, %v4037
          %v4039 = vcombine.low %v4015, %v4031
          %v4040 = vcombine.high %v4015, %v4031
          %v4042 = vunpack.c.l.s4 1934713408
          %v4043 = vunpack.c.0.s8 %v4042
          %v4044 = vlaneseq
          %v4045 = vshrl.u32 %v4044, 7
          %v4046 = vsub.s32 %v4043, %v4045
          %v4047 = vrot.slane %v4039, %v4046
          %v4049 = vunpack.c.l.s4 1934713408
          %v4050 = vunpack.c.0.s8 %v4049
          %v4051 = vlaneseq
          %v4052 = vshrl.u32 %v4051, 7
          %v4053 = vsub.s32 %v4050, %v4052
          %v4054 = vrot.slane %v4040, %v4053
          %v4055 = vcombine.low %v4022, %v4038
          %v4056 = vcombine.high %v4022, %v4038
          %v4058 = vunpack.c.l.s4 1934713408
          %v4059 = vunpack.c.0.s8 %v4058
          %v4060 = vlaneseq
          %v4061 = vshrl.u32 %v4060, 7
          %v4062 = vsub.s32 %v4059, %v4061
          %v4063 = vrot.slane %v4055, %v4062
          %v4065 = vunpack.c.l.s4 1934713408
          %v4066 = vunpack.c.0.s8 %v4065
          %v4067 = vlaneseq
          %v4068 = vshrl.u32 %v4067, 7
          %v4069 = vsub.s32 %v4066, %v4068
          %v4070 = vrot.slane %v4056, %v4069
          %v4071 = vcombine.high %v4047, 0.0
          %v4072 = vcombine.high %v4054, 0.0
          %v4073 = vcombine.high %v4063, 0.0
          %v4074 = vcombine.high %v4070, 0.0
          %v4075 = vcombine.low %v3824, %v3944
          %v4076 = vcombine.high %v3824, %v3944
          %v4078 = vunpack.c.l.s4 1983009808
          %v4079 = vunpack.c.0.s8 %v4078
          %v4080 = vlaneseq
          %v4081 = vshrl.u32 %v4080, 7
          %v4082 = vsub.s32 %v4079, %v4081
          %v4083 = vrot.slane %v4075, %v4082
          %v4085 = vunpack.c.l.s4 1983009808
          %v4086 = vunpack.c.0.s8 %v4085
          %v4087 = vlaneseq
          %v4088 = vshrl.u32 %v4087, 7
          %v4089 = vsub.s32 %v4086, %v4088
          %v4090 = vrot.slane %v4076, %v4089
          %v4091 = vcombine.low %v3884, %v4004
          %v4092 = vcombine.high %v3884, %v4004
          %v4094 = vunpack.c.l.s4 1983009808
          %v4095 = vunpack.c.0.s8 %v4094
          %v4096 = vlaneseq
          %v4097 = vshrl.u32 %v4096, 7
          %v4098 = vsub.s32 %v4095, %v4097
          %v4099 = vrot.slane %v4091, %v4098
          %v4101 = vunpack.c.l.s4 1983009808
          %v4102 = vunpack.c.0.s8 %v4101
          %v4103 = vlaneseq
          %v4104 = vshrl.u32 %v4103, 7
          %v4105 = vsub.s32 %v4102, %v4104
          %v4106 = vrot.slane %v4092, %v4105
          %v4107 = vcombine.low %v4083, %v4099
          %v4108 = vcombine.high %v4083, %v4099
          %v4110 = vunpack.c.l.s4 1934713408
          %v4111 = vunpack.c.0.s8 %v4110
          %v4112 = vlaneseq
          %v4113 = vshrl.u32 %v4112, 7
          %v4114 = vsub.s32 %v4111, %v4113
          %v4115 = vrot.slane %v4107, %v4114
          %v4117 = vunpack.c.l.s4 1934713408
          %v4118 = vunpack.c.0.s8 %v4117
          %v4119 = vlaneseq
          %v4120 = vshrl.u32 %v4119, 7
          %v4121 = vsub.s32 %v4118, %v4120
          %v4122 = vrot.slane %v4108, %v4121
          %v4123 = vcombine.low %v4090, %v4106
          %v4124 = vcombine.high %v4090, %v4106
          %v4126 = vunpack.c.l.s4 1934713408
          %v4127 = vunpack.c.0.s8 %v4126
          %v4128 = vlaneseq
          %v4129 = vshrl.u32 %v4128, 7
          %v4130 = vsub.s32 %v4127, %v4129
          %v4131 = vrot.slane %v4123, %v4130
          %v4133 = vunpack.c.l.s4 1934713408
          %v4134 = vunpack.c.0.s8 %v4133
          %v4135 = vlaneseq
          %v4136 = vshrl.u32 %v4135, 7
          %v4137 = vsub.s32 %v4134, %v4136
          %v4138 = vrot.slane %v4124, %v4137
          %v4139 = vcombine.high %v4115, 0.0
          %v4140 = vcombine.high %v4122, 0.0
          %v4141 = vcombine.high %v4131, 0.0
          %v4142 = vcombine.high %v4138, 0.0
          %v4143 = vcombine.low %v4047, %v4054
          %v4145 = vunpack.c.l.s4 1983009808
          %v4146 = vunpack.c.0.s8 %v4145
          %v4147 = vlaneseq
          %v4148 = vshrl.u32 %v4147, 7
          %v4149 = vsub.s32 %v4146, %v4148
          %v4150 = vrot.slane %v4143, %v4149
          %v4151 = vcombine.low %v4071, %v4072
          %v4153 = vunpack.c.l.s4 1983009808
          %v4154 = vunpack.c.0.s8 %v4153
          %v4155 = vlaneseq
          %v4156 = vshrl.u32 %v4155, 7
          %v4157 = vsub.s32 %v4154, %v4156
          %v4158 = vrot.slane %v4151, %v4157
          %v4159 = vcombine.low %v4063, %v4070
          %v4161 = vunpack.c.l.s4 1983009808
          %v4162 = vunpack.c.0.s8 %v4161
          %v4163 = vlaneseq
          %v4164 = vshrl.u32 %v4163, 7
          %v4165 = vsub.s32 %v4162, %v4164
          %v4166 = vrot.slane %v4159, %v4165
          %v4167 = vcombine.low %v4073, %v4074
          %v4169 = vunpack.c.l.s4 1983009808
          %v4170 = vunpack.c.0.s8 %v4169
          %v4171 = vlaneseq
          %v4172 = vshrl.u32 %v4171, 7
          %v4173 = vsub.s32 %v4170, %v4172
          %v4174 = vrot.slane %v4167, %v4173
          %v4175 = vcombine.low %v4150, %v4158
          %v4176 = vcombine.high %v4150, %v4158
          %v4178 = vunpack.c.l.s4 1934713408
          %v4179 = vunpack.c.0.s8 %v4178
          %v4180 = vlaneseq
          %v4181 = vshrl.u32 %v4180, 7
          %v4182 = vsub.s32 %v4179, %v4181
          %v4183 = vrot.slane %v4175, %v4182
          %v4185 = vunpack.c.l.s4 1934713408
          %v4186 = vunpack.c.0.s8 %v4185
          %v4187 = vlaneseq
          %v4188 = vshrl.u32 %v4187, 7
          %v4189 = vsub.s32 %v4186, %v4188
          %v4190 = vrot.slane %v4176, %v4189
          %v4191 = vcombine.low %v4166, %v4174
          %v4192 = vcombine.high %v4166, %v4174
          %v4194 = vunpack.c.l.s4 1934713408
          %v4195 = vunpack.c.0.s8 %v4194
          %v4196 = vlaneseq
          %v4197 = vshrl.u32 %v4196, 7
          %v4198 = vsub.s32 %v4195, %v4197
          %v4199 = vrot.slane %v4191, %v4198
          %v4201 = vunpack.c.l.s4 1934713408
          %v4202 = vunpack.c.0.s8 %v4201
          %v4203 = vlaneseq
          %v4204 = vshrl.u32 %v4203, 7
          %v4205 = vsub.s32 %v4202, %v4204
          %v4206 = vrot.slane %v4192, %v4205
          %v4207 = vcombine.low %v4183, %v4199
          %v4208 = vcombine.high %v4183, %v4199
          %v4209 = vcombine.low %v4190, %v4206
          %v4210 = vcombine.high %v4190, %v4206
          %v4211 = vcombine.low %v4115, %v4122
          %v4213 = vunpack.c.l.s4 1983009808
          %v4214 = vunpack.c.0.s8 %v4213
          %v4215 = vlaneseq
          %v4216 = vshrl.u32 %v4215, 7
          %v4217 = vsub.s32 %v4214, %v4216
          %v4218 = vrot.slane %v4211, %v4217
          %v4219 = vcombine.low %v4139, %v4140
          %v4221 = vunpack.c.l.s4 1983009808
          %v4222 = vunpack.c.0.s8 %v4221
          %v4223 = vlaneseq
          %v4224 = vshrl.u32 %v4223, 7
          %v4225 = vsub.s32 %v4222, %v4224
          %v4226 = vrot.slane %v4219, %v4225
          %v4227 = vcombine.low %v4131, %v4138
          %v4229 = vunpack.c.l.s4 1983009808
          %v4230 = vunpack.c.0.s8 %v4229
          %v4231 = vlaneseq
          %v4232 = vshrl.u32 %v4231, 7
          %v4233 = vsub.s32 %v4230, %v4232
          %v4234 = vrot.slane %v4227, %v4233
          %v4235 = vcombine.low %v4141, %v4142
          %v4237 = vunpack.c.l.s4 1983009808
          %v4238 = vunpack.c.0.s8 %v4237
          %v4239 = vlaneseq
          %v4240 = vshrl.u32 %v4239, 7
          %v4241 = vsub.s32 %v4238, %v4240
          %v4242 = vrot.slane %v4235, %v4241
          %v4243 = vcombine.low %v4218, %v4226
          %v4244 = vcombine.high %v4218, %v4226
          %v4246 = vunpack.c.l.s4 1934713408
          %v4247 = vunpack.c.0.s8 %v4246
          %v4248 = vlaneseq
          %v4249 = vshrl.u32 %v4248, 7
          %v4250 = vsub.s32 %v4247, %v4249
          %v4251 = vrot.slane %v4243, %v4250
          %v4253 = vunpack.c.l.s4 1934713408
          %v4254 = vunpack.c.0.s8 %v4253
          %v4255 = vlaneseq
          %v4256 = vshrl.u32 %v4255, 7
          %v4257 = vsub.s32 %v4254, %v4256
          %v4258 = vrot.slane %v4244, %v4257
          %v4259 = vcombine.low %v4234, %v4242
          %v4260 = vcombine.high %v4234, %v4242
          %v4262 = vunpack.c.l.s4 1934713408
          %v4263 = vunpack.c.0.s8 %v4262
          %v4264 = vlaneseq
          %v4265 = vshrl.u32 %v4264, 7
          %v4266 = vsub.s32 %v4263, %v4265
          %v4267 = vrot.slane %v4259, %v4266
          %v4269 = vunpack.c.l.s4 1934713408
          %v4270 = vunpack.c.0.s8 %v4269
          %v4271 = vlaneseq
          %v4272 = vshrl.u32 %v4271, 7
          %v4273 = vsub.s32 %v4270, %v4272
          %v4274 = vrot.slane %v4260, %v4273
          %v4275 = vcombine.low %v4251, %v4267
          %v4276 = vcombine.high %v4251, %v4267
          %v4277 = vcombine.low %v4258, %v4274
          %v4278 = vcombine.high %v4258, %v4274
          %4281 = vrot.lane.b32.xlu0 %v4208, 16
          %v4282 = vpop.permute.xlu0 %4281
          %4283 = vrot.lane.b32.xlu0 %v4276, 16
          %v4284 = vpop.permute.xlu0 %4283
          %4289 = vrot.lane.b32.xlu0 %v4209, 32
          %v4290 = vpop.permute.xlu0 %4289
          %4291 = vrot.lane.b32.xlu0 %v4277, 32
          %v4292 = vpop.permute.xlu0 %4291
          %4297 = vrot.lane.b32.xlu0 %v4210, 48
          %v4298 = vpop.permute.xlu0 %4297
          %4299 = vrot.lane.b32.xlu0 %v4278, 48
          %v4300 = vpop.permute.xlu0 %4299
          %v4303 = vsel %vm3374, %v4207, %v4282
          %v4304 = vsel %vm3374, %v4275, %v4284
          %vm4305 = vcmask 261120
          %v4306 = vsel %vm4305, %v4303, %v4290
          %v4307 = vsel %vm4305, %v4304, %v4292
          %vm4308 = vcmask 392192
          %v4309 = vsel %vm4308, %v4306, %v4298
          %v4310 = vsel %vm4308, %v4307, %v4300
          %v4311 = vpack.c.bf16 %v4310, %v4309
          %v4312 = vld [vmem:[%s4] sm:$0xf]
          %v4313 = vld [vmem:[%s4 + $0x4] sm:$0xf]
          %v4314 = vld [vmem:[%s4 + $0x8] sm:$0xf]
          %v4315 = vld [vmem:[%s4 + $0xc] sm:$0xf]
          %v4316 = vld [vmem:[%s4 + $0x10] sm:$0xf]
          %v4317 = vld [vmem:[%s4 + $0x14] sm:$0xf]
          %v4318 = vld [vmem:[%s4 + $0x18] sm:$0xf]
          %v4319 = vld [vmem:[%s4 + $0x1c] sm:$0xf]
          %v4320 = vld [vmem:[%s5] sm:$0x1]
          %v4322 = vlaneseq
          %v4323 = vshrl.u32 %v4322, 7
          %v4324 = vsub.s32 0, %v4323
          %v4325 = vrot.slane %v4320, %v4324
          %v4335 = vunpack.c.l.b16 %v4312
          %v4336 = vunpack.c.l.b16 %v4313
          %v4337 = vunpack.c.l.b16 %v4314
          %v4338 = vunpack.c.l.b16 %v4315
          %v4339 = vunpack.c.l.b16 %v4316
          %v4340 = vunpack.c.l.b16 %v4317
          %v4341 = vunpack.c.l.b16 %v4318
          %v4342 = vunpack.c.l.b16 %v4319
          %v4343 = vpack.c.b16 %v4336, %v4335
          %v4344 = vpack.c.b16 %v4338, %v4337
          %v4345 = vpack.c.b16 %v4340, %v4339
          %v4346 = vpack.c.b16 %v4342, %v4341
          %v4352 = vsel %vm3674, %v4311, 0
          %4354 = vmatprep.subr.bf16.mxu0 0
          %4355 = vmatpush1.bf16.msra.mxu0 %v4343
          %4356 = vmatprep.subr.bf16.mxu0 0
          %4357 = vmatpush1.bf16.msra.mxu0 %v4344
          %4358 = vmatprep.subr.bf16.mxu0 0
          %4359 = vmatpush1.bf16.msra.mxu0 %v4345
          %4360 = vmatprep.subr.bf16.mxu0 0
          %4361 = vmatpush1.bf16.msra.mxu0 %v4346
          %4362 = vmatprep.subr.bf16.mxu0 0
          %4363 = vmatpush1.bf16.msra.mxu0 0
          %4364 = vmatprep.subr.bf16.mxu0 0
          %4365 = vmatpush1.bf16.msra.mxu0 0
          %4366 = vmatprep.subr.bf16.mxu0 0
          %4367 = vmatpush1.bf16.msra.mxu0 0
          %4368 = vmatprep.subr.bf16.mxu0 0
          %4369 = vmatpush1.bf16.msra.mxu0 0
          %4370 = vmatprep.subr.bf16.mxu0 0
          %4371 = vmatpush1.bf16.msra.mxu0 0
          %4372 = vmatprep.subr.bf16.mxu0 0
          %4373 = vmatpush1.bf16.msra.mxu0 0
          %4374 = vmatprep.subr.bf16.mxu0 0
          %4375 = vmatpush1.bf16.msra.mxu0 0
          %4376 = vmatprep.subr.bf16.mxu0 0
          %4377 = vmatpush1.bf16.msra.mxu0 0
          %4378 = vmatprep.subr.bf16.mxu0 0
          %4379 = vmatpush1.bf16.msra.mxu0 0
          %4380 = vmatprep.subr.bf16.mxu0 0
          %4381 = vmatpush1.bf16.msra.mxu0 0
          %4382 = vmatprep.subr.bf16.mxu0 0
          %4383 = vmatpush1.bf16.msra.mxu0 0
          %4384 = vmatprep.subr.bf16.mxu0 0
          %4385 = vmatpush1.bf16.msra.mxu0 0
          %4386 = vmatprep.mubr.bf16.mxu0 0
          %4387 = vmatmul.mubr.bf16.gmra.mrb[0].mxu0 %v4352
          %v4388 = vpop.f32.mrb[0].mxu0
          %v4389 = vadd.f32 %v4325, %v4388
          %v4390 = vpop.f32.mrb[0].mxu0
          %v4391 = vpop.f32.mrb[0].mxu0
          %v4392 = vadd.f32 %v4325, %v4391
          %v4393 = vpop.f32.mrb[0].mxu0
          %4394 = vdwg.mxu0
          %v4395 = vadd.f32 %v657, %v4389
          %v4396 = vadd.f32 %v658, %v4392
          %4397 = vst.msk [vmem:[#allocation2] sm:$0xff] %vm3674, %v4395
          %4398 = vst.msk [vmem:[#allocation2 + $0x8] sm:$0xff] %vm3674, %v4396
          %v4399 = vld [vmem:[%s6] sm:$0x1]
          %v4400 = vld [vmem:[%s7] sm:$0x1]
          %v4401 = vsel %vm3674, %v4395, 0.0
          %4402 = vadd.xlane.f32.xlu0 %v4401
          %v4403 = vpop.xlane.xlu0 %4402
          %v4404 = vsel %vm3674, %v4396, 0.0
          %4405 = vadd.xlane.f32.xlu0 %v4404
          %v4406 = vpop.xlane.xlu0 %4405
          %v4407 = vrcp.pop 64.0
          %v4408 = vmul.f32 %v4403, %v4407
          %v4409 = vmul.f32 %v4406, %v4407
          %v4410 = vsub.f32 %v4395, %v4408
          %v4411 = vsub.f32 %v4396, %v4409
          %v4412 = vmul.f32 %v4410, %v4410
          %v4413 = vmul.f32 %v4411, %v4411
          %v4414 = vsel %vm3674, %v4412, 0.0
          %4415 = vadd.xlane.f32.xlu0 %v4414
          %v4416 = vpop.xlane.xlu0 %4415
          %v4417 = vsel %vm3674, %v4413, 0.0
          %4418 = vadd.xlane.f32.xlu0 %v4417
          %v4419 = vpop.xlane.xlu0 %4418
          %v4420 = vmul.f32 %v4416, %v4407
          %v4421 = vmul.f32 %v4419, %v4407
          %v4422 = vadd.f32 %v4420, 1e-05
          %v4423 = vadd.f32 %v4421, 1e-05
          %v4424 = vrsqrt.pop %v4422
          %v4425 = vrsqrt.pop %v4423
          %v4426 = vmul.f32 %v4410, %v4424
          %v4427 = vmul.f32 %v4411, %v4425
          %v4429 = vlaneseq
          %v4430 = vshrl.u32 %v4429, 7
          %v4431 = vsub.s32 0, %v4430
          %v4432 = vrot.slane %v4399, %v4431
          %v4434 = vmul.f32 %v4426, %v4432
          %v4435 = vmul.f32 %v4427, %v4432
          %v4437 = vlaneseq
          %v4438 = vshrl.u32 %v4437, 7
          %v4439 = vsub.s32 0, %v4438
          %v4440 = vrot.slane %v4400, %v4439
          %v4442 = vadd.f32 %v4434, %v4440
          %v4443 = vadd.f32 %v4435, %v4440
          %v4444 = vpack.c.bf16 %v4443, %v4442
          %4445 = vst.msk [vmem:[#allocation3] sm:$0xff] %vm3674, %v4444
          %4446 = vst.msk [vmem:[#allocation4] sm:$0xff] %vm3674, 0.0
          %4447 = vst.msk [vmem:[#allocation4 + $0x8] sm:$0xff] %vm3674, 0.0
        $region113: #{block_forward.3} parent=104 // pred_fallthru
          _
        %v4448 = vld [vmem:[#allocation3] sm:$0xff]
        %v4449 = vld [vmem:[%s536] sm:$0xf]
        %v4450 = vld [vmem:[%s536 + $0x4] sm:$0xf]
        %v4451 = vld [vmem:[%s536 + $0x8] sm:$0xf]
        %v4452 = vld [vmem:[%s536 + $0xc] sm:$0xf]
        %v4453 = vld [vmem:[%s536 + $0x10] sm:$0xf]
        %v4454 = vld [vmem:[%s536 + $0x14] sm:$0xf]
        %v4455 = vld [vmem:[%s536 + $0x18] sm:$0xf]
        %v4456 = vld [vmem:[%s536 + $0x1c] sm:$0xf]
        %v4457 = vld [vmem:[%s643] sm:$0x1]
        %v4459 = vlaneseq
        %v4460 = vshrl.u32 %v4459, 7
        %v4461 = vsub.s32 0, %v4460
        %v4462 = vrot.slane %v4457, %v4461
        %v4472 = vunpack.c.l.b16 %v4449
        %v4473 = vunpack.c.l.b16 %v4450
        %v4474 = vunpack.c.l.b16 %v4451
        %v4475 = vunpack.c.l.b16 %v4452
        %v4476 = vunpack.c.l.b16 %v4453
        %v4477 = vunpack.c.l.b16 %v4454
        %v4478 = vunpack.c.l.b16 %v4455
        %v4479 = vunpack.c.l.b16 %v4456
        %v4480 = vpack.c.b16 %v4473, %v4472
        %v4481 = vpack.c.b16 %v4475, %v4474
        %v4482 = vpack.c.b16 %v4477, %v4476
        %v4483 = vpack.c.b16 %v4479, %v4478
        %vm4488 = vcmask 523264
        %v4490 = vsel %vm4488, %v4448, 0
        %4492 = vmatprep.subr.bf16.mxu0 0
        %4493 = vmatpush1.bf16.msra.mxu0 %v4480
        %4494 = vmatprep.subr.bf16.mxu0 0
        %4495 = vmatpush1.bf16.msra.mxu0 %v4481
        %4496 = vmatprep.subr.bf16.mxu0 0
        %4497 = vmatpush1.bf16.msra.mxu0 %v4482
        %4498 = vmatprep.subr.bf16.mxu0 0
        %4499 = vmatpush1.bf16.msra.mxu0 %v4483
        %4500 = vmatprep.subr.bf16.mxu0 0
        %4501 = vmatpush1.bf16.msra.mxu0 0
        %4502 = vmatprep.subr.bf16.mxu0 0
        %4503 = vmatpush1.bf16.msra.mxu0 0
        %4504 = vmatprep.subr.bf16.mxu0 0
        %4505 = vmatpush1.bf16.msra.mxu0 0
        %4506 = vmatprep.subr.bf16.mxu0 0
        %4507 = vmatpush1.bf16.msra.mxu0 0
        %4508 = vmatprep.subr.bf16.mxu0 0
        %4509 = vmatpush1.bf16.msra.mxu0 0
        %4510 = vmatprep.subr.bf16.mxu0 0
        %4511 = vmatpush1.bf16.msra.mxu0 0
        %4512 = vmatprep.subr.bf16.mxu0 0
        %4513 = vmatpush1.bf16.msra.mxu0 0
        %4514 = vmatprep.subr.bf16.mxu0 0
        %4515 = vmatpush1.bf16.msra.mxu0 0
        %4516 = vmatprep.subr.bf16.mxu0 0
        %4517 = vmatpush1.bf16.msra.mxu0 0
        %4518 = vmatprep.subr.bf16.mxu0 0
        %4519 = vmatpush1.bf16.msra.mxu0 0
        %4520 = vmatprep.subr.bf16.mxu0 0
        %4521 = vmatpush1.bf16.msra.mxu0 0
        %4522 = vmatprep.subr.bf16.mxu0 0
        %4523 = vmatpush1.bf16.msra.mxu0 0
        %4524 = vmatprep.mubr.bf16.mxu0 0
        %4525 = vmatmul.mubr.bf16.gmra.mrb[0].mxu0 %v4490
        %v4526 = vpop.f32.mrb[0].mxu0
        %v4527 = vadd.f32 %v4462, %v4526
        %v4528 = vpop.f32.mrb[0].mxu0
        %v4529 = vpop.f32.mrb[0].mxu0
        %v4530 = vadd.f32 %v4462, %v4529
        %v4531 = vpop.f32.mrb[0].mxu0
        %4532 = vdwg.mxu0
        %v4533 = vmul.f32 %v4527, 0.5
        %v4534 = vmul.f32 %v4530, 0.5
        %v4535 = vmul.f32 %v4527, 0.044715
        %v4536 = vmul.f32 %v4530, 0.044715
        %v4537 = vmul.f32 %v4535, %v4527
        %v4538 = vmul.f32 %v4536, %v4530
        %v4539 = vmul.f32 %v4537, %v4527
        %v4540 = vmul.f32 %v4538, %v4530
        %v4541 = vadd.f32 %v4527, %v4539
        %v4542 = vadd.f32 %v4530, %v4540
        %v4543 = vmul.f32 %v4541, 0.7978846
        %v4544 = vmul.f32 %v4542, 0.7978846
        %v4545 = vtanh.pop %v4543
        %v4546 = vtanh.pop %v4544
        %v4547 = vadd.f32 %v4545, 1.0
        %v4548 = vadd.f32 %v4546, 1.0
        %v4549 = vmul.f32 %v4533, %v4547
        %v4550 = vmul.f32 %v4534, %v4548
        %v4551 = vld [vmem:[#allocation4] sm:$0xff]
        %v4552 = vld [vmem:[#allocation4 + $0x8] sm:$0xff]
        %v4553 = vpack.c.bf16 %v4550, %v4549
        %v4554 = vld [vmem:[%s648] sm:$0xf]
        %v4555 = vld [vmem:[%s648 + $0x4] sm:$0xf]
        %v4556 = vld [vmem:[%s648 + $0x8] sm:$0xf]
        %v4557 = vld [vmem:[%s648 + $0xc] sm:$0xf]
        %v4558 = vld [vmem:[%s648 + $0x10] sm:$0xf]
        %v4559 = vld [vmem:[%s648 + $0x14] sm:$0xf]
        %v4560 = vld [vmem:[%s648 + $0x18] sm:$0xf]
        %v4561 = vld [vmem:[%s648 + $0x1c] sm:$0xf]
        %v4562 = vld [vmem:[%s648 + $0x20] sm:$0xf]
        %v4563 = vld [vmem:[%s648 + $0x24] sm:$0xf]
        %v4564 = vld [vmem:[%s648 + $0x28] sm:$0xf]
        %v4565 = vld [vmem:[%s648 + $0x2c] sm:$0xf]
        %v4566 = vld [vmem:[%s648 + $0x30] sm:$0xf]
        %v4567 = vld [vmem:[%s648 + $0x34] sm:$0xf]
        %v4568 = vld [vmem:[%s648 + $0x38] sm:$0xf]
        %v4569 = vld [vmem:[%s648 + $0x3c] sm:$0xf]
        %v4586 = vunpack.c.l.b16 %v4554
        %v4587 = vunpack.c.l.b16 %v4555
        %v4588 = vunpack.c.l.b16 %v4556
        %v4589 = vunpack.c.l.b16 %v4557
        %v4590 = vunpack.c.l.b16 %v4558
        %v4591 = vunpack.c.l.b16 %v4559
        %v4592 = vunpack.c.l.b16 %v4560
        %v4593 = vunpack.c.l.b16 %v4561
        %v4594 = vunpack.c.l.b16 %v4562
        %v4595 = vunpack.c.l.b16 %v4563
        %v4596 = vunpack.c.l.b16 %v4564
        %v4597 = vunpack.c.l.b16 %v4565
        %v4598 = vunpack.c.l.b16 %v4566
        %v4599 = vunpack.c.l.b16 %v4567
        %v4600 = vunpack.c.l.b16 %v4568
        %v4601 = vunpack.c.l.b16 %v4569
        %v4602 = vpack.c.b16 %v4587, %v4586
        %v4603 = vpack.c.b16 %v4589, %v4588
        %v4604 = vpack.c.b16 %v4591, %v4590
        %v4605 = vpack.c.b16 %v4593, %v4592
        %v4606 = vpack.c.b16 %v4595, %v4594
        %v4607 = vpack.c.b16 %v4597, %v4596
        %v4608 = vpack.c.b16 %v4599, %v4598
        %v4609 = vpack.c.b16 %v4601, %v4600
        %4618 = vmatprep.subr.bf16.mxu0 0
        %4619 = vmatpush1.bf16.msra.mxu0 %v4602
        %4620 = vmatprep.subr.bf16.mxu0 0
        %4621 = vmatpush1.bf16.msra.mxu0 %v4603
        %4622 = vmatprep.subr.bf16.mxu0 0
        %4623 = vmatpush1.bf16.msra.mxu0 %v4604
        %4624 = vmatprep.subr.bf16.mxu0 0
        %4625 = vmatpush1.bf16.msra.mxu0 %v4605
        %4626 = vmatprep.subr.bf16.mxu0 0
        %4627 = vmatpush1.bf16.msra.mxu0 %v4606
        %4628 = vmatprep.subr.bf16.mxu0 0
        %4629 = vmatpush1.bf16.msra.mxu0 %v4607
        %4630 = vmatprep.subr.bf16.mxu0 0
        %4631 = vmatpush1.bf16.msra.mxu0 %v4608
        %4632 = vmatprep.subr.bf16.mxu0 0
        %4633 = vmatpush1.bf16.msra.mxu0 %v4609
        %4634 = vmatprep.subr.bf16.mxu0 0
        %4635 = vmatpush1.bf16.msra.mxu0 0
        %4636 = vmatprep.subr.bf16.mxu0 0
        %4637 = vmatpush1.bf16.msra.mxu0 0
        %4638 = vmatprep.subr.bf16.mxu0 0
        %4639 = vmatpush1.bf16.msra.mxu0 0
        %4640 = vmatprep.subr.bf16.mxu0 0
        %4641 = vmatpush1.bf16.msra.mxu0 0
        %4642 = vmatprep.subr.bf16.mxu0 0
        %4643 = vmatpush1.bf16.msra.mxu0 0
        %4644 = vmatprep.subr.bf16.mxu0 0
        %4645 = vmatpush1.bf16.msra.mxu0 0
        %4646 = vmatprep.subr.bf16.mxu0 0
        %4647 = vmatpush1.bf16.msra.mxu0 0
        %4648 = vmatprep.subr.bf16.mxu0 0
        %4649 = vmatpush1.bf16.msra.mxu0 0
        %4650 = vmatprep.mubr.bf16.mxu0 0
        %4651 = vmatmul.mubr.bf16.gmra.mrb[0].mxu0 %v4553
        %v4652 = vpop.f32.mrb[0].mxu0
        %v4653 = vadd.f32 0.0, %v4652
        %v4654 = vpop.f32.mrb[0].mxu0
        %v4655 = vpop.f32.mrb[0].mxu0
        %v4656 = vadd.f32 0.0, %v4655
        %v4657 = vpop.f32.mrb[0].mxu0
        %4658 = vdwg.mxu0
        %v4659 = vadd.f32 %v4551, %v4653
        %v4660 = vadd.f32 %v4552, %v4656
        %4661 = vst.msk [vmem:[#allocation4] sm:$0xff] %vm4488, %v4659
        %4662 = vst.msk [vmem:[#allocation4 + $0x8] sm:$0xff] %vm4488, %v4660
        %p4663 = scmp.eq.s32.totalorder %s33, 1
        // Predicated region
        $region114: #{block_forward.3} parent=104 // pred_check
          %p4664 = pneg %p4663
        $region115: #{block_forward.3} parent=104 // pred_check_branch
          %4666 = sbr.rel (%p4664) target = $region117
        $region116: #{block_forward.3} parent=104 // pred_region
          %v4667 = vld [vmem:[#allocation2] sm:$0xff]
          %v4668 = vld [vmem:[#allocation2 + $0x8] sm:$0xff]
          %v4669 = vld [vmem:[#allocation4] sm:$0xff]
          %v4670 = vld [vmem:[#allocation4 + $0x8] sm:$0xff]
          %v4671 = vadd.f32 %v4667, %v4669
          %v4672 = vadd.f32 %v4668, %v4670
          %v4673 = vld [vmem:[%s11] sm:$0x1]
          %v4675 = vlaneseq
          %v4676 = vshrl.u32 %v4675, 7
          %v4677 = vsub.s32 0, %v4676
          %v4678 = vrot.slane %v4673, %v4677
          %v4680 = vadd.f32 %v4671, %v4678
          %v4681 = vadd.f32 %v4672, %v4678
          %4682 = vst.msk [vmem:[%s610] sm:$0xff] %vm4488, %v4680
          %4683 = vst.msk [vmem:[%s610 + $0x8] sm:$0xff] %vm4488, %v4681
        $region117: #{block_forward.3} parent=104 // pred_fallthru
          _
        %s4684 = sand.u32 %s346, 1
        %s4685 = scalar_lea.sflag [#allocation7], %s4684
        %s4686 = sand.u32 %s346, 1
        %s4687 = smul.addr %s4686, 16
        %s4688 = scalar_lea.vmem [#allocation6], %s4687
        // Predicated region
        $region118: #{block_forward.3} parent=104 // pred_check
          %p4689 = pneg %p356
        $region119: #{block_forward.3} parent=104 // pred_check_branch
          %4691 = sbr.rel (%p4689) target = $region121
        $region120: #{block_forward.3} parent=104 // pred_region
          %s4692 = smul.u32 2, %s32
          %s4694 = ssub.s32 256, 256
          %4695 = vsyncadd %s4685, %s4694
          %s4696 = smul.addr %s31, 8
          %s4697 = sadd.s32 %s4692, %s4696
          %s4698 = smul.addr %s4697, 128
          %s4699 = scalar_lea.hbm %s12, %s4698
          %s4700 = sshll.u32 %s4688, 4
          %s4701 = int_to_ptr.vmem [resolvable:$true] %s4700
          %4706 = dma.vmem_to_hbm [thread:$0]  %s4701, 256, %s4699, %s4685, 128, 128, 8
        $region121: #{block_forward.3} parent=104 // pred_fallthru
          _
      $region105: #{block_forward.3} parent=5 // pred_fallthru
        _
      %p4707 = scmp.le.s32.totalorder 2, %s21
      // Predicated region
      $region122: #{block_forward.3} parent=5 // pred_check
        %p4708 = pneg %p4707
      $region123: #{block_forward.3} parent=5 // pred_check_branch
        %4710 = sbr.rel (%p4708) target = $region125
      $region124: #{block_forward.3} parent=5 // pred_region
        %s4711 = ssub.s32 %s21, 2
        // Predicated region
        $region126: #{block_forward.3} parent=124 // pred_check
          %p4712 = pneg %p362
        $region127: #{block_forward.3} parent=124 // pred_check_branch
          %4714 = sbr.rel (%p4712) target = $region129
        $region128: #{block_forward.3} parent=124 // pred_region
          %s4715 = sand.u32 %s347, 1
          %s4716 = scalar_lea.sflag [#allocation7], %s4715
          %s4717 = sand.u32 %s347, 1
          %s4718 = smul.addr %s4717, 16
          %s4719 = scalar_lea.vmem [#allocation6], %s4718
          %4720 = dma.done %s4716, 256
        $region129: #{block_forward.3} parent=124 // pred_fallthru
          _
      $region125: #{block_forward.3} parent=5 // pred_fallthru
        _
    $region6: #{block_forward.3} parent=1 // loop_footer
      %s25 = sadd.s32 1, %s21
    $region7: #{block_forward.3} parent=1 // loop_footer_branch
      %20 = sbr.rel target = $region3
    $region8: #{block_forward.3} parent=1 // loop_exit
      _
    %4721 = vsyncpa [#allocation7], 1
    %s4722 = scalar_lea.sflag [#allocation7], 1
    %4723 = vsyncpa %s4722, 1

</llo_original>
